<compile_context>
chip_gen: v7x
topology: tpu7x:2x2x1
jax: 0.10.0
libtpu: 0.0.40
codegen_flags: <defaults>
</compile_context>

<pallas_src>
import functools

import jax
import jax.numpy as jnp
from jax.experimental import pallas as pl
from jax.experimental.pallas import tpu as pltpu


# ----------------------------------------------------------------------------
# Pallas kernel: one bidirectional GRU layer, full sequence, single invocation.
# ----------------------------------------------------------------------------
def _gru_cell(gi_r, gi_z, gi_n, h, whh_t, b_hn, m):
    """One masked GRU update (PyTorch gate order r, z, n).

    gi_*: (B, H) precomputed input-gate terms (b_ih and b_hh[r,z] folded in).
    whh_t: (H, 3H) = W_hh^T, gate-major along the output lanes.
    b_hn:  (1, H)  hidden bias of the n gate (must stay inside r * (...)).
    m:     (B, 1)  validity mask (1 = real step, 0 = padding).
    """
    H = whh_t.shape[0]
    gh = jnp.dot(h, whh_t, preferred_element_type=jnp.float32)      # (B, 3H)
    r = jax.nn.sigmoid(gi_r + gh[:, 0 * H:1 * H])
    z = jax.nn.sigmoid(gi_z + gh[:, 1 * H:2 * H])
    n = jnp.tanh(gi_n + r * (gh[:, 2 * H:3 * H] + b_hn))
    h_new = (1.0 - z) * n + z * h
    # Padded steps keep the previous hidden state (packed-sequence semantics).
    return m * h_new + (1.0 - m) * h


def _bigru_layer_kernel(len_ref,
                        gir_f_ref, giz_f_ref, gin_f_ref,
                        gir_b_ref, giz_b_ref, gin_b_ref,
                        whh_f_ref, whh_b_ref,      # (H, 3H) each
                        bhn_f_ref, bhn_b_ref,      # (1, H) each
                        h0_f_ref, h0_b_ref,        # (B, H) each
                        out_ref,                   # (T, B, 2H) fused fwd|bwd
                        hN_ref):                   # (2, B, H) [fwd, bwd]
    T, _, H2 = out_ref.shape
    H = H2 // 2

    lengths = len_ref[...]                          # (B, 1) int32
    whh_f = whh_f_ref[...]
    whh_b = whh_b_ref[...]
    b_fn = bhn_f_ref[...]
    b_bn = bhn_b_ref[...]

    hf = h0_f_ref[...]                              # (B, H)
    hb = h0_b_ref[...]

    # T is small and static -> fully unrolled serial recurrence, everything
    # VMEM/vreg resident.  For long sequences switch to lax.fori_loop or a
    # chunked time grid (re-derive chunk size against 64 MiB VMEM on v7x).
    for t in range(T):
        tb = T - 1 - t                              # backward real time index
        m_f = (lengths > t).astype(jnp.float32)     # (B, 1) valid mask
        m_b = (lengths > tb).astype(jnp.float32)

        hf = _gru_cell(gir_f_ref[t], giz_f_ref[t], gin_f_ref[t],
                       hf, whh_f, b_fn, m_f)
        hb = _gru_cell(gir_b_ref[tb], giz_b_ref[tb], gin_b_ref[tb],
                       hb, whh_b, b_bn, m_b)

        # Outputs are zero at padded positions (pad_packed_sequence semantics).
        # Forward half in lanes [0:H], backward half in lanes [H:2H] -> no
        # post-kernel concatenate needed.
        out_ref[t, :, 0:H] = m_f * hf
        out_ref[tb, :, H:2 * H] = m_b * hb

    hN_ref[0] = hf
    hN_ref[1] = hb


def _bigru_layer(x, lengths_col, h0_f, h0_b, dir_params):
    """One bidirectional GRU layer.

    x:            (T, B, F_in) float32
    lengths_col:  (B, 1) int32
    h0_f, h0_b:   (B, H) float32
    dir_params:   [forward_dict, backward_dict] with keys
                  wih_t (F, 3H), whh_t (H, 3H), b_ih (3H,), b_hh (3H,)
    Returns (out (T, B, 2H), hN (2, B, H)).
    """
    T, B, _ = x.shape
    H = dir_params[0]["whh_t"].shape[0]

    gis = []
    for d in range(2):
        p = dir_params[d]
        # Hoisted input projection: one batched (T*B, F) x (F, 3H) matmul.
        gi = jnp.einsum("tbf,fg->tbg", x, p["wih_t"]) + p["b_ih"]   # (T, B, 3H)
        # Gate-major split; fold b_hh's r/z parts into the precomputed gates.
        gi_r = gi[..., 0 * H:1 * H] + p["b_hh"][0 * H:1 * H]
        gi_z = gi[..., 1 * H:2 * H] + p["b_hh"][1 * H:2 * H]
        gi_n = gi[..., 2 * H:3 * H]
        b_hn = p["b_hh"][2 * H:3 * H].reshape(1, H)
        gis.append((gi_r, gi_z, gi_n, b_hn))

    gir_f, giz_f, gin_f, bhn_f = gis[0]
    gir_b, giz_b, gin_b, bhn_b = gis[1]

    out, hN = pl.pallas_call(
        _bigru_layer_kernel,
        out_shape=(
            jax.ShapeDtypeStruct((T, B, 2 * H), jnp.float32),  # fused fwd|bwd
            jax.ShapeDtypeStruct((2, B, H), jnp.float32),      # final hiddens
        ),
    )(lengths_col,
      gir_f, giz_f, gin_f, gir_b, giz_b, gin_b,
      dir_params[0]["whh_t"], dir_params[1]["whh_t"], bhn_f, bhn_b,
      h0_f, h0_b)
    return out, hN


# ----------------------------------------------------------------------------
# Encoder: embedding (plain-JAX gather glue) + stacked bidirectional GRU
# (one fused Pallas kernel per layer).
# ----------------------------------------------------------------------------
def init_encoder_params(key, input_dim, emb_dim, hid_dim, n_layers):
    params = {}
    key, k_emb = jax.random.split(key)
    params["embedding"] = 0.1 * jax.random.normal(
        k_emb, (input_dim, emb_dim), jnp.float32)

    layers = []
    for l in range(n_layers):
        in_dim = emb_dim if l == 0 else 2 * hid_dim
        dirs = []
        for _d in range(2):  # forward, backward
            key, k1, k2, k3, k4 = jax.random.split(key, 5)
            dirs.append({
                # W_ih^T, input-major so gi = x @ wih_t
                "wih_t": 0.1 * jax.random.normal(
                    k1, (in_dim, 3 * hid_dim), jnp.float32),
                # W_hh^T, gate-major along output lanes (gate order r, z, n)
                "whh_t": 0.1 * jax.random.normal(
                    k2, (hid_dim, 3 * hid_dim), jnp.float32),
                "b_ih": 0.1 * jax.random.normal(k3, (3 * hid_dim,), jnp.float32),
                "b_hh": 0.1 * jax.random.normal(k4, (3 * hid_dim,), jnp.float32),
            })
        layers.append(dirs)
    params["gru"] = layers
    return params


@functools.partial(jax.jit, static_argnames=("n_layers",))
def encoder_forward(params, input_seqs, input_lengths, hidden, *, n_layers):
    """input_seqs: (T, B) int32, input_lengths: (B,) int32,
    hidden: (n_layers*2, B, H).  Returns (outputs (B, T, 2H), hidden')."""
    T, B = input_seqs.shape

    # Embedding lookup (gather glue, plain XLA).
    embedded = jnp.take(params["embedding"], input_seqs, axis=0)   # (T, B, E)

    # Sequence lengths consumed in-kernel to build the per-step validity mask.
    lengths_col = input_lengths.reshape(B, 1).astype(jnp.int32)

    x = embedded
    final_hiddens = []
    for l in range(n_layers):
        out, hN = _bigru_layer(
            x, lengths_col, hidden[2 * l], hidden[2 * l + 1], params["gru"][l])
        x = out                                                    # (T, B, 2H)
        final_hiddens.append(hN)                                   # (2, B, H)
        # TODO(synk): inter-layer dropout (p=0.5, training) skipped: eval-mode.

    outputs = jnp.transpose(x, (1, 0, 2))                          # (B, T, 2H)
    hidden_out = jnp.concatenate(final_hiddens, axis=0)            # (2L, B, H)
    return outputs, hidden_out


if __name__ == "__main__":
    INPUT_DIM = 20     # vocab size
    EMB_DIM = 16
    HID_DIM = 32
    N_LAYERS = 2
    T, B = 8, 3

    key = jax.random.PRNGKey(0)
    key, k_params, k_seq, k_h = jax.random.split(key, 4)

    params = init_encoder_params(k_params, INPUT_DIM, EMB_DIM, HID_DIM, N_LAYERS)

    input_seqs = jax.random.randint(k_seq, (T, B), 0, INPUT_DIM, dtype=jnp.int32)
    input_lengths = jnp.array([T, 5, 3], dtype=jnp.int32)  # longest first, max == T
    hidden0 = 0.1 * jax.random.normal(k_h, (N_LAYERS * 2, B, HID_DIM), jnp.float32)

    outputs, hidden = encoder_forward(
        params, input_seqs, input_lengths, hidden0, n_layers=N_LAYERS)
    jax.block_until_ready((outputs, hidden))

    assert outputs.shape == (B, T, 2 * HID_DIM)
    assert hidden.shape == (N_LAYERS * 2, B, HID_DIM)
    # padded positions must be zero, as after pad_packed_sequence
    assert float(jnp.abs(outputs[2, 3:, :]).max()) == 0.0
    assert float(jnp.abs(outputs[1, 5:, :]).max()) == 0.0
    assert bool(jnp.all(jnp.isfinite(outputs))) and bool(jnp.all(jnp.isfinite(hidden)))

    print("KERNEL_OK")
</pallas_src>

<mosaic_0001>
module attributes {stable_mosaic.version = 11 : i64} {
  func.func @_bigru_layer_kernel(%arg0: memref<3x1xi32, #tpu.memory_space<vmem>>, %arg1: memref<8x3x32xf32, #tpu.memory_space<vmem>>, %arg2: memref<8x3x32xf32, #tpu.memory_space<vmem>>, %arg3: memref<8x3x32xf32, #tpu.memory_space<vmem>>, %arg4: memref<8x3x32xf32, #tpu.memory_space<vmem>>, %arg5: memref<8x3x32xf32, #tpu.memory_space<vmem>>, %arg6: memref<8x3x32xf32, #tpu.memory_space<vmem>>, %arg7: memref<32x96xf32, #tpu.memory_space<vmem>>, %arg8: memref<32x96xf32, #tpu.memory_space<vmem>>, %arg9: memref<1x32xf32, #tpu.memory_space<vmem>>, %arg10: memref<1x32xf32, #tpu.memory_space<vmem>>, %arg11: memref<3x32xf32, #tpu.memory_space<vmem>>, %arg12: memref<3x32xf32, #tpu.memory_space<vmem>>, %arg13: memref<8x3x64xf32, #tpu.memory_space<vmem>>, %arg14: memref<2x3x32xf32, #tpu.memory_space<vmem>>) attributes {dimension_semantics = [], scalar_prefetch = 0 : i64, scratch_operands = 0 : i64, tpu.core_type = #tpu.core_type<tc>} {
    %c0 = arith.constant 0 : index
    %c0_0 = arith.constant 0 : index
    %0 = vector.load %arg0[%c0, %c0_0] : memref<3x1xi32, #tpu.memory_space<vmem>>, vector<3x1xi32>
    %c0_1 = arith.constant 0 : index
    %c0_2 = arith.constant 0 : index
    %1 = vector.load %arg7[%c0_1, %c0_2] : memref<32x96xf32, #tpu.memory_space<vmem>>, vector<32x96xf32>
    %c0_3 = arith.constant 0 : index
    %c0_4 = arith.constant 0 : index
    %2 = vector.load %arg8[%c0_3, %c0_4] : memref<32x96xf32, #tpu.memory_space<vmem>>, vector<32x96xf32>
    %c0_5 = arith.constant 0 : index
    %c0_6 = arith.constant 0 : index
    %3 = vector.load %arg9[%c0_5, %c0_6] : memref<1x32xf32, #tpu.memory_space<vmem>>, vector<1x32xf32>
    %c0_7 = arith.constant 0 : index
    %c0_8 = arith.constant 0 : index
    %4 = vector.load %arg10[%c0_7, %c0_8] : memref<1x32xf32, #tpu.memory_space<vmem>>, vector<1x32xf32>
    %c0_9 = arith.constant 0 : index
    %c0_10 = arith.constant 0 : index
    %5 = vector.load %arg11[%c0_9, %c0_10] : memref<3x32xf32, #tpu.memory_space<vmem>>, vector<3x32xf32>
    %c0_11 = arith.constant 0 : index
    %c0_12 = arith.constant 0 : index
    %6 = vector.load %arg12[%c0_11, %c0_12] : memref<3x32xf32, #tpu.memory_space<vmem>>, vector<3x32xf32>
    %c0_i32 = arith.constant 0 : i32
    %7 = vector.broadcast %c0_i32 : i32 to vector<3x1xi32>
    %8 = arith.cmpi sgt, %0, %7 : vector<3x1xi32>
    %9 = arith.extui %8 : vector<3x1xi1> to vector<3x1xi32>
    %10 = arith.sitofp %9 : vector<3x1xi32> to vector<3x1xf32>
    %c7_i32 = arith.constant 7 : i32
    %11 = vector.broadcast %c7_i32 : i32 to vector<3x1xi32>
    %12 = arith.cmpi sgt, %0, %11 : vector<3x1xi32>
    %13 = arith.extui %12 : vector<3x1xi1> to vector<3x1xi32>
    %14 = arith.sitofp %13 : vector<3x1xi32> to vector<3x1xf32>
    %c0_13 = arith.constant 0 : index
    %c0_14 = arith.constant 0 : index
    %c0_15 = arith.constant 0 : index
    %15 = vector.load %arg1[%c0_13, %c0_14, %c0_15] : memref<8x3x32xf32, #tpu.memory_space<vmem>>, vector<1x3x32xf32>
    %16 = vector.shape_cast %15 : vector<1x3x32xf32> to vector<3x32xf32>
    %c0_16 = arith.constant 0 : index
    %c0_17 = arith.constant 0 : index
    %c0_18 = arith.constant 0 : index
    %17 = vector.load %arg2[%c0_16, %c0_17, %c0_18] : memref<8x3x32xf32, #tpu.memory_space<vmem>>, vector<1x3x32xf32>
    %18 = vector.shape_cast %17 : vector<1x3x32xf32> to vector<3x32xf32>
    %c0_19 = arith.constant 0 : index
    %c0_20 = arith.constant 0 : index
    %c0_21 = arith.constant 0 : index
    %19 = vector.load %arg3[%c0_19, %c0_20, %c0_21] : memref<8x3x32xf32, #tpu.memory_space<vmem>>, vector<1x3x32xf32>
    %20 = vector.shape_cast %19 : vector<1x3x32xf32> to vector<3x32xf32>
    %cst = arith.constant dense<0.000000e+00> : vector<3x96xf32>
    %21 = tpu.matmul %5, %1, %cst {dimension_numbers = #tpu.dot_dimension_numbers<[1], [0], [0], [1], [0, 0, 1, 1], [], []>} : vector<3x32xf32>, vector<32x96xf32>, vector<3x96xf32> -> vector<3x96xf32>
    %22 = vector.extract_strided_slice %21 {offsets = [0, 0], sizes = [3, 32], strides = [1, 1]} : vector<3x96xf32> to vector<3x32xf32>
    %23 = arith.addf %16, %22 : vector<3x32xf32>
    %24 = arith.negf %23 : vector<3x32xf32>
    %25 = math.exp %24 : vector<3x32xf32>
    %cst_22 = arith.constant 1.000000e+00 : f32
    %26 = vector.broadcast %cst_22 : f32 to vector<3x32xf32>
    %27 = arith.addf %26, %25 : vector<3x32xf32>
    %28 = arith.divf %26, %27 : vector<3x32xf32>
    %29 = vector.extract_strided_slice %21 {offsets = [0, 32], sizes = [3, 32], strides = [1, 1]} : vector<3x96xf32> to vector<3x32xf32>
    %30 = arith.addf %18, %29 : vector<3x32xf32>
    %31 = arith.negf %30 : vector<3x32xf32>
    %32 = math.exp %31 : vector<3x32xf32>
    %cst_23 = arith.constant 1.000000e+00 : f32
    %33 = vector.broadcast %cst_23 : f32 to vector<3x32xf32>
    %34 = arith.addf %33, %32 : vector<3x32xf32>
    %35 = arith.divf %33, %34 : vector<3x32xf32>
    %36 = vector.extract_strided_slice %21 {offsets = [0, 64], sizes = [3, 32], strides = [1, 1]} : vector<3x96xf32> to vector<3x32xf32>
    %37 = vector.broadcast %3 : vector<1x32xf32> to vector<3x32xf32>
    %38 = arith.addf %36, %37 : vector<3x32xf32>
    %39 = arith.mulf %28, %38 : vector<3x32xf32>
    %40 = arith.addf %20, %39 : vector<3x32xf32>
    %41 = math.tanh %40 : vector<3x32xf32>
    %cst_24 = arith.constant 1.000000e+00 : f32
    %42 = vector.broadcast %cst_24 : f32 to vector<3x32xf32>
    %43 = arith.subf %42, %35 : vector<3x32xf32>
    %44 = arith.mulf %43, %41 : vector<3x32xf32>
    %45 = arith.mulf %35, %5 : vector<3x32xf32>
    %46 = arith.addf %44, %45 : vector<3x32xf32>
    %47 = vector.broadcast %10 : vector<3x1xf32> to vector<3x32xf32>
    %48 = arith.mulf %47, %46 : vector<3x32xf32>
    %cst_25 = arith.constant 1.000000e+00 : f32
    %49 = vector.broadcast %cst_25 : f32 to vector<3x1xf32>
    %50 = arith.subf %49, %10 : vector<3x1xf32>
    %51 = vector.broadcast %50 : vector<3x1xf32> to vector<3x32xf32>
    %52 = arith.mulf %51, %5 : vector<3x32xf32>
    %53 = arith.addf %48, %52 : vector<3x32xf32>
    %c7 = arith.constant 7 : index
    %c0_26 = arith.constant 0 : index
    %c0_27 = arith.constant 0 : index
    %54 = vector.load %arg4[%c7, %c0_26, %c0_27] : memref<8x3x32xf32, #tpu.memory_space<vmem>>, vector<1x3x32xf32>
    %55 = vector.shape_cast %54 : vector<1x3x32xf32> to vector<3x32xf32>
    %c7_28 = arith.constant 7 : index
    %c0_29 = arith.constant 0 : index
    %c0_30 = arith.constant 0 : index
    %56 = vector.load %arg5[%c7_28, %c0_29, %c0_30] : memref<8x3x32xf32, #tpu.memory_space<vmem>>, vector<1x3x32xf32>
    %57 = vector.shape_cast %56 : vector<1x3x32xf32> to vector<3x32xf32>
    %c7_31 = arith.constant 7 : index
    %c0_32 = arith.constant 0 : index
    %c0_33 = arith.constant 0 : index
    %58 = vector.load %arg6[%c7_31, %c0_32, %c0_33] : memref<8x3x32xf32, #tpu.memory_space<vmem>>, vector<1x3x32xf32>
    %59 = vector.shape_cast %58 : vector<1x3x32xf32> to vector<3x32xf32>
    %cst_34 = arith.constant dense<0.000000e+00> : vector<3x96xf32>
    %60 = tpu.matmul %6, %2, %cst_34 {dimension_numbers = #tpu.dot_dimension_numbers<[1], [0], [0], [1], [0, 0, 1, 1], [], []>} : vector<3x32xf32>, vector<32x96xf32>, vector<3x96xf32> -> vector<3x96xf32>
    %61 = vector.extract_strided_slice %60 {offsets = [0, 0], sizes = [3, 32], strides = [1, 1]} : vector<3x96xf32> to vector<3x32xf32>
    %62 = arith.addf %55, %61 : vector<3x32xf32>
    %63 = arith.negf %62 : vector<3x32xf32>
    %64 = math.exp %63 : vector<3x32xf32>
    %cst_35 = arith.constant 1.000000e+00 : f32
    %65 = vector.broadcast %cst_35 : f32 to vector<3x32xf32>
    %66 = arith.addf %65, %64 : vector<3x32xf32>
    %67 = arith.divf %65, %66 : vector<3x32xf32>
    %68 = vector.extract_strided_slice %60 {offsets = [0, 32], sizes = [3, 32], strides = [1, 1]} : vector<3x96xf32> to vector<3x32xf32>
    %69 = arith.addf %57, %68 : vector<3x32xf32>
    %70 = arith.negf %69 : vector<3x32xf32>
    %71 = math.exp %70 : vector<3x32xf32>
    %cst_36 = arith.constant 1.000000e+00 : f32
    %72 = vector.broadcast %cst_36 : f32 to vector<3x32xf32>
    %73 = arith.addf %72, %71 : vector<3x32xf32>
    %74 = arith.divf %72, %73 : vector<3x32xf32>
    %75 = vector.extract_strided_slice %60 {offsets = [0, 64], sizes = [3, 32], strides = [1, 1]} : vector<3x96xf32> to vector<3x32xf32>
    %76 = vector.broadcast %4 : vector<1x32xf32> to vector<3x32xf32>
    %77 = arith.addf %75, %76 : vector<3x32xf32>
    %78 = arith.mulf %67, %77 : vector<3x32xf32>
    %79 = arith.addf %59, %78 : vector<3x32xf32>
    %80 = math.tanh %79 : vector<3x32xf32>
    %cst_37 = arith.constant 1.000000e+00 : f32
    %81 = vector.broadcast %cst_37 : f32 to vector<3x32xf32>
    %82 = arith.subf %81, %74 : vector<3x32xf32>
    %83 = arith.mulf %82, %80 : vector<3x32xf32>
    %84 = arith.mulf %74, %6 : vector<3x32xf32>
    %85 = arith.addf %83, %84 : vector<3x32xf32>
    %86 = vector.broadcast %14 : vector<3x1xf32> to vector<3x32xf32>
    %87 = arith.mulf %86, %85 : vector<3x32xf32>
    %cst_38 = arith.constant 1.000000e+00 : f32
    %88 = vector.broadcast %cst_38 : f32 to vector<3x1xf32>
    %89 = arith.subf %88, %14 : vector<3x1xf32>
    %90 = vector.broadcast %89 : vector<3x1xf32> to vector<3x32xf32>
    %91 = arith.mulf %90, %6 : vector<3x32xf32>
    %92 = arith.addf %87, %91 : vector<3x32xf32>
    %93 = vector.broadcast %10 : vector<3x1xf32> to vector<3x32xf32>
    %94 = arith.mulf %93, %53 : vector<3x32xf32>
    %c0_39 = arith.constant 0 : index
    %c0_40 = arith.constant 0 : index
    %c0_41 = arith.constant 0 : index
    %95 = vector.load %arg13[%c0_39, %c0_40, %c0_41] : memref<8x3x64xf32, #tpu.memory_space<vmem>>, vector<1x3x32xf32>
    %96 = vector.shape_cast %95 : vector<1x3x32xf32> to vector<3x32xf32>
    %97 = vector.shape_cast %94 : vector<3x32xf32> to vector<1x3x32xf32>
    tpu.vector_store %arg13[%c0_39, %c0_40, %c0_41], %97 {strides = array<i32>} : memref<8x3x64xf32, #tpu.memory_space<vmem>>, vector<1x3x32xf32>,
    %98 = vector.broadcast %14 : vector<3x1xf32> to vector<3x32xf32>
    %99 = arith.mulf %98, %92 : vector<3x32xf32>
    %c7_42 = arith.constant 7 : index
    %c0_43 = arith.constant 0 : index
    %c32 = arith.constant 32 : index
    %100 = vector.load %arg13[%c7_42, %c0_43, %c32] : memref<8x3x64xf32, #tpu.memory_space<vmem>>, vector<1x3x32xf32>
    %101 = vector.shape_cast %100 : vector<1x3x32xf32> to vector<3x32xf32>
    %102 = vector.shape_cast %99 : vector<3x32xf32> to vector<1x3x32xf32>
    tpu.vector_store %arg13[%c7_42, %c0_43, %c32], %102 {strides = array<i32>} : memref<8x3x64xf32, #tpu.memory_space<vmem>>, vector<1x3x32xf32>,
    %c1_i32 = arith.constant 1 : i32
    %103 = vector.broadcast %c1_i32 : i32 to vector<3x1xi32>
    %104 = arith.cmpi sgt, %0, %103 : vector<3x1xi32>
    %105 = arith.extui %104 : vector<3x1xi1> to vector<3x1xi32>
    %106 = arith.sitofp %105 : vector<3x1xi32> to vector<3x1xf32>
    %c6_i32 = arith.constant 6 : i32
    %107 = vector.broadcast %c6_i32 : i32 to vector<3x1xi32>
    %108 = arith.cmpi sgt, %0, %107 : vector<3x1xi32>
    %109 = arith.extui %108 : vector<3x1xi1> to vector<3x1xi32>
    %110 = arith.sitofp %109 : vector<3x1xi32> to vector<3x1xf32>
    %c1 = arith.constant 1 : index
    %c0_44 = arith.constant 0 : index
    %c0_45 = arith.constant 0 : index
    %111 = vector.load %arg1[%c1, %c0_44, %c0_45] : memref<8x3x32xf32, #tpu.memory_space<vmem>>, vector<1x3x32xf32>
    %112 = vector.shape_cast %111 : vector<1x3x32xf32> to vector<3x32xf32>
    %c1_46 = arith.constant 1 : index
    %c0_47 = arith.constant 0 : index
    %c0_48 = arith.constant 0 : index
    %113 = vector.load %arg2[%c1_46, %c0_47, %c0_48] : memref<8x3x32xf32, #tpu.memory_space<vmem>>, vector<1x3x32xf32>
    %114 = vector.shape_cast %113 : vector<1x3x32xf32> to vector<3x32xf32>
    %c1_49 = arith.constant 1 : index
    %c0_50 = arith.constant 0 : index
    %c0_51 = arith.constant 0 : index
    %115 = vector.load %arg3[%c1_49, %c0_50, %c0_51] : memref<8x3x32xf32, #tpu.memory_space<vmem>>, vector<1x3x32xf32>
    %116 = vector.shape_cast %115 : vector<1x3x32xf32> to vector<3x32xf32>
    %cst_52 = arith.constant dense<0.000000e+00> : vector<3x96xf32>
    %117 = tpu.matmul %53, %1, %cst_52 {dimension_numbers = #tpu.dot_dimension_numbers<[1], [0], [0], [1], [0, 0, 1, 1], [], []>} : vector<3x32xf32>, vector<32x96xf32>, vector<3x96xf32> -> vector<3x96xf32>
    %118 = vector.extract_strided_slice %117 {offsets = [0, 0], sizes = [3, 32], strides = [1, 1]} : vector<3x96xf32> to vector<3x32xf32>
    %119 = arith.addf %112, %118 : vector<3x32xf32>
    %120 = arith.negf %119 : vector<3x32xf32>
    %121 = math.exp %120 : vector<3x32xf32>
    %cst_53 = arith.constant 1.000000e+00 : f32
    %122 = vector.broadcast %cst_53 : f32 to vector<3x32xf32>
    %123 = arith.addf %122, %121 : vector<3x32xf32>
    %124 = arith.divf %122, %123 : vector<3x32xf32>
    %125 = vector.extract_strided_slice %117 {offsets = [0, 32], sizes = [3, 32], strides = [1, 1]} : vector<3x96xf32> to vector<3x32xf32>
    %126 = arith.addf %114, %125 : vector<3x32xf32>
    %127 = arith.negf %126 : vector<3x32xf32>
    %128 = math.exp %127 : vector<3x32xf32>
    %cst_54 = arith.constant 1.000000e+00 : f32
    %129 = vector.broadcast %cst_54 : f32 to vector<3x32xf32>
    %130 = arith.addf %129, %128 : vector<3x32xf32>
    %131 = arith.divf %129, %130 : vector<3x32xf32>
    %132 = vector.extract_strided_slice %117 {offsets = [0, 64], sizes = [3, 32], strides = [1, 1]} : vector<3x96xf32> to vector<3x32xf32>
    %133 = vector.broadcast %3 : vector<1x32xf32> to vector<3x32xf32>
    %134 = arith.addf %132, %133 : vector<3x32xf32>
    %135 = arith.mulf %124, %134 : vector<3x32xf32>
    %136 = arith.addf %116, %135 : vector<3x32xf32>
    %137 = math.tanh %136 : vector<3x32xf32>
    %cst_55 = arith.constant 1.000000e+00 : f32
    %138 = vector.broadcast %cst_55 : f32 to vector<3x32xf32>
    %139 = arith.subf %138, %131 : vector<3x32xf32>
    %140 = arith.mulf %139, %137 : vector<3x32xf32>
    %141 = arith.mulf %131, %53 : vector<3x32xf32>
    %142 = arith.addf %140, %141 : vector<3x32xf32>
    %143 = vector.broadcast %106 : vector<3x1xf32> to vector<3x32xf32>
    %144 = arith.mulf %143, %142 : vector<3x32xf32>
    %cst_56 = arith.constant 1.000000e+00 : f32
    %145 = vector.broadcast %cst_56 : f32 to vector<3x1xf32>
    %146 = arith.subf %145, %106 : vector<3x1xf32>
    %147 = vector.broadcast %146 : vector<3x1xf32> to vector<3x32xf32>
    %148 = arith.mulf %147, %53 : vector<3x32xf32>
    %149 = arith.addf %144, %148 : vector<3x32xf32>
    %c6 = arith.constant 6 : index
    %c0_57 = arith.constant 0 : index
    %c0_58 = arith.constant 0 : index
    %150 = vector.load %arg4[%c6, %c0_57, %c0_58] : memref<8x3x32xf32, #tpu.memory_space<vmem>>, vector<1x3x32xf32>
    %151 = vector.shape_cast %150 : vector<1x3x32xf32> to vector<3x32xf32>
    %c6_59 = arith.constant 6 : index
    %c0_60 = arith.constant 0 : index
    %c0_61 = arith.constant 0 : index
    %152 = vector.load %arg5[%c6_59, %c0_60, %c0_61] : memref<8x3x32xf32, #tpu.memory_space<vmem>>, vector<1x3x32xf32>
    %153 = vector.shape_cast %152 : vector<1x3x32xf32> to vector<3x32xf32>
    %c6_62 = arith.constant 6 : index
    %c0_63 = arith.constant 0 : index
    %c0_64 = arith.constant 0 : index
    %154 = vector.load %arg6[%c6_62, %c0_63, %c0_64] : memref<8x3x32xf32, #tpu.memory_space<vmem>>, vector<1x3x32xf32>
    %155 = vector.shape_cast %154 : vector<1x3x32xf32> to vector<3x32xf32>
    %cst_65 = arith.constant dense<0.000000e+00> : vector<3x96xf32>
    %156 = tpu.matmul %92, %2, %cst_65 {dimension_numbers = #tpu.dot_dimension_numbers<[1], [0], [0], [1], [0, 0, 1, 1], [], []>} : vector<3x32xf32>, vector<32x96xf32>, vector<3x96xf32> -> vector<3x96xf32>
    %157 = vector.extract_strided_slice %156 {offsets = [0, 0], sizes = [3, 32], strides = [1, 1]} : vector<3x96xf32> to vector<3x32xf32>
    %158 = arith.addf %151, %157 : vector<3x32xf32>
    %159 = arith.negf %158 : vector<3x32xf32>
    %160 = math.exp %159 : vector<3x32xf32>
    %cst_66 = arith.constant 1.000000e+00 : f32
    %161 = vector.broadcast %cst_66 : f32 to vector<3x32xf32>
    %162 = arith.addf %161, %160 : vector<3x32xf32>
    %163 = arith.divf %161, %162 : vector<3x32xf32>
    %164 = vector.extract_strided_slice %156 {offsets = [0, 32], sizes = [3, 32], strides = [1, 1]} : vector<3x96xf32> to vector<3x32xf32>
    %165 = arith.addf %153, %164 : vector<3x32xf32>
    %166 = arith.negf %165 : vector<3x32xf32>
    %167 = math.exp %166 : vector<3x32xf32>
    %cst_67 = arith.constant 1.000000e+00 : f32
    %168 = vector.broadcast %cst_67 : f32 to vector<3x32xf32>
    %169 = arith.addf %168, %167 : vector<3x32xf32>
    %170 = arith.divf %168, %169 : vector<3x32xf32>
    %171 = vector.extract_strided_slice %156 {offsets = [0, 64], sizes = [3, 32], strides = [1, 1]} : vector<3x96xf32> to vector<3x32xf32>
    %172 = vector.broadcast %4 : vector<1x32xf32> to vector<3x32xf32>
    %173 = arith.addf %171, %172 : vector<3x32xf32>
    %174 = arith.mulf %163, %173 : vector<3x32xf32>
    %175 = arith.addf %155, %174 : vector<3x32xf32>
    %176 = math.tanh %175 : vector<3x32xf32>
    %cst_68 = arith.constant 1.000000e+00 : f32
    %177 = vector.broadcast %cst_68 : f32 to vector<3x32xf32>
    %178 = arith.subf %177, %170 : vector<3x32xf32>
    %179 = arith.mulf %178, %176 : vector<3x32xf32>
    %180 = arith.mulf %170, %92 : vector<3x32xf32>
    %181 = arith.addf %179, %180 : vector<3x32xf32>
    %182 = vector.broadcast %110 : vector<3x1xf32> to vector<3x32xf32>
    %183 = arith.mulf %182, %181 : vector<3x32xf32>
    %cst_69 = arith.constant 1.000000e+00 : f32
    %184 = vector.broadcast %cst_69 : f32 to vector<3x1xf32>
    %185 = arith.subf %184, %110 : vector<3x1xf32>
    %186 = vector.broadcast %185 : vector<3x1xf32> to vector<3x32xf32>
    %187 = arith.mulf %186, %92 : vector<3x32xf32>
    %188 = arith.addf %183, %187 : vector<3x32xf32>
    %189 = vector.broadcast %106 : vector<3x1xf32> to vector<3x32xf32>
    %190 = arith.mulf %189, %149 : vector<3x32xf32>
    %c1_70 = arith.constant 1 : index
    %c0_71 = arith.constant 0 : index
    %c0_72 = arith.constant 0 : index
    %191 = vector.load %arg13[%c1_70, %c0_71, %c0_72] : memref<8x3x64xf32, #tpu.memory_space<vmem>>, vector<1x3x32xf32>
    %192 = vector.shape_cast %191 : vector<1x3x32xf32> to vector<3x32xf32>
    %193 = vector.shape_cast %190 : vector<3x32xf32> to vector<1x3x32xf32>
    tpu.vector_store %arg13[%c1_70, %c0_71, %c0_72], %193 {strides = array<i32>} : memref<8x3x64xf32, #tpu.memory_space<vmem>>, vector<1x3x32xf32>,
    %194 = vector.broadcast %110 : vector<3x1xf32> to vector<3x32xf32>
    %195 = arith.mulf %194, %188 : vector<3x32xf32>
    %c6_73 = arith.constant 6 : index
    %c0_74 = arith.constant 0 : index
    %c32_75 = arith.constant 32 : index
    %196 = vector.load %arg13[%c6_73, %c0_74, %c32_75] : memref<8x3x64xf32, #tpu.memory_space<vmem>>, vector<1x3x32xf32>
    %197 = vector.shape_cast %196 : vector<1x3x32xf32> to vector<3x32xf32>
    %198 = vector.shape_cast %195 : vector<3x32xf32> to vector<1x3x32xf32>
    tpu.vector_store %arg13[%c6_73, %c0_74, %c32_75], %198 {strides = array<i32>} : memref<8x3x64xf32, #tpu.memory_space<vmem>>, vector<1x3x32xf32>,
    %c2_i32 = arith.constant 2 : i32
    %199 = vector.broadcast %c2_i32 : i32 to vector<3x1xi32>
    %200 = arith.cmpi sgt, %0, %199 : vector<3x1xi32>
    %201 = arith.extui %200 : vector<3x1xi1> to vector<3x1xi32>
    %202 = arith.sitofp %201 : vector<3x1xi32> to vector<3x1xf32>
    %c5_i32 = arith.constant 5 : i32
    %203 = vector.broadcast %c5_i32 : i32 to vector<3x1xi32>
    %204 = arith.cmpi sgt, %0, %203 : vector<3x1xi32>
    %205 = arith.extui %204 : vector<3x1xi1> to vector<3x1xi32>
    %206 = arith.sitofp %205 : vector<3x1xi32> to vector<3x1xf32>
    %c2 = arith.constant 2 : index
    %c0_76 = arith.constant 0 : index
    %c0_77 = arith.constant 0 : index
    %207 = vector.load %arg1[%c2, %c0_76, %c0_77] : memref<8x3x32xf32, #tpu.memory_space<vmem>>, vector<1x3x32xf32>
    %208 = vector.shape_cast %207 : vector<1x3x32xf32> to vector<3x32xf32>
    %c2_78 = arith.constant 2 : index
    %c0_79 = arith.constant 0 : index
    %c0_80 = arith.constant 0 : index
    %209 = vector.load %arg2[%c2_78, %c0_79, %c0_80] : memref<8x3x32xf32, #tpu.memory_space<vmem>>, vector<1x3x32xf32>
    %210 = vector.shape_cast %209 : vector<1x3x32xf32> to vector<3x32xf32>
    %c2_81 = arith.constant 2 : index
    %c0_82 = arith.constant 0 : index
    %c0_83 = arith.constant 0 : index
    %211 = vector.load %arg3[%c2_81, %c0_82, %c0_83] : memref<8x3x32xf32, #tpu.memory_space<vmem>>, vector<1x3x32xf32>
    %212 = vector.shape_cast %211 : vector<1x3x32xf32> to vector<3x32xf32>
    %cst_84 = arith.constant dense<0.000000e+00> : vector<3x96xf32>
    %213 = tpu.matmul %149, %1, %cst_84 {dimension_numbers = #tpu.dot_dimension_numbers<[1], [0], [0], [1], [0, 0, 1, 1], [], []>} : vector<3x32xf32>, vector<32x96xf32>, vector<3x96xf32> -> vector<3x96xf32>
    %214 = vector.extract_strided_slice %213 {offsets = [0, 0], sizes = [3, 32], strides = [1, 1]} : vector<3x96xf32> to vector<3x32xf32>
    %215 = arith.addf %208, %214 : vector<3x32xf32>
    %216 = arith.negf %215 : vector<3x32xf32>
    %217 = math.exp %216 : vector<3x32xf32>
    %cst_85 = arith.constant 1.000000e+00 : f32
    %218 = vector.broadcast %cst_85 : f32 to vector<3x32xf32>
    %219 = arith.addf %218, %217 : vector<3x32xf32>
    %220 = arith.divf %218, %219 : vector<3x32xf32>
    %221 = vector.extract_strided_slice %213 {offsets = [0, 32], sizes = [3, 32], strides = [1, 1]} : vector<3x96xf32> to vector<3x32xf32>
    %222 = arith.addf %210, %221 : vector<3x32xf32>
    %223 = arith.negf %222 : vector<3x32xf32>
    %224 = math.exp %223 : vector<3x32xf32>
    %cst_86 = arith.constant 1.000000e+00 : f32
    %225 = vector.broadcast %cst_86 : f32 to vector<3x32xf32>
    %226 = arith.addf %225, %224 : vector<3x32xf32>
    %227 = arith.divf %225, %226 : vector<3x32xf32>
    %228 = vector.extract_strided_slice %213 {offsets = [0, 64], sizes = [3, 32], strides = [1, 1]} : vector<3x96xf32> to vector<3x32xf32>
    %229 = vector.broadcast %3 : vector<1x32xf32> to vector<3x32xf32>
    %230 = arith.addf %228, %229 : vector<3x32xf32>
    %231 = arith.mulf %220, %230 : vector<3x32xf32>
    %232 = arith.addf %212, %231 : vector<3x32xf32>
    %233 = math.tanh %232 : vector<3x32xf32>
    %cst_87 = arith.constant 1.000000e+00 : f32
    %234 = vector.broadcast %cst_87 : f32 to vector<3x32xf32>
    %235 = arith.subf %234, %227 : vector<3x32xf32>
    %236 = arith.mulf %235, %233 : vector<3x32xf32>
    %237 = arith.mulf %227, %149 : vector<3x32xf32>
    %238 = arith.addf %236, %237 : vector<3x32xf32>
    %239 = vector.broadcast %202 : vector<3x1xf32> to vector<3x32xf32>
    %240 = arith.mulf %239, %238 : vector<3x32xf32>
    %cst_88 = arith.constant 1.000000e+00 : f32
    %241 = vector.broadcast %cst_88 : f32 to vector<3x1xf32>
    %242 = arith.subf %241, %202 : vector<3x1xf32>
    %243 = vector.broadcast %242 : vector<3x1xf32> to vector<3x32xf32>
    %244 = arith.mulf %243, %149 : vector<3x32xf32>
    %245 = arith.addf %240, %244 : vector<3x32xf32>
    %c5 = arith.constant 5 : index
    %c0_89 = arith.constant 0 : index
    %c0_90 = arith.constant 0 : index
    %246 = vector.load %arg4[%c5, %c0_89, %c0_90] : memref<8x3x32xf32, #tpu.memory_space<vmem>>, vector<1x3x32xf32>
    %247 = vector.shape_cast %246 : vector<1x3x32xf32> to vector<3x32xf32>
    %c5_91 = arith.constant 5 : index
    %c0_92 = arith.constant 0 : index
    %c0_93 = arith.constant 0 : index
    %248 = vector.load %arg5[%c5_91, %c0_92, %c0_93] : memref<8x3x32xf32, #tpu.memory_space<vmem>>, vector<1x3x32xf32>
    %249 = vector.shape_cast %248 : vector<1x3x32xf32> to vector<3x32xf32>
    %c5_94 = arith.constant 5 : index
    %c0_95 = arith.constant 0 : index
    %c0_96 = arith.constant 0 : index
    %250 = vector.load %arg6[%c5_94, %c0_95, %c0_96] : memref<8x3x32xf32, #tpu.memory_space<vmem>>, vector<1x3x32xf32>
    %251 = vector.shape_cast %250 : vector<1x3x32xf32> to vector<3x32xf32>
    %cst_97 = arith.constant dense<0.000000e+00> : vector<3x96xf32>
    %252 = tpu.matmul %188, %2, %cst_97 {dimension_numbers = #tpu.dot_dimension_numbers<[1], [0], [0], [1], [0, 0, 1, 1], [], []>} : vector<3x32xf32>, vector<32x96xf32>, vector<3x96xf32> -> vector<3x96xf32>
    %253 = vector.extract_strided_slice %252 {offsets = [0, 0], sizes = [3, 32], strides = [1, 1]} : vector<3x96xf32> to vector<3x32xf32>
    %254 = arith.addf %247, %253 : vector<3x32xf32>
    %255 = arith.negf %254 : vector<3x32xf32>
    %256 = math.exp %255 : vector<3x32xf32>
    %cst_98 = arith.constant 1.000000e+00 : f32
    %257 = vector.broadcast %cst_98 : f32 to vector<3x32xf32>
    %258 = arith.addf %257, %256 : vector<3x32xf32>
    %259 = arith.divf %257, %258 : vector<3x32xf32>
    %260 = vector.extract_strided_slice %252 {offsets = [0, 32], sizes = [3, 32], strides = [1, 1]} : vector<3x96xf32> to vector<3x32xf32>
    %261 = arith.addf %249, %260 : vector<3x32xf32>
    %262 = arith.negf %261 : vector<3x32xf32>
    %263 = math.exp %262 : vector<3x32xf32>
    %cst_99 = arith.constant 1.000000e+00 : f32
    %264 = vector.broadcast %cst_99 : f32 to vector<3x32xf32>
    %265 = arith.addf %264, %263 : vector<3x32xf32>
    %266 = arith.divf %264, %265 : vector<3x32xf32>
    %267 = vector.extract_strided_slice %252 {offsets = [0, 64], sizes = [3, 32], strides = [1, 1]} : vector<3x96xf32> to vector<3x32xf32>
    %268 = vector.broadcast %4 : vector<1x32xf32> to vector<3x32xf32>
    %269 = arith.addf %267, %268 : vector<3x32xf32>
    %270 = arith.mulf %259, %269 : vector<3x32xf32>
    %271 = arith.addf %251, %270 : vector<3x32xf32>
    %272 = math.tanh %271 : vector<3x32xf32>
    %cst_100 = arith.constant 1.000000e+00 : f32
    %273 = vector.broadcast %cst_100 : f32 to vector<3x32xf32>
    %274 = arith.subf %273, %266 : vector<3x32xf32>
    %275 = arith.mulf %274, %272 : vector<3x32xf32>
    %276 = arith.mulf %266, %188 : vector<3x32xf32>
    %277 = arith.addf %275, %276 : vector<3x32xf32>
    %278 = vector.broadcast %206 : vector<3x1xf32> to vector<3x32xf32>
    %279 = arith.mulf %278, %277 : vector<3x32xf32>
    %cst_101 = arith.constant 1.000000e+00 : f32
    %280 = vector.broadcast %cst_101 : f32 to vector<3x1xf32>
    %281 = arith.subf %280, %206 : vector<3x1xf32>
    %282 = vector.broadcast %281 : vector<3x1xf32> to vector<3x32xf32>
    %283 = arith.mulf %282, %188 : vector<3x32xf32>
    %284 = arith.addf %279, %283 : vector<3x32xf32>
    %285 = vector.broadcast %202 : vector<3x1xf32> to vector<3x32xf32>
    %286 = arith.mulf %285, %245 : vector<3x32xf32>
    %c2_102 = arith.constant 2 : index
    %c0_103 = arith.constant 0 : index
    %c0_104 = arith.constant 0 : index
    %287 = vector.load %arg13[%c2_102, %c0_103, %c0_104] : memref<8x3x64xf32, #tpu.memory_space<vmem>>, vector<1x3x32xf32>
    %288 = vector.shape_cast %287 : vector<1x3x32xf32> to vector<3x32xf32>
    %289 = vector.shape_cast %286 : vector<3x32xf32> to vector<1x3x32xf32>
    tpu.vector_store %arg13[%c2_102, %c0_103, %c0_104], %289 {strides = array<i32>} : memref<8x3x64xf32, #tpu.memory_space<vmem>>, vector<1x3x32xf32>,
    %290 = vector.broadcast %206 : vector<3x1xf32> to vector<3x32xf32>
    %291 = arith.mulf %290, %284 : vector<3x32xf32>
    %c5_105 = arith.constant 5 : index
    %c0_106 = arith.constant 0 : index
    %c32_107 = arith.constant 32 : index
    %292 = vector.load %arg13[%c5_105, %c0_106, %c32_107] : memref<8x3x64xf32, #tpu.memory_space<vmem>>, vector<1x3x32xf32>
    %293 = vector.shape_cast %292 : vector<1x3x32xf32> to vector<3x32xf32>
    %294 = vector.shape_cast %291 : vector<3x32xf32> to vector<1x3x32xf32>
    tpu.vector_store %arg13[%c5_105, %c0_106, %c32_107], %294 {strides = array<i32>} : memref<8x3x64xf32, #tpu.memory_space<vmem>>, vector<1x3x32xf32>,
    %c3_i32 = arith.constant 3 : i32
    %295 = vector.broadcast %c3_i32 : i32 to vector<3x1xi32>
    %296 = arith.cmpi sgt, %0, %295 : vector<3x1xi32>
    %297 = arith.extui %296 : vector<3x1xi1> to vector<3x1xi32>
    %298 = arith.sitofp %297 : vector<3x1xi32> to vector<3x1xf32>
    %c4_i32 = arith.constant 4 : i32
    %299 = vector.broadcast %c4_i32 : i32 to vector<3x1xi32>
    %300 = arith.cmpi sgt, %0, %299 : vector<3x1xi32>
    %301 = arith.extui %300 : vector<3x1xi1> to vector<3x1xi32>
    %302 = arith.sitofp %301 : vector<3x1xi32> to vector<3x1xf32>
    %c3 = arith.constant 3 : index
    %c0_108 = arith.constant 0 : index
    %c0_109 = arith.constant 0 : index
    %303 = vector.load %arg1[%c3, %c0_108, %c0_109] : memref<8x3x32xf32, #tpu.memory_space<vmem>>, vector<1x3x32xf32>
    %304 = vector.shape_cast %303 : vector<1x3x32xf32> to vector<3x32xf32>
    %c3_110 = arith.constant 3 : index
    %c0_111 = arith.constant 0 : index
    %c0_112 = arith.constant 0 : index
    %305 = vector.load %arg2[%c3_110, %c0_111, %c0_112] : memref<8x3x32xf32, #tpu.memory_space<vmem>>, vector<1x3x32xf32>
    %306 = vector.shape_cast %305 : vector<1x3x32xf32> to vector<3x32xf32>
    %c3_113 = arith.constant 3 : index
    %c0_114 = arith.constant 0 : index
    %c0_115 = arith.constant 0 : index
    %307 = vector.load %arg3[%c3_113, %c0_114, %c0_115] : memref<8x3x32xf32, #tpu.memory_space<vmem>>, vector<1x3x32xf32>
    %308 = vector.shape_cast %307 : vector<1x3x32xf32> to vector<3x32xf32>
    %cst_116 = arith.constant dense<0.000000e+00> : vector<3x96xf32>
    %309 = tpu.matmul %245, %1, %cst_116 {dimension_numbers = #tpu.dot_dimension_numbers<[1], [0], [0], [1], [0, 0, 1, 1], [], []>} : vector<3x32xf32>, vector<32x96xf32>, vector<3x96xf32> -> vector<3x96xf32>
    %310 = vector.extract_strided_slice %309 {offsets = [0, 0], sizes = [3, 32], strides = [1, 1]} : vector<3x96xf32> to vector<3x32xf32>
    %311 = arith.addf %304, %310 : vector<3x32xf32>
    %312 = arith.negf %311 : vector<3x32xf32>
    %313 = math.exp %312 : vector<3x32xf32>
    %cst_117 = arith.constant 1.000000e+00 : f32
    %314 = vector.broadcast %cst_117 : f32 to vector<3x32xf32>
    %315 = arith.addf %314, %313 : vector<3x32xf32>
    %316 = arith.divf %314, %315 : vector<3x32xf32>
    %317 = vector.extract_strided_slice %309 {offsets = [0, 32], sizes = [3, 32], strides = [1, 1]} : vector<3x96xf32> to vector<3x32xf32>
    %318 = arith.addf %306, %317 : vector<3x32xf32>
    %319 = arith.negf %318 : vector<3x32xf32>
    %320 = math.exp %319 : vector<3x32xf32>
    %cst_118 = arith.constant 1.000000e+00 : f32
    %321 = vector.broadcast %cst_118 : f32 to vector<3x32xf32>
    %322 = arith.addf %321, %320 : vector<3x32xf32>
    %323 = arith.divf %321, %322 : vector<3x32xf32>
    %324 = vector.extract_strided_slice %309 {offsets = [0, 64], sizes = [3, 32], strides = [1, 1]} : vector<3x96xf32> to vector<3x32xf32>
    %325 = vector.broadcast %3 : vector<1x32xf32> to vector<3x32xf32>
    %326 = arith.addf %324, %325 : vector<3x32xf32>
    %327 = arith.mulf %316, %326 : vector<3x32xf32>
    %328 = arith.addf %308, %327 : vector<3x32xf32>
    %329 = math.tanh %328 : vector<3x32xf32>
    %cst_119 = arith.constant 1.000000e+00 : f32
    %330 = vector.broadcast %cst_119 : f32 to vector<3x32xf32>
    %331 = arith.subf %330, %323 : vector<3x32xf32>
    %332 = arith.mulf %331, %329 : vector<3x32xf32>
    %333 = arith.mulf %323, %245 : vector<3x32xf32>
    %334 = arith.addf %332, %333 : vector<3x32xf32>
    %335 = vector.broadcast %298 : vector<3x1xf32> to vector<3x32xf32>
    %336 = arith.mulf %335, %334 : vector<3x32xf32>
    %cst_120 = arith.constant 1.000000e+00 : f32
    %337 = vector.broadcast %cst_120 : f32 to vector<3x1xf32>
    %338 = arith.subf %337, %298 : vector<3x1xf32>
    %339 = vector.broadcast %338 : vector<3x1xf32> to vector<3x32xf32>
    %340 = arith.mulf %339, %245 : vector<3x32xf32>
    %341 = arith.addf %336, %340 : vector<3x32xf32>
    %c4 = arith.constant 4 : index
    %c0_121 = arith.constant 0 : index
    %c0_122 = arith.constant 0 : index
    %342 = vector.load %arg4[%c4, %c0_121, %c0_122] : memref<8x3x32xf32, #tpu.memory_space<vmem>>, vector<1x3x32xf32>
    %343 = vector.shape_cast %342 : vector<1x3x32xf32> to vector<3x32xf32>
    %c4_123 = arith.constant 4 : index
    %c0_124 = arith.constant 0 : index
    %c0_125 = arith.constant 0 : index
    %344 = vector.load %arg5[%c4_123, %c0_124, %c0_125] : memref<8x3x32xf32, #tpu.memory_space<vmem>>, vector<1x3x32xf32>
    %345 = vector.shape_cast %344 : vector<1x3x32xf32> to vector<3x32xf32>
    %c4_126 = arith.constant 4 : index
    %c0_127 = arith.constant 0 : index
    %c0_128 = arith.constant 0 : index
    %346 = vector.load %arg6[%c4_126, %c0_127, %c0_128] : memref<8x3x32xf32, #tpu.memory_space<vmem>>, vector<1x3x32xf32>
    %347 = vector.shape_cast %346 : vector<1x3x32xf32> to vector<3x32xf32>
    %cst_129 = arith.constant dense<0.000000e+00> : vector<3x96xf32>
    %348 = tpu.matmul %284, %2, %cst_129 {dimension_numbers = #tpu.dot_dimension_numbers<[1], [0], [0], [1], [0, 0, 1, 1], [], []>} : vector<3x32xf32>, vector<32x96xf32>, vector<3x96xf32> -> vector<3x96xf32>
    %349 = vector.extract_strided_slice %348 {offsets = [0, 0], sizes = [3, 32], strides = [1, 1]} : vector<3x96xf32> to vector<3x32xf32>
    %350 = arith.addf %343, %349 : vector<3x32xf32>
    %351 = arith.negf %350 : vector<3x32xf32>
    %352 = math.exp %351 : vector<3x32xf32>
    %cst_130 = arith.constant 1.000000e+00 : f32
    %353 = vector.broadcast %cst_130 : f32 to vector<3x32xf32>
    %354 = arith.addf %353, %352 : vector<3x32xf32>
    %355 = arith.divf %353, %354 : vector<3x32xf32>
    %356 = vector.extract_strided_slice %348 {offsets = [0, 32], sizes = [3, 32], strides = [1, 1]} : vector<3x96xf32> to vector<3x32xf32>
    %357 = arith.addf %345, %356 : vector<3x32xf32>
    %358 = arith.negf %357 : vector<3x32xf32>
    %359 = math.exp %358 : vector<3x32xf32>
    %cst_131 = arith.constant 1.000000e+00 : f32
    %360 = vector.broadcast %cst_131 : f32 to vector<3x32xf32>
    %361 = arith.addf %360, %359 : vector<3x32xf32>
    %362 = arith.divf %360, %361 : vector<3x32xf32>
    %363 = vector.extract_strided_slice %348 {offsets = [0, 64], sizes = [3, 32], strides = [1, 1]} : vector<3x96xf32> to vector<3x32xf32>
    %364 = vector.broadcast %4 : vector<1x32xf32> to vector<3x32xf32>
    %365 = arith.addf %363, %364 : vector<3x32xf32>
    %366 = arith.mulf %355, %365 : vector<3x32xf32>
    %367 = arith.addf %347, %366 : vector<3x32xf32>
    %368 = math.tanh %367 : vector<3x32xf32>
    %cst_132 = arith.constant 1.000000e+00 : f32
    %369 = vector.broadcast %cst_132 : f32 to vector<3x32xf32>
    %370 = arith.subf %369, %362 : vector<3x32xf32>
    %371 = arith.mulf %370, %368 : vector<3x32xf32>
    %372 = arith.mulf %362, %284 : vector<3x32xf32>
    %373 = arith.addf %371, %372 : vector<3x32xf32>
    %374 = vector.broadcast %302 : vector<3x1xf32> to vector<3x32xf32>
    %375 = arith.mulf %374, %373 : vector<3x32xf32>
    %cst_133 = arith.constant 1.000000e+00 : f32
    %376 = vector.broadcast %cst_133 : f32 to vector<3x1xf32>
    %377 = arith.subf %376, %302 : vector<3x1xf32>
    %378 = vector.broadcast %377 : vector<3x1xf32> to vector<3x32xf32>
    %379 = arith.mulf %378, %284 : vector<3x32xf32>
    %380 = arith.addf %375, %379 : vector<3x32xf32>
    %381 = vector.broadcast %298 : vector<3x1xf32> to vector<3x32xf32>
    %382 = arith.mulf %381, %341 : vector<3x32xf32>
    %c3_134 = arith.constant 3 : index
    %c0_135 = arith.constant 0 : index
    %c0_136 = arith.constant 0 : index
    %383 = vector.load %arg13[%c3_134, %c0_135, %c0_136] : memref<8x3x64xf32, #tpu.memory_space<vmem>>, vector<1x3x32xf32>
    %384 = vector.shape_cast %383 : vector<1x3x32xf32> to vector<3x32xf32>
    %385 = vector.shape_cast %382 : vector<3x32xf32> to vector<1x3x32xf32>
    tpu.vector_store %arg13[%c3_134, %c0_135, %c0_136], %385 {strides = array<i32>} : memref<8x3x64xf32, #tpu.memory_space<vmem>>, vector<1x3x32xf32>,
    %386 = vector.broadcast %302 : vector<3x1xf32> to vector<3x32xf32>
    %387 = arith.mulf %386, %380 : vector<3x32xf32>
    %c4_137 = arith.constant 4 : index
    %c0_138 = arith.constant 0 : index
    %c32_139 = arith.constant 32 : index
    %388 = vector.load %arg13[%c4_137, %c0_138, %c32_139] : memref<8x3x64xf32, #tpu.memory_space<vmem>>, vector<1x3x32xf32>
    %389 = vector.shape_cast %388 : vector<1x3x32xf32> to vector<3x32xf32>
    %390 = vector.shape_cast %387 : vector<3x32xf32> to vector<1x3x32xf32>
    tpu.vector_store %arg13[%c4_137, %c0_138, %c32_139], %390 {strides = array<i32>} : memref<8x3x64xf32, #tpu.memory_space<vmem>>, vector<1x3x32xf32>,
    %c4_i32_140 = arith.constant 4 : i32
    %391 = vector.broadcast %c4_i32_140 : i32 to vector<3x1xi32>
    %392 = arith.cmpi sgt, %0, %391 : vector<3x1xi32>
    %393 = arith.extui %392 : vector<3x1xi1> to vector<3x1xi32>
    %394 = arith.sitofp %393 : vector<3x1xi32> to vector<3x1xf32>
    %c3_i32_141 = arith.constant 3 : i32
    %395 = vector.broadcast %c3_i32_141 : i32 to vector<3x1xi32>
    %396 = arith.cmpi sgt, %0, %395 : vector<3x1xi32>
    %397 = arith.extui %396 : vector<3x1xi1> to vector<3x1xi32>
    %398 = arith.sitofp %397 : vector<3x1xi32> to vector<3x1xf32>
    %c4_142 = arith.constant 4 : index
    %c0_143 = arith.constant 0 : index
    %c0_144 = arith.constant 0 : index
    %399 = vector.load %arg1[%c4_142, %c0_143, %c0_144] : memref<8x3x32xf32, #tpu.memory_space<vmem>>, vector<1x3x32xf32>
    %400 = vector.shape_cast %399 : vector<1x3x32xf32> to vector<3x32xf32>
    %c4_145 = arith.constant 4 : index
    %c0_146 = arith.constant 0 : index
    %c0_147 = arith.constant 0 : index
    %401 = vector.load %arg2[%c4_145, %c0_146, %c0_147] : memref<8x3x32xf32, #tpu.memory_space<vmem>>, vector<1x3x32xf32>
    %402 = vector.shape_cast %401 : vector<1x3x32xf32> to vector<3x32xf32>
    %c4_148 = arith.constant 4 : index
    %c0_149 = arith.constant 0 : index
    %c0_150 = arith.constant 0 : index
    %403 = vector.load %arg3[%c4_148, %c0_149, %c0_150] : memref<8x3x32xf32, #tpu.memory_space<vmem>>, vector<1x3x32xf32>
    %404 = vector.shape_cast %403 : vector<1x3x32xf32> to vector<3x32xf32>
    %cst_151 = arith.constant dense<0.000000e+00> : vector<3x96xf32>
    %405 = tpu.matmul %341, %1, %cst_151 {dimension_numbers = #tpu.dot_dimension_numbers<[1], [0], [0], [1], [0, 0, 1, 1], [], []>} : vector<3x32xf32>, vector<32x96xf32>, vector<3x96xf32> -> vector<3x96xf32>
    %406 = vector.extract_strided_slice %405 {offsets = [0, 0], sizes = [3, 32], strides = [1, 1]} : vector<3x96xf32> to vector<3x32xf32>
    %407 = arith.addf %400, %406 : vector<3x32xf32>
    %408 = arith.negf %407 : vector<3x32xf32>
    %409 = math.exp %408 : vector<3x32xf32>
    %cst_152 = arith.constant 1.000000e+00 : f32
    %410 = vector.broadcast %cst_152 : f32 to vector<3x32xf32>
    %411 = arith.addf %410, %409 : vector<3x32xf32>
    %412 = arith.divf %410, %411 : vector<3x32xf32>
    %413 = vector.extract_strided_slice %405 {offsets = [0, 32], sizes = [3, 32], strides = [1, 1]} : vector<3x96xf32> to vector<3x32xf32>
    %414 = arith.addf %402, %413 : vector<3x32xf32>
    %415 = arith.negf %414 : vector<3x32xf32>
    %416 = math.exp %415 : vector<3x32xf32>
    %cst_153 = arith.constant 1.000000e+00 : f32
    %417 = vector.broadcast %cst_153 : f32 to vector<3x32xf32>
    %418 = arith.addf %417, %416 : vector<3x32xf32>
    %419 = arith.divf %417, %418 : vector<3x32xf32>
    %420 = vector.extract_strided_slice %405 {offsets = [0, 64], sizes = [3, 32], strides = [1, 1]} : vector<3x96xf32> to vector<3x32xf32>
    %421 = vector.broadcast %3 : vector<1x32xf32> to vector<3x32xf32>
    %422 = arith.addf %420, %421 : vector<3x32xf32>
    %423 = arith.mulf %412, %422 : vector<3x32xf32>
    %424 = arith.addf %404, %423 : vector<3x32xf32>
    %425 = math.tanh %424 : vector<3x32xf32>
    %cst_154 = arith.constant 1.000000e+00 : f32
    %426 = vector.broadcast %cst_154 : f32 to vector<3x32xf32>
    %427 = arith.subf %426, %419 : vector<3x32xf32>
    %428 = arith.mulf %427, %425 : vector<3x32xf32>
    %429 = arith.mulf %419, %341 : vector<3x32xf32>
    %430 = arith.addf %428, %429 : vector<3x32xf32>
    %431 = vector.broadcast %394 : vector<3x1xf32> to vector<3x32xf32>
    %432 = arith.mulf %431, %430 : vector<3x32xf32>
    %cst_155 = arith.constant 1.000000e+00 : f32
    %433 = vector.broadcast %cst_155 : f32 to vector<3x1xf32>
    %434 = arith.subf %433, %394 : vector<3x1xf32>
    %435 = vector.broadcast %434 : vector<3x1xf32> to vector<3x32xf32>
    %436 = arith.mulf %435, %341 : vector<3x32xf32>
    %437 = arith.addf %432, %436 : vector<3x32xf32>
    %c3_156 = arith.constant 3 : index
    %c0_157 = arith.constant 0 : index
    %c0_158 = arith.constant 0 : index
    %438 = vector.load %arg4[%c3_156, %c0_157, %c0_158] : memref<8x3x32xf32, #tpu.memory_space<vmem>>, vector<1x3x32xf32>
    %439 = vector.shape_cast %438 : vector<1x3x32xf32> to vector<3x32xf32>
    %c3_159 = arith.constant 3 : index
    %c0_160 = arith.constant 0 : index
    %c0_161 = arith.constant 0 : index
    %440 = vector.load %arg5[%c3_159, %c0_160, %c0_161] : memref<8x3x32xf32, #tpu.memory_space<vmem>>, vector<1x3x32xf32>
    %441 = vector.shape_cast %440 : vector<1x3x32xf32> to vector<3x32xf32>
    %c3_162 = arith.constant 3 : index
    %c0_163 = arith.constant 0 : index
    %c0_164 = arith.constant 0 : index
    %442 = vector.load %arg6[%c3_162, %c0_163, %c0_164] : memref<8x3x32xf32, #tpu.memory_space<vmem>>, vector<1x3x32xf32>
    %443 = vector.shape_cast %442 : vector<1x3x32xf32> to vector<3x32xf32>
    %cst_165 = arith.constant dense<0.000000e+00> : vector<3x96xf32>
    %444 = tpu.matmul %380, %2, %cst_165 {dimension_numbers = #tpu.dot_dimension_numbers<[1], [0], [0], [1], [0, 0, 1, 1], [], []>} : vector<3x32xf32>, vector<32x96xf32>, vector<3x96xf32> -> vector<3x96xf32>
    %445 = vector.extract_strided_slice %444 {offsets = [0, 0], sizes = [3, 32], strides = [1, 1]} : vector<3x96xf32> to vector<3x32xf32>
    %446 = arith.addf %439, %445 : vector<3x32xf32>
    %447 = arith.negf %446 : vector<3x32xf32>
    %448 = math.exp %447 : vector<3x32xf32>
    %cst_166 = arith.constant 1.000000e+00 : f32
    %449 = vector.broadcast %cst_166 : f32 to vector<3x32xf32>
    %450 = arith.addf %449, %448 : vector<3x32xf32>
    %451 = arith.divf %449, %450 : vector<3x32xf32>
    %452 = vector.extract_strided_slice %444 {offsets = [0, 32], sizes = [3, 32], strides = [1, 1]} : vector<3x96xf32> to vector<3x32xf32>
    %453 = arith.addf %441, %452 : vector<3x32xf32>
    %454 = arith.negf %453 : vector<3x32xf32>
    %455 = math.exp %454 : vector<3x32xf32>
    %cst_167 = arith.constant 1.000000e+00 : f32
    %456 = vector.broadcast %cst_167 : f32 to vector<3x32xf32>
    %457 = arith.addf %456, %455 : vector<3x32xf32>
    %458 = arith.divf %456, %457 : vector<3x32xf32>
    %459 = vector.extract_strided_slice %444 {offsets = [0, 64], sizes = [3, 32], strides = [1, 1]} : vector<3x96xf32> to vector<3x32xf32>
    %460 = vector.broadcast %4 : vector<1x32xf32> to vector<3x32xf32>
    %461 = arith.addf %459, %460 : vector<3x32xf32>
    %462 = arith.mulf %451, %461 : vector<3x32xf32>
    %463 = arith.addf %443, %462 : vector<3x32xf32>
    %464 = math.tanh %463 : vector<3x32xf32>
    %cst_168 = arith.constant 1.000000e+00 : f32
    %465 = vector.broadcast %cst_168 : f32 to vector<3x32xf32>
    %466 = arith.subf %465, %458 : vector<3x32xf32>
    %467 = arith.mulf %466, %464 : vector<3x32xf32>
    %468 = arith.mulf %458, %380 : vector<3x32xf32>
    %469 = arith.addf %467, %468 : vector<3x32xf32>
    %470 = vector.broadcast %398 : vector<3x1xf32> to vector<3x32xf32>
    %471 = arith.mulf %470, %469 : vector<3x32xf32>
    %cst_169 = arith.constant 1.000000e+00 : f32
    %472 = vector.broadcast %cst_169 : f32 to vector<3x1xf32>
    %473 = arith.subf %472, %398 : vector<3x1xf32>
    %474 = vector.broadcast %473 : vector<3x1xf32> to vector<3x32xf32>
    %475 = arith.mulf %474, %380 : vector<3x32xf32>
    %476 = arith.addf %471, %475 : vector<3x32xf32>
    %477 = vector.broadcast %394 : vector<3x1xf32> to vector<3x32xf32>
    %478 = arith.mulf %477, %437 : vector<3x32xf32>
    %c4_170 = arith.constant 4 : index
    %c0_171 = arith.constant 0 : index
    %c0_172 = arith.constant 0 : index
    %479 = vector.load %arg13[%c4_170, %c0_171, %c0_172] : memref<8x3x64xf32, #tpu.memory_space<vmem>>, vector<1x3x32xf32>
    %480 = vector.shape_cast %479 : vector<1x3x32xf32> to vector<3x32xf32>
    %481 = vector.shape_cast %478 : vector<3x32xf32> to vector<1x3x32xf32>
    tpu.vector_store %arg13[%c4_170, %c0_171, %c0_172], %481 {strides = array<i32>} : memref<8x3x64xf32, #tpu.memory_space<vmem>>, vector<1x3x32xf32>,
    %482 = vector.broadcast %398 : vector<3x1xf32> to vector<3x32xf32>
    %483 = arith.mulf %482, %476 : vector<3x32xf32>
    %c3_173 = arith.constant 3 : index
    %c0_174 = arith.constant 0 : index
    %c32_175 = arith.constant 32 : index
    %484 = vector.load %arg13[%c3_173, %c0_174, %c32_175] : memref<8x3x64xf32, #tpu.memory_space<vmem>>, vector<1x3x32xf32>
    %485 = vector.shape_cast %484 : vector<1x3x32xf32> to vector<3x32xf32>
    %486 = vector.shape_cast %483 : vector<3x32xf32> to vector<1x3x32xf32>
    tpu.vector_store %arg13[%c3_173, %c0_174, %c32_175], %486 {strides = array<i32>} : memref<8x3x64xf32, #tpu.memory_space<vmem>>, vector<1x3x32xf32>,
    %c5_i32_176 = arith.constant 5 : i32
    %487 = vector.broadcast %c5_i32_176 : i32 to vector<3x1xi32>
    %488 = arith.cmpi sgt, %0, %487 : vector<3x1xi32>
    %489 = arith.extui %488 : vector<3x1xi1> to vector<3x1xi32>
    %490 = arith.sitofp %489 : vector<3x1xi32> to vector<3x1xf32>
    %c2_i32_177 = arith.constant 2 : i32
    %491 = vector.broadcast %c2_i32_177 : i32 to vector<3x1xi32>
    %492 = arith.cmpi sgt, %0, %491 : vector<3x1xi32>
    %493 = arith.extui %492 : vector<3x1xi1> to vector<3x1xi32>
    %494 = arith.sitofp %493 : vector<3x1xi32> to vector<3x1xf32>
    %c5_178 = arith.constant 5 : index
    %c0_179 = arith.constant 0 : index
    %c0_180 = arith.constant 0 : index
    %495 = vector.load %arg1[%c5_178, %c0_179, %c0_180] : memref<8x3x32xf32, #tpu.memory_space<vmem>>, vector<1x3x32xf32>
    %496 = vector.shape_cast %495 : vector<1x3x32xf32> to vector<3x32xf32>
    %c5_181 = arith.constant 5 : index
    %c0_182 = arith.constant 0 : index
    %c0_183 = arith.constant 0 : index
    %497 = vector.load %arg2[%c5_181, %c0_182, %c0_183] : memref<8x3x32xf32, #tpu.memory_space<vmem>>, vector<1x3x32xf32>
    %498 = vector.shape_cast %497 : vector<1x3x32xf32> to vector<3x32xf32>
    %c5_184 = arith.constant 5 : index
    %c0_185 = arith.constant 0 : index
    %c0_186 = arith.constant 0 : index
    %499 = vector.load %arg3[%c5_184, %c0_185, %c0_186] : memref<8x3x32xf32, #tpu.memory_space<vmem>>, vector<1x3x32xf32>
    %500 = vector.shape_cast %499 : vector<1x3x32xf32> to vector<3x32xf32>
    %cst_187 = arith.constant dense<0.000000e+00> : vector<3x96xf32>
    %501 = tpu.matmul %437, %1, %cst_187 {dimension_numbers = #tpu.dot_dimension_numbers<[1], [0], [0], [1], [0, 0, 1, 1], [], []>} : vector<3x32xf32>, vector<32x96xf32>, vector<3x96xf32> -> vector<3x96xf32>
    %502 = vector.extract_strided_slice %501 {offsets = [0, 0], sizes = [3, 32], strides = [1, 1]} : vector<3x96xf32> to vector<3x32xf32>
    %503 = arith.addf %496, %502 : vector<3x32xf32>
    %504 = arith.negf %503 : vector<3x32xf32>
    %505 = math.exp %504 : vector<3x32xf32>
    %cst_188 = arith.constant 1.000000e+00 : f32
    %506 = vector.broadcast %cst_188 : f32 to vector<3x32xf32>
    %507 = arith.addf %506, %505 : vector<3x32xf32>
    %508 = arith.divf %506, %507 : vector<3x32xf32>
    %509 = vector.extract_strided_slice %501 {offsets = [0, 32], sizes = [3, 32], strides = [1, 1]} : vector<3x96xf32> to vector<3x32xf32>
    %510 = arith.addf %498, %509 : vector<3x32xf32>
    %511 = arith.negf %510 : vector<3x32xf32>
    %512 = math.exp %511 : vector<3x32xf32>
    %cst_189 = arith.constant 1.000000e+00 : f32
    %513 = vector.broadcast %cst_189 : f32 to vector<3x32xf32>
    %514 = arith.addf %513, %512 : vector<3x32xf32>
    %515 = arith.divf %513, %514 : vector<3x32xf32>
    %516 = vector.extract_strided_slice %501 {offsets = [0, 64], sizes = [3, 32], strides = [1, 1]} : vector<3x96xf32> to vector<3x32xf32>
    %517 = vector.broadcast %3 : vector<1x32xf32> to vector<3x32xf32>
    %518 = arith.addf %516, %517 : vector<3x32xf32>
    %519 = arith.mulf %508, %518 : vector<3x32xf32>
    %520 = arith.addf %500, %519 : vector<3x32xf32>
    %521 = math.tanh %520 : vector<3x32xf32>
    %cst_190 = arith.constant 1.000000e+00 : f32
    %522 = vector.broadcast %cst_190 : f32 to vector<3x32xf32>
    %523 = arith.subf %522, %515 : vector<3x32xf32>
    %524 = arith.mulf %523, %521 : vector<3x32xf32>
    %525 = arith.mulf %515, %437 : vector<3x32xf32>
    %526 = arith.addf %524, %525 : vector<3x32xf32>
    %527 = vector.broadcast %490 : vector<3x1xf32> to vector<3x32xf32>
    %528 = arith.mulf %527, %526 : vector<3x32xf32>
    %cst_191 = arith.constant 1.000000e+00 : f32
    %529 = vector.broadcast %cst_191 : f32 to vector<3x1xf32>
    %530 = arith.subf %529, %490 : vector<3x1xf32>
    %531 = vector.broadcast %530 : vector<3x1xf32> to vector<3x32xf32>
    %532 = arith.mulf %531, %437 : vector<3x32xf32>
    %533 = arith.addf %528, %532 : vector<3x32xf32>
    %c2_192 = arith.constant 2 : index
    %c0_193 = arith.constant 0 : index
    %c0_194 = arith.constant 0 : index
    %534 = vector.load %arg4[%c2_192, %c0_193, %c0_194] : memref<8x3x32xf32, #tpu.memory_space<vmem>>, vector<1x3x32xf32>
    %535 = vector.shape_cast %534 : vector<1x3x32xf32> to vector<3x32xf32>
    %c2_195 = arith.constant 2 : index
    %c0_196 = arith.constant 0 : index
    %c0_197 = arith.constant 0 : index
    %536 = vector.load %arg5[%c2_195, %c0_196, %c0_197] : memref<8x3x32xf32, #tpu.memory_space<vmem>>, vector<1x3x32xf32>
    %537 = vector.shape_cast %536 : vector<1x3x32xf32> to vector<3x32xf32>
    %c2_198 = arith.constant 2 : index
    %c0_199 = arith.constant 0 : index
    %c0_200 = arith.constant 0 : index
    %538 = vector.load %arg6[%c2_198, %c0_199, %c0_200] : memref<8x3x32xf32, #tpu.memory_space<vmem>>, vector<1x3x32xf32>
    %539 = vector.shape_cast %538 : vector<1x3x32xf32> to vector<3x32xf32>
    %cst_201 = arith.constant dense<0.000000e+00> : vector<3x96xf32>
    %540 = tpu.matmul %476, %2, %cst_201 {dimension_numbers = #tpu.dot_dimension_numbers<[1], [0], [0], [1], [0, 0, 1, 1], [], []>} : vector<3x32xf32>, vector<32x96xf32>, vector<3x96xf32> -> vector<3x96xf32>
    %541 = vector.extract_strided_slice %540 {offsets = [0, 0], sizes = [3, 32], strides = [1, 1]} : vector<3x96xf32> to vector<3x32xf32>
    %542 = arith.addf %535, %541 : vector<3x32xf32>
    %543 = arith.negf %542 : vector<3x32xf32>
    %544 = math.exp %543 : vector<3x32xf32>
    %cst_202 = arith.constant 1.000000e+00 : f32
    %545 = vector.broadcast %cst_202 : f32 to vector<3x32xf32>
    %546 = arith.addf %545, %544 : vector<3x32xf32>
    %547 = arith.divf %545, %546 : vector<3x32xf32>
    %548 = vector.extract_strided_slice %540 {offsets = [0, 32], sizes = [3, 32], strides = [1, 1]} : vector<3x96xf32> to vector<3x32xf32>
    %549 = arith.addf %537, %548 : vector<3x32xf32>
    %550 = arith.negf %549 : vector<3x32xf32>
    %551 = math.exp %550 : vector<3x32xf32>
    %cst_203 = arith.constant 1.000000e+00 : f32
    %552 = vector.broadcast %cst_203 : f32 to vector<3x32xf32>
    %553 = arith.addf %552, %551 : vector<3x32xf32>
    %554 = arith.divf %552, %553 : vector<3x32xf32>
    %555 = vector.extract_strided_slice %540 {offsets = [0, 64], sizes = [3, 32], strides = [1, 1]} : vector<3x96xf32> to vector<3x32xf32>
    %556 = vector.broadcast %4 : vector<1x32xf32> to vector<3x32xf32>
    %557 = arith.addf %555, %556 : vector<3x32xf32>
    %558 = arith.mulf %547, %557 : vector<3x32xf32>
    %559 = arith.addf %539, %558 : vector<3x32xf32>
    %560 = math.tanh %559 : vector<3x32xf32>
    %cst_204 = arith.constant 1.000000e+00 : f32
    %561 = vector.broadcast %cst_204 : f32 to vector<3x32xf32>
    %562 = arith.subf %561, %554 : vector<3x32xf32>
    %563 = arith.mulf %562, %560 : vector<3x32xf32>
    %564 = arith.mulf %554, %476 : vector<3x32xf32>
    %565 = arith.addf %563, %564 : vector<3x32xf32>
    %566 = vector.broadcast %494 : vector<3x1xf32> to vector<3x32xf32>
    %567 = arith.mulf %566, %565 : vector<3x32xf32>
    %cst_205 = arith.constant 1.000000e+00 : f32
    %568 = vector.broadcast %cst_205 : f32 to vector<3x1xf32>
    %569 = arith.subf %568, %494 : vector<3x1xf32>
    %570 = vector.broadcast %569 : vector<3x1xf32> to vector<3x32xf32>
    %571 = arith.mulf %570, %476 : vector<3x32xf32>
    %572 = arith.addf %567, %571 : vector<3x32xf32>
    %573 = vector.broadcast %490 : vector<3x1xf32> to vector<3x32xf32>
    %574 = arith.mulf %573, %533 : vector<3x32xf32>
    %c5_206 = arith.constant 5 : index
    %c0_207 = arith.constant 0 : index
    %c0_208 = arith.constant 0 : index
    %575 = vector.load %arg13[%c5_206, %c0_207, %c0_208] : memref<8x3x64xf32, #tpu.memory_space<vmem>>, vector<1x3x32xf32>
    %576 = vector.shape_cast %575 : vector<1x3x32xf32> to vector<3x32xf32>
    %577 = vector.shape_cast %574 : vector<3x32xf32> to vector<1x3x32xf32>
    tpu.vector_store %arg13[%c5_206, %c0_207, %c0_208], %577 {strides = array<i32>} : memref<8x3x64xf32, #tpu.memory_space<vmem>>, vector<1x3x32xf32>,
    %578 = vector.broadcast %494 : vector<3x1xf32> to vector<3x32xf32>
    %579 = arith.mulf %578, %572 : vector<3x32xf32>
    %c2_209 = arith.constant 2 : index
    %c0_210 = arith.constant 0 : index
    %c32_211 = arith.constant 32 : index
    %580 = vector.load %arg13[%c2_209, %c0_210, %c32_211] : memref<8x3x64xf32, #tpu.memory_space<vmem>>, vector<1x3x32xf32>
    %581 = vector.shape_cast %580 : vector<1x3x32xf32> to vector<3x32xf32>
    %582 = vector.shape_cast %579 : vector<3x32xf32> to vector<1x3x32xf32>
    tpu.vector_store %arg13[%c2_209, %c0_210, %c32_211], %582 {strides = array<i32>} : memref<8x3x64xf32, #tpu.memory_space<vmem>>, vector<1x3x32xf32>,
    %c6_i32_212 = arith.constant 6 : i32
    %583 = vector.broadcast %c6_i32_212 : i32 to vector<3x1xi32>
    %584 = arith.cmpi sgt, %0, %583 : vector<3x1xi32>
    %585 = arith.extui %584 : vector<3x1xi1> to vector<3x1xi32>
    %586 = arith.sitofp %585 : vector<3x1xi32> to vector<3x1xf32>
    %c1_i32_213 = arith.constant 1 : i32
    %587 = vector.broadcast %c1_i32_213 : i32 to vector<3x1xi32>
    %588 = arith.cmpi sgt, %0, %587 : vector<3x1xi32>
    %589 = arith.extui %588 : vector<3x1xi1> to vector<3x1xi32>
    %590 = arith.sitofp %589 : vector<3x1xi32> to vector<3x1xf32>
    %c6_214 = arith.constant 6 : index
    %c0_215 = arith.constant 0 : index
    %c0_216 = arith.constant 0 : index
    %591 = vector.load %arg1[%c6_214, %c0_215, %c0_216] : memref<8x3x32xf32, #tpu.memory_space<vmem>>, vector<1x3x32xf32>
    %592 = vector.shape_cast %591 : vector<1x3x32xf32> to vector<3x32xf32>
    %c6_217 = arith.constant 6 : index
    %c0_218 = arith.constant 0 : index
    %c0_219 = arith.constant 0 : index
    %593 = vector.load %arg2[%c6_217, %c0_218, %c0_219] : memref<8x3x32xf32, #tpu.memory_space<vmem>>, vector<1x3x32xf32>
    %594 = vector.shape_cast %593 : vector<1x3x32xf32> to vector<3x32xf32>
    %c6_220 = arith.constant 6 : index
    %c0_221 = arith.constant 0 : index
    %c0_222 = arith.constant 0 : index
    %595 = vector.load %arg3[%c6_220, %c0_221, %c0_222] : memref<8x3x32xf32, #tpu.memory_space<vmem>>, vector<1x3x32xf32>
    %596 = vector.shape_cast %595 : vector<1x3x32xf32> to vector<3x32xf32>
    %cst_223 = arith.constant dense<0.000000e+00> : vector<3x96xf32>
    %597 = tpu.matmul %533, %1, %cst_223 {dimension_numbers = #tpu.dot_dimension_numbers<[1], [0], [0], [1], [0, 0, 1, 1], [], []>} : vector<3x32xf32>, vector<32x96xf32>, vector<3x96xf32> -> vector<3x96xf32>
    %598 = vector.extract_strided_slice %597 {offsets = [0, 0], sizes = [3, 32], strides = [1, 1]} : vector<3x96xf32> to vector<3x32xf32>
    %599 = arith.addf %592, %598 : vector<3x32xf32>
    %600 = arith.negf %599 : vector<3x32xf32>
    %601 = math.exp %600 : vector<3x32xf32>
    %cst_224 = arith.constant 1.000000e+00 : f32
    %602 = vector.broadcast %cst_224 : f32 to vector<3x32xf32>
    %603 = arith.addf %602, %601 : vector<3x32xf32>
    %604 = arith.divf %602, %603 : vector<3x32xf32>
    %605 = vector.extract_strided_slice %597 {offsets = [0, 32], sizes = [3, 32], strides = [1, 1]} : vector<3x96xf32> to vector<3x32xf32>
    %606 = arith.addf %594, %605 : vector<3x32xf32>
    %607 = arith.negf %606 : vector<3x32xf32>
    %608 = math.exp %607 : vector<3x32xf32>
    %cst_225 = arith.constant 1.000000e+00 : f32
    %609 = vector.broadcast %cst_225 : f32 to vector<3x32xf32>
    %610 = arith.addf %609, %608 : vector<3x32xf32>
    %611 = arith.divf %609, %610 : vector<3x32xf32>
    %612 = vector.extract_strided_slice %597 {offsets = [0, 64], sizes = [3, 32], strides = [1, 1]} : vector<3x96xf32> to vector<3x32xf32>
    %613 = vector.broadcast %3 : vector<1x32xf32> to vector<3x32xf32>
    %614 = arith.addf %612, %613 : vector<3x32xf32>
    %615 = arith.mulf %604, %614 : vector<3x32xf32>
    %616 = arith.addf %596, %615 : vector<3x32xf32>
    %617 = math.tanh %616 : vector<3x32xf32>
    %cst_226 = arith.constant 1.000000e+00 : f32
    %618 = vector.broadcast %cst_226 : f32 to vector<3x32xf32>
    %619 = arith.subf %618, %611 : vector<3x32xf32>
    %620 = arith.mulf %619, %617 : vector<3x32xf32>
    %621 = arith.mulf %611, %533 : vector<3x32xf32>
    %622 = arith.addf %620, %621 : vector<3x32xf32>
    %623 = vector.broadcast %586 : vector<3x1xf32> to vector<3x32xf32>
    %624 = arith.mulf %623, %622 : vector<3x32xf32>
    %cst_227 = arith.constant 1.000000e+00 : f32
    %625 = vector.broadcast %cst_227 : f32 to vector<3x1xf32>
    %626 = arith.subf %625, %586 : vector<3x1xf32>
    %627 = vector.broadcast %626 : vector<3x1xf32> to vector<3x32xf32>
    %628 = arith.mulf %627, %533 : vector<3x32xf32>
    %629 = arith.addf %624, %628 : vector<3x32xf32>
    %c1_228 = arith.constant 1 : index
    %c0_229 = arith.constant 0 : index
    %c0_230 = arith.constant 0 : index
    %630 = vector.load %arg4[%c1_228, %c0_229, %c0_230] : memref<8x3x32xf32, #tpu.memory_space<vmem>>, vector<1x3x32xf32>
    %631 = vector.shape_cast %630 : vector<1x3x32xf32> to vector<3x32xf32>
    %c1_231 = arith.constant 1 : index
    %c0_232 = arith.constant 0 : index
    %c0_233 = arith.constant 0 : index
    %632 = vector.load %arg5[%c1_231, %c0_232, %c0_233] : memref<8x3x32xf32, #tpu.memory_space<vmem>>, vector<1x3x32xf32>
    %633 = vector.shape_cast %632 : vector<1x3x32xf32> to vector<3x32xf32>
    %c1_234 = arith.constant 1 : index
    %c0_235 = arith.constant 0 : index
    %c0_236 = arith.constant 0 : index
    %634 = vector.load %arg6[%c1_234, %c0_235, %c0_236] : memref<8x3x32xf32, #tpu.memory_space<vmem>>, vector<1x3x32xf32>
    %635 = vector.shape_cast %634 : vector<1x3x32xf32> to vector<3x32xf32>
    %cst_237 = arith.constant dense<0.000000e+00> : vector<3x96xf32>
    %636 = tpu.matmul %572, %2, %cst_237 {dimension_numbers = #tpu.dot_dimension_numbers<[1], [0], [0], [1], [0, 0, 1, 1], [], []>} : vector<3x32xf32>, vector<32x96xf32>, vector<3x96xf32> -> vector<3x96xf32>
    %637 = vector.extract_strided_slice %636 {offsets = [0, 0], sizes = [3, 32], strides = [1, 1]} : vector<3x96xf32> to vector<3x32xf32>
    %638 = arith.addf %631, %637 : vector<3x32xf32>
    %639 = arith.negf %638 : vector<3x32xf32>
    %640 = math.exp %639 : vector<3x32xf32>
    %cst_238 = arith.constant 1.000000e+00 : f32
    %641 = vector.broadcast %cst_238 : f32 to vector<3x32xf32>
    %642 = arith.addf %641, %640 : vector<3x32xf32>
    %643 = arith.divf %641, %642 : vector<3x32xf32>
    %644 = vector.extract_strided_slice %636 {offsets = [0, 32], sizes = [3, 32], strides = [1, 1]} : vector<3x96xf32> to vector<3x32xf32>
    %645 = arith.addf %633, %644 : vector<3x32xf32>
    %646 = arith.negf %645 : vector<3x32xf32>
    %647 = math.exp %646 : vector<3x32xf32>
    %cst_239 = arith.constant 1.000000e+00 : f32
    %648 = vector.broadcast %cst_239 : f32 to vector<3x32xf32>
    %649 = arith.addf %648, %647 : vector<3x32xf32>
    %650 = arith.divf %648, %649 : vector<3x32xf32>
    %651 = vector.extract_strided_slice %636 {offsets = [0, 64], sizes = [3, 32], strides = [1, 1]} : vector<3x96xf32> to vector<3x32xf32>
    %652 = vector.broadcast %4 : vector<1x32xf32> to vector<3x32xf32>
    %653 = arith.addf %651, %652 : vector<3x32xf32>
    %654 = arith.mulf %643, %653 : vector<3x32xf32>
    %655 = arith.addf %635, %654 : vector<3x32xf32>
    %656 = math.tanh %655 : vector<3x32xf32>
    %cst_240 = arith.constant 1.000000e+00 : f32
    %657 = vector.broadcast %cst_240 : f32 to vector<3x32xf32>
    %658 = arith.subf %657, %650 : vector<3x32xf32>
    %659 = arith.mulf %658, %656 : vector<3x32xf32>
    %660 = arith.mulf %650, %572 : vector<3x32xf32>
    %661 = arith.addf %659, %660 : vector<3x32xf32>
    %662 = vector.broadcast %590 : vector<3x1xf32> to vector<3x32xf32>
    %663 = arith.mulf %662, %661 : vector<3x32xf32>
    %cst_241 = arith.constant 1.000000e+00 : f32
    %664 = vector.broadcast %cst_241 : f32 to vector<3x1xf32>
    %665 = arith.subf %664, %590 : vector<3x1xf32>
    %666 = vector.broadcast %665 : vector<3x1xf32> to vector<3x32xf32>
    %667 = arith.mulf %666, %572 : vector<3x32xf32>
    %668 = arith.addf %663, %667 : vector<3x32xf32>
    %669 = vector.broadcast %586 : vector<3x1xf32> to vector<3x32xf32>
    %670 = arith.mulf %669, %629 : vector<3x32xf32>
    %c6_242 = arith.constant 6 : index
    %c0_243 = arith.constant 0 : index
    %c0_244 = arith.constant 0 : index
    %671 = vector.load %arg13[%c6_242, %c0_243, %c0_244] : memref<8x3x64xf32, #tpu.memory_space<vmem>>, vector<1x3x32xf32>
    %672 = vector.shape_cast %671 : vector<1x3x32xf32> to vector<3x32xf32>
    %673 = vector.shape_cast %670 : vector<3x32xf32> to vector<1x3x32xf32>
    tpu.vector_store %arg13[%c6_242, %c0_243, %c0_244], %673 {strides = array<i32>} : memref<8x3x64xf32, #tpu.memory_space<vmem>>, vector<1x3x32xf32>,
    %674 = vector.broadcast %590 : vector<3x1xf32> to vector<3x32xf32>
    %675 = arith.mulf %674, %668 : vector<3x32xf32>
    %c1_245 = arith.constant 1 : index
    %c0_246 = arith.constant 0 : index
    %c32_247 = arith.constant 32 : index
    %676 = vector.load %arg13[%c1_245, %c0_246, %c32_247] : memref<8x3x64xf32, #tpu.memory_space<vmem>>, vector<1x3x32xf32>
    %677 = vector.shape_cast %676 : vector<1x3x32xf32> to vector<3x32xf32>
    %678 = vector.shape_cast %675 : vector<3x32xf32> to vector<1x3x32xf32>
    tpu.vector_store %arg13[%c1_245, %c0_246, %c32_247], %678 {strides = array<i32>} : memref<8x3x64xf32, #tpu.memory_space<vmem>>, vector<1x3x32xf32>,
    %c7_i32_248 = arith.constant 7 : i32
    %679 = vector.broadcast %c7_i32_248 : i32 to vector<3x1xi32>
    %680 = arith.cmpi sgt, %0, %679 : vector<3x1xi32>
    %681 = arith.extui %680 : vector<3x1xi1> to vector<3x1xi32>
    %682 = arith.sitofp %681 : vector<3x1xi32> to vector<3x1xf32>
    %c0_i32_249 = arith.constant 0 : i32
    %683 = vector.broadcast %c0_i32_249 : i32 to vector<3x1xi32>
    %684 = arith.cmpi sgt, %0, %683 : vector<3x1xi32>
    %685 = arith.extui %684 : vector<3x1xi1> to vector<3x1xi32>
    %686 = arith.sitofp %685 : vector<3x1xi32> to vector<3x1xf32>
    %c7_250 = arith.constant 7 : index
    %c0_251 = arith.constant 0 : index
    %c0_252 = arith.constant 0 : index
    %687 = vector.load %arg1[%c7_250, %c0_251, %c0_252] : memref<8x3x32xf32, #tpu.memory_space<vmem>>, vector<1x3x32xf32>
    %688 = vector.shape_cast %687 : vector<1x3x32xf32> to vector<3x32xf32>
    %c7_253 = arith.constant 7 : index
    %c0_254 = arith.constant 0 : index
    %c0_255 = arith.constant 0 : index
    %689 = vector.load %arg2[%c7_253, %c0_254, %c0_255] : memref<8x3x32xf32, #tpu.memory_space<vmem>>, vector<1x3x32xf32>
    %690 = vector.shape_cast %689 : vector<1x3x32xf32> to vector<3x32xf32>
    %c7_256 = arith.constant 7 : index
    %c0_257 = arith.constant 0 : index
    %c0_258 = arith.constant 0 : index
    %691 = vector.load %arg3[%c7_256, %c0_257, %c0_258] : memref<8x3x32xf32, #tpu.memory_space<vmem>>, vector<1x3x32xf32>
    %692 = vector.shape_cast %691 : vector<1x3x32xf32> to vector<3x32xf32>
    %cst_259 = arith.constant dense<0.000000e+00> : vector<3x96xf32>
    %693 = tpu.matmul %629, %1, %cst_259 {dimension_numbers = #tpu.dot_dimension_numbers<[1], [0], [0], [1], [0, 0, 1, 1], [], []>} : vector<3x32xf32>, vector<32x96xf32>, vector<3x96xf32> -> vector<3x96xf32>
    %694 = vector.extract_strided_slice %693 {offsets = [0, 0], sizes = [3, 32], strides = [1, 1]} : vector<3x96xf32> to vector<3x32xf32>
    %695 = arith.addf %688, %694 : vector<3x32xf32>
    %696 = arith.negf %695 : vector<3x32xf32>
    %697 = math.exp %696 : vector<3x32xf32>
    %cst_260 = arith.constant 1.000000e+00 : f32
    %698 = vector.broadcast %cst_260 : f32 to vector<3x32xf32>
    %699 = arith.addf %698, %697 : vector<3x32xf32>
    %700 = arith.divf %698, %699 : vector<3x32xf32>
    %701 = vector.extract_strided_slice %693 {offsets = [0, 32], sizes = [3, 32], strides = [1, 1]} : vector<3x96xf32> to vector<3x32xf32>
    %702 = arith.addf %690, %701 : vector<3x32xf32>
    %703 = arith.negf %702 : vector<3x32xf32>
    %704 = math.exp %703 : vector<3x32xf32>
    %cst_261 = arith.constant 1.000000e+00 : f32
    %705 = vector.broadcast %cst_261 : f32 to vector<3x32xf32>
    %706 = arith.addf %705, %704 : vector<3x32xf32>
    %707 = arith.divf %705, %706 : vector<3x32xf32>
    %708 = vector.extract_strided_slice %693 {offsets = [0, 64], sizes = [3, 32], strides = [1, 1]} : vector<3x96xf32> to vector<3x32xf32>
    %709 = vector.broadcast %3 : vector<1x32xf32> to vector<3x32xf32>
    %710 = arith.addf %708, %709 : vector<3x32xf32>
    %711 = arith.mulf %700, %710 : vector<3x32xf32>
    %712 = arith.addf %692, %711 : vector<3x32xf32>
    %713 = math.tanh %712 : vector<3x32xf32>
    %cst_262 = arith.constant 1.000000e+00 : f32
    %714 = vector.broadcast %cst_262 : f32 to vector<3x32xf32>
    %715 = arith.subf %714, %707 : vector<3x32xf32>
    %716 = arith.mulf %715, %713 : vector<3x32xf32>
    %717 = arith.mulf %707, %629 : vector<3x32xf32>
    %718 = arith.addf %716, %717 : vector<3x32xf32>
    %719 = vector.broadcast %682 : vector<3x1xf32> to vector<3x32xf32>
    %720 = arith.mulf %719, %718 : vector<3x32xf32>
    %cst_263 = arith.constant 1.000000e+00 : f32
    %721 = vector.broadcast %cst_263 : f32 to vector<3x1xf32>
    %722 = arith.subf %721, %682 : vector<3x1xf32>
    %723 = vector.broadcast %722 : vector<3x1xf32> to vector<3x32xf32>
    %724 = arith.mulf %723, %629 : vector<3x32xf32>
    %725 = arith.addf %720, %724 : vector<3x32xf32>
    %c0_264 = arith.constant 0 : index
    %c0_265 = arith.constant 0 : index
    %c0_266 = arith.constant 0 : index
    %726 = vector.load %arg4[%c0_264, %c0_265, %c0_266] : memref<8x3x32xf32, #tpu.memory_space<vmem>>, vector<1x3x32xf32>
    %727 = vector.shape_cast %726 : vector<1x3x32xf32> to vector<3x32xf32>
    %c0_267 = arith.constant 0 : index
    %c0_268 = arith.constant 0 : index
    %c0_269 = arith.constant 0 : index
    %728 = vector.load %arg5[%c0_267, %c0_268, %c0_269] : memref<8x3x32xf32, #tpu.memory_space<vmem>>, vector<1x3x32xf32>
    %729 = vector.shape_cast %728 : vector<1x3x32xf32> to vector<3x32xf32>
    %c0_270 = arith.constant 0 : index
    %c0_271 = arith.constant 0 : index
    %c0_272 = arith.constant 0 : index
    %730 = vector.load %arg6[%c0_270, %c0_271, %c0_272] : memref<8x3x32xf32, #tpu.memory_space<vmem>>, vector<1x3x32xf32>
    %731 = vector.shape_cast %730 : vector<1x3x32xf32> to vector<3x32xf32>
    %cst_273 = arith.constant dense<0.000000e+00> : vector<3x96xf32>
    %732 = tpu.matmul %668, %2, %cst_273 {dimension_numbers = #tpu.dot_dimension_numbers<[1], [0], [0], [1], [0, 0, 1, 1], [], []>} : vector<3x32xf32>, vector<32x96xf32>, vector<3x96xf32> -> vector<3x96xf32>
    %733 = vector.extract_strided_slice %732 {offsets = [0, 0], sizes = [3, 32], strides = [1, 1]} : vector<3x96xf32> to vector<3x32xf32>
    %734 = arith.addf %727, %733 : vector<3x32xf32>
    %735 = arith.negf %734 : vector<3x32xf32>
    %736 = math.exp %735 : vector<3x32xf32>
    %cst_274 = arith.constant 1.000000e+00 : f32
    %737 = vector.broadcast %cst_274 : f32 to vector<3x32xf32>
    %738 = arith.addf %737, %736 : vector<3x32xf32>
    %739 = arith.divf %737, %738 : vector<3x32xf32>
    %740 = vector.extract_strided_slice %732 {offsets = [0, 32], sizes = [3, 32], strides = [1, 1]} : vector<3x96xf32> to vector<3x32xf32>
    %741 = arith.addf %729, %740 : vector<3x32xf32>
    %742 = arith.negf %741 : vector<3x32xf32>
    %743 = math.exp %742 : vector<3x32xf32>
    %cst_275 = arith.constant 1.000000e+00 : f32
    %744 = vector.broadcast %cst_275 : f32 to vector<3x32xf32>
    %745 = arith.addf %744, %743 : vector<3x32xf32>
    %746 = arith.divf %744, %745 : vector<3x32xf32>
    %747 = vector.extract_strided_slice %732 {offsets = [0, 64], sizes = [3, 32], strides = [1, 1]} : vector<3x96xf32> to vector<3x32xf32>
    %748 = vector.broadcast %4 : vector<1x32xf32> to vector<3x32xf32>
    %749 = arith.addf %747, %748 : vector<3x32xf32>
    %750 = arith.mulf %739, %749 : vector<3x32xf32>
    %751 = arith.addf %731, %750 : vector<3x32xf32>
    %752 = math.tanh %751 : vector<3x32xf32>
    %cst_276 = arith.constant 1.000000e+00 : f32
    %753 = vector.broadcast %cst_276 : f32 to vector<3x32xf32>
    %754 = arith.subf %753, %746 : vector<3x32xf32>
    %755 = arith.mulf %754, %752 : vector<3x32xf32>
    %756 = arith.mulf %746, %668 : vector<3x32xf32>
    %757 = arith.addf %755, %756 : vector<3x32xf32>
    %758 = vector.broadcast %686 : vector<3x1xf32> to vector<3x32xf32>
    %759 = arith.mulf %758, %757 : vector<3x32xf32>
    %cst_277 = arith.constant 1.000000e+00 : f32
    %760 = vector.broadcast %cst_277 : f32 to vector<3x1xf32>
    %761 = arith.subf %760, %686 : vector<3x1xf32>
    %762 = vector.broadcast %761 : vector<3x1xf32> to vector<3x32xf32>
    %763 = arith.mulf %762, %668 : vector<3x32xf32>
    %764 = arith.addf %759, %763 : vector<3x32xf32>
    %765 = vector.broadcast %682 : vector<3x1xf32> to vector<3x32xf32>
    %766 = arith.mulf %765, %725 : vector<3x32xf32>
    %c7_278 = arith.constant 7 : index
    %c0_279 = arith.constant 0 : index
    %c0_280 = arith.constant 0 : index
    %767 = vector.load %arg13[%c7_278, %c0_279, %c0_280] : memref<8x3x64xf32, #tpu.memory_space<vmem>>, vector<1x3x32xf32>
    %768 = vector.shape_cast %767 : vector<1x3x32xf32> to vector<3x32xf32>
    %769 = vector.shape_cast %766 : vector<3x32xf32> to vector<1x3x32xf32>
    tpu.vector_store %arg13[%c7_278, %c0_279, %c0_280], %769 {strides = array<i32>} : memref<8x3x64xf32, #tpu.memory_space<vmem>>, vector<1x3x32xf32>,
    %770 = vector.broadcast %686 : vector<3x1xf32> to vector<3x32xf32>
    %771 = arith.mulf %770, %764 : vector<3x32xf32>
    %c0_281 = arith.constant 0 : index
    %c0_282 = arith.constant 0 : index
    %c32_283 = arith.constant 32 : index
    %772 = vector.load %arg13[%c0_281, %c0_282, %c32_283] : memref<8x3x64xf32, #tpu.memory_space<vmem>>, vector<1x3x32xf32>
    %773 = vector.shape_cast %772 : vector<1x3x32xf32> to vector<3x32xf32>
    %774 = vector.shape_cast %771 : vector<3x32xf32> to vector<1x3x32xf32>
    tpu.vector_store %arg13[%c0_281, %c0_282, %c32_283], %774 {strides = array<i32>} : memref<8x3x64xf32, #tpu.memory_space<vmem>>, vector<1x3x32xf32>,
    %c0_284 = arith.constant 0 : index
    %c0_285 = arith.constant 0 : index
    %c0_286 = arith.constant 0 : index
    %775 = vector.load %arg14[%c0_284, %c0_285, %c0_286] : memref<2x3x32xf32, #tpu.memory_space<vmem>>, vector<1x3x32xf32>
    %776 = vector.shape_cast %775 : vector<1x3x32xf32> to vector<3x32xf32>
    %777 = vector.shape_cast %725 : vector<3x32xf32> to vector<1x3x32xf32>
    tpu.vector_store %arg14[%c0_284, %c0_285, %c0_286], %777 {strides = array<i32>} : memref<2x3x32xf32, #tpu.memory_space<vmem>>, vector<1x3x32xf32>,
    %c1_287 = arith.constant 1 : index
    %c0_288 = arith.constant 0 : index
    %c0_289 = arith.constant 0 : index
    %778 = vector.load %arg14[%c1_287, %c0_288, %c0_289] : memref<2x3x32xf32, #tpu.memory_space<vmem>>, vector<1x3x32xf32>
    %779 = vector.shape_cast %778 : vector<1x3x32xf32> to vector<3x32xf32>
    %780 = vector.shape_cast %764 : vector<3x32xf32> to vector<1x3x32xf32>
    tpu.vector_store %arg14[%c1_287, %c0_288, %c0_289], %780 {strides = array<i32>} : memref<2x3x32xf32, #tpu.memory_space<vmem>>, vector<1x3x32xf32>,
    return
  }
}

</mosaic_0001>

<llo_original>
// kernel: encoder_forward.2
$region0: #{encoder_forward.2}
  #allocation0 [shape = 'u32[]', space=smem, size = 0x4, offset = 0x4, fixed_abs, tag = 'smem constant byte address 0x4 - core index']
  #allocation1 [shape = 'u32[144,128]{1,0:T(1,128)}', space=vmem, size = 0x12000, scoped, tag = 'internal scratch']
  %s0 = inlined_call_operand.vmem [shape: s32[3,1], index: 0, kind: input, shape index: {}]
  %s1 = inlined_call_operand.vmem [shape: f32[8,3,32], index: 1, kind: input, shape index: {}]
  %s2 = inlined_call_operand.vmem [shape: f32[8,3,32], index: 2, kind: input, shape index: {}]
  %s3 = inlined_call_operand.vmem [shape: f32[8,3,32], index: 3, kind: input, shape index: {}]
  %s4 = inlined_call_operand.vmem [shape: f32[8,3,32], index: 4, kind: input, shape index: {}]
  %s5 = inlined_call_operand.vmem [shape: f32[8,3,32], index: 5, kind: input, shape index: {}]
  %s6 = inlined_call_operand.vmem [shape: f32[8,3,32], index: 6, kind: input, shape index: {}]
  %s7 = inlined_call_operand.vmem [shape: f32[32,96], index: 7, kind: input, shape index: {}]
  %s8 = inlined_call_operand.vmem [shape: f32[32,96], index: 8, kind: input, shape index: {}]
  %s9 = inlined_call_operand.vmem [shape: f32[1,32], index: 9, kind: input, shape index: {}]
  %s10 = inlined_call_operand.vmem [shape: f32[1,32], index: 10, kind: input, shape index: {}]
  %s11 = inlined_call_operand.vmem [shape: f32[3,32], index: 11, kind: input, shape index: {}]
  %s12 = inlined_call_operand.vmem [shape: f32[3,32], index: 12, kind: input, shape index: {}]
  %s13 = inlined_call_operand.vmem [shape: f32[8,3,64], index: 13, kind: output, shape index: {0}]
  %s14 = inlined_call_operand.vmem [shape: f32[2,3,32], index: 14, kind: output, shape index: {1}]
  %15 = xla_tuple %s13, %s14
  %s16 = sld [smem:[#allocation0]]
  $region70: #{encoder_forward.2} parent=0
    _
  %s18 = ssub.s32 1, %s16
  %s19 = scalar_select 0, %s18, %s16
  // Predicated region
  $region2: #{encoder_forward.2} parent=0 // pred_check
    _
  $region3: #{encoder_forward.2} parent=0 // pred_check_branch
    %21 = sbr.rel (0) target = $region5
  $region4: #{encoder_forward.2} parent=0 // pred_region
    _
  $region5: #{encoder_forward.2} parent=0 // pred_fallthru
    _
  // Predicated region
  $region6: #{encoder_forward.2} parent=0 // pred_check
    _
  $region7: #{encoder_forward.2} parent=0 // pred_check_branch
    %23 = sbr.rel (0) target = $region9
  $region8: #{encoder_forward.2} parent=0 // pred_region
    _
  $region9: #{encoder_forward.2} parent=0 // pred_fallthru
    _
  // Predicated region
  $region10: #{encoder_forward.2} parent=0 // pred_check
    _
  $region11: #{encoder_forward.2} parent=0 // pred_check_branch
    %25 = sbr.rel (0) target = $region13
  $region12: #{encoder_forward.2} parent=0 // pred_region
    _
  $region13: #{encoder_forward.2} parent=0 // pred_fallthru
    _
  // Predicated region
  $region14: #{encoder_forward.2} parent=0 // pred_check
    _
  $region15: #{encoder_forward.2} parent=0 // pred_check_branch
    %27 = sbr.rel (0) target = $region17
  $region16: #{encoder_forward.2} parent=0 // pred_region
    _
  $region17: #{encoder_forward.2} parent=0 // pred_fallthru
    _
  // Predicated region
  $region18: #{encoder_forward.2} parent=0 // pred_check
    _
  $region19: #{encoder_forward.2} parent=0 // pred_check_branch
    %29 = sbr.rel (0) target = $region21
  $region20: #{encoder_forward.2} parent=0 // pred_region
    _
  $region21: #{encoder_forward.2} parent=0 // pred_fallthru
    _
  // Predicated region
  $region22: #{encoder_forward.2} parent=0 // pred_check
    _
  $region23: #{encoder_forward.2} parent=0 // pred_check_branch
    %31 = sbr.rel (0) target = $region25
  $region24: #{encoder_forward.2} parent=0 // pred_region
    _
  $region25: #{encoder_forward.2} parent=0 // pred_fallthru
    _
  // Predicated region
  $region26: #{encoder_forward.2} parent=0 // pred_check
    _
  $region27: #{encoder_forward.2} parent=0 // pred_check_branch
    %33 = sbr.rel (0) target = $region29
  $region28: #{encoder_forward.2} parent=0 // pred_region
    _
  $region29: #{encoder_forward.2} parent=0 // pred_fallthru
    _
  // Predicated region
  $region30: #{encoder_forward.2} parent=0 // pred_check
    _
  $region31: #{encoder_forward.2} parent=0 // pred_check_branch
    %35 = sbr.rel (0) target = $region33
  $region32: #{encoder_forward.2} parent=0 // pred_region
    _
  $region33: #{encoder_forward.2} parent=0 // pred_fallthru
    _
  // Predicated region
  $region34: #{encoder_forward.2} parent=0 // pred_check
    _
  $region35: #{encoder_forward.2} parent=0 // pred_check_branch
    %37 = sbr.rel (0) target = $region37
  $region36: #{encoder_forward.2} parent=0 // pred_region
    _
  $region37: #{encoder_forward.2} parent=0 // pred_fallthru
    _
  // Predicated region
  $region38: #{encoder_forward.2} parent=0 // pred_check
    _
  $region39: #{encoder_forward.2} parent=0 // pred_check_branch
    %39 = sbr.rel (0) target = $region41
  $region40: #{encoder_forward.2} parent=0 // pred_region
    _
  $region41: #{encoder_forward.2} parent=0 // pred_fallthru
    _
  // Predicated region
  $region42: #{encoder_forward.2} parent=0 // pred_check
    _
  $region43: #{encoder_forward.2} parent=0 // pred_check_branch
    %41 = sbr.rel (0) target = $region45
  $region44: #{encoder_forward.2} parent=0 // pred_region
    _
  $region45: #{encoder_forward.2} parent=0 // pred_fallthru
    _
  // Predicated region
  $region46: #{encoder_forward.2} parent=0 // pred_check
    _
  $region47: #{encoder_forward.2} parent=0 // pred_check_branch
    %43 = sbr.rel (0) target = $region49
  $region48: #{encoder_forward.2} parent=0 // pred_region
    _
  $region49: #{encoder_forward.2} parent=0 // pred_fallthru
    _
  // Predicated region
  $region50: #{encoder_forward.2} parent=0 // pred_check
    _
  $region51: #{encoder_forward.2} parent=0 // pred_check_branch
    %45 = sbr.rel (0) target = $region53
  $region52: #{encoder_forward.2} parent=0 // pred_region
    _
  $region53: #{encoder_forward.2} parent=0 // pred_fallthru
    _
  %v46 = vld [vmem:[%s0] sm:$0x7]
  %v47 = vld [vmem:[%s7] sm:$0xff]
  %v48 = vld [vmem:[%s7 + $0x8] sm:$0xff]
  %v49 = vld [vmem:[%s7 + $0x10] sm:$0xff]
  %v50 = vld [vmem:[%s7 + $0x18] sm:$0xff]
  %v51 = vld [vmem:[%s8] sm:$0xff]
  %v52 = vld [vmem:[%s8 + $0x8] sm:$0xff]
  %v53 = vld [vmem:[%s8 + $0x10] sm:$0xff]
  %v54 = vld [vmem:[%s8 + $0x18] sm:$0xff]
  %v55 = vld [vmem:[%s9] sm:$0x1]
  %v56 = vld [vmem:[%s10] sm:$0x1]
  %v57 = vld [vmem:[%s11] sm:$0x7]
  %v58 = vld [vmem:[%s12] sm:$0x7]
  %vm59 = vcmp.gt.s32.totalorder %v46, 0
  %v60 = vsel %vm59, 1, 0
  %v61 = vcvt.s32.f32 %v60
  %vm62 = vcmp.gt.s32.totalorder %v46, 7
  %v63 = vsel %vm62, 1, 0
  %v64 = vcvt.s32.f32 %v63
  %v65 = vld [vmem:[%s1] sm:$0x7]
  %v66 = vld [vmem:[%s2] sm:$0x7]
  %v67 = vld [vmem:[%s3] sm:$0x7]
  %vm68 = vcmask 261120
  %v70 = vsel %vm68, %v57, 0
  %72 = vmatprep.subr.mxu0 0.0
  %73 = vmatpush1.msra.mxu0 %v47
  %74 = vmatprep.subr.mxu0 0.0
  %75 = vmatpush1.msra.mxu0 %v48
  %76 = vmatprep.subr.mxu0 0.0
  %77 = vmatpush1.msra.mxu0 %v49
  %78 = vmatprep.subr.mxu0 0.0
  %79 = vmatpush1.msra.mxu0 %v50
  %80 = vmatprep.subr.mxu0 0.0
  %81 = vmatpush1.msra.mxu0 0.0
  %82 = vmatprep.subr.mxu0 0.0
  %83 = vmatpush1.msra.mxu0 0.0
  %84 = vmatprep.subr.mxu0 0.0
  %85 = vmatpush1.msra.mxu0 0.0
  %86 = vmatprep.subr.mxu0 0.0
  %87 = vmatpush1.msra.mxu0 0.0
  %88 = vmatprep.subr.mxu0 0.0
  %89 = vmatpush1.msra.mxu0 0.0
  %90 = vmatprep.subr.mxu0 0.0
  %91 = vmatpush1.msra.mxu0 0.0
  %92 = vmatprep.subr.mxu0 0.0
  %93 = vmatpush1.msra.mxu0 0.0
  %94 = vmatprep.subr.mxu0 0.0
  %95 = vmatpush1.msra.mxu0 0.0
  %96 = vmatprep.subr.mxu0 0.0
  %97 = vmatpush1.msra.mxu0 0.0
  %98 = vmatprep.subr.mxu0 0.0
  %99 = vmatpush1.msra.mxu0 0.0
  %100 = vmatprep.subr.mxu0 0.0
  %101 = vmatpush1.msra.mxu0 0.0
  %102 = vmatprep.subr.mxu0 0.0
  %103 = vmatpush1.msra.mxu0 0.0
  %104 = vmatprep.subr.mxu0 0.0
  %105 = vmatpush1.msra.mxu0 0.0
  %106 = vmatprep.subr.mxu0 0.0
  %107 = vmatpush1.msra.mxu0 0.0
  %108 = vmatprep.subr.mxu0 0.0
  %109 = vmatpush1.msra.mxu0 0.0
  %110 = vmatprep.subr.mxu0 0.0
  %111 = vmatpush1.msra.mxu0 0.0
  %112 = vmatprep.subr.mxu0 0.0
  %113 = vmatpush1.msra.mxu0 0.0
  %114 = vmatprep.subr.mxu0 0.0
  %115 = vmatpush1.msra.mxu0 0.0
  %116 = vmatprep.subr.mxu0 0.0
  %117 = vmatpush1.msra.mxu0 0.0
  %118 = vmatprep.subr.mxu0 0.0
  %119 = vmatpush1.msra.mxu0 0.0
  %120 = vmatprep.subr.mxu0 0.0
  %121 = vmatpush1.msra.mxu0 0.0
  %122 = vmatprep.subr.mxu0 0.0
  %123 = vmatpush1.msra.mxu0 0.0
  %124 = vmatprep.subr.mxu0 0.0
  %125 = vmatpush1.msra.mxu0 0.0
  %126 = vmatprep.subr.mxu0 0.0
  %127 = vmatpush1.msra.mxu0 0.0
  %128 = vmatprep.subr.mxu0 0.0
  %129 = vmatpush1.msra.mxu0 0.0
  %130 = vmatprep.subr.mxu0 0.0
  %131 = vmatpush1.msra.mxu0 0.0
  %132 = vmatprep.subr.mxu0 0.0
  %133 = vmatpush1.msra.mxu0 0.0
  %134 = vmatprep.subr.mxu0 0.0
  %135 = vmatpush1.msra.mxu0 0.0
  %136 = vmatprep.mubr.f32.mxu0 0.0
  %137 = vmatmul.mubr.f32.gmra.mrb[0].mxu0 %v70
  %v138 = vpop.f32.mrb[0].mxu0
  %v139 = vadd.f32 0.0, %v138
  %v140 = vpop.f32.mrb[0].mxu0
  %141 = vdwg.mxu0
  %v142 = vadd.f32 %v65, %v139
  %v143 = vxor.u32 %v142, 2147483648
  %v144 = vmul.f32 %v143, 1.442695
  %v145 = vpow.pop %v144
  %v146 = vadd.f32 %v145, 1.0
  %v147 = vrcp.pop %v146
  %v148 = vmul.f32 1.0, %v147
  %150 = vrot.lane.b32.xlu0 %v139, 96
  %v151 = vpop.permute.xlu0 %150
  %v153 = vadd.f32 %v66, %v151
  %v154 = vxor.u32 %v153, 2147483648
  %v155 = vmul.f32 %v154, 1.442695
  %v156 = vpow.pop %v155
  %v157 = vadd.f32 %v156, 1.0
  %v158 = vrcp.pop %v157
  %v159 = vmul.f32 1.0, %v158
  %v161 = vlaneseq
  %v162 = vshrl.u32 %v161, 7
  %v163 = vsub.s32 0, %v162
  %v164 = vrot.slane %v55, %v163
  %165 = vrot.lane.b32.xlu0 %v164, 64
  %v166 = vpop.permute.xlu0 %165
  %v168 = vadd.f32 %v139, %v166
  %170 = vrot.lane.b32.xlu0 %v168, 64
  %v171 = vpop.permute.xlu0 %170
  %v173 = vmul.f32 %v148, %v171
  %v174 = vadd.f32 %v67, %v173
  %v175 = vtanh.pop %v174
  %v176 = vsub.f32 1.0, %v159
  %v177 = vmul.f32 %v176, %v175
  %v178 = vmul.f32 %v159, %v57
  %v179 = vadd.f32 %v177, %v178
  %181 = vset.pattern.permute.xlu0 0
  %182 = vperm.xlu0 %181, %v61
  %v183 = vpop.permute.xlu0 %182
  %v185 = vmul.f32 %v183, %v179
  %v186 = vsub.f32 1.0, %v61
  %188 = vset.pattern.permute.xlu0 0
  %189 = vperm.xlu0 %188, %v186
  %v190 = vpop.permute.xlu0 %189
  %v192 = vmul.f32 %v190, %v57
  %v193 = vadd.f32 %v185, %v192
  %s194 = scalar_lea.vmem %s4, 28
  %v195 = vld [vmem:[%s194] sm:$0x7]
  %s196 = scalar_lea.vmem %s5, 28
  %v197 = vld [vmem:[%s196] sm:$0x7]
  %s198 = scalar_lea.vmem %s6, 28
  %v199 = vld [vmem:[%s198] sm:$0x7]
  %v201 = vsel %vm68, %v58, 0
  %203 = vmatprep.subr.mxu0 0.0
  %204 = vmatpush1.msra.mxu0 %v51
  %205 = vmatprep.subr.mxu0 0.0
  %206 = vmatpush1.msra.mxu0 %v52
  %207 = vmatprep.subr.mxu0 0.0
  %208 = vmatpush1.msra.mxu0 %v53
  %209 = vmatprep.subr.mxu0 0.0
  %210 = vmatpush1.msra.mxu0 %v54
  %211 = vmatprep.subr.mxu0 0.0
  %212 = vmatpush1.msra.mxu0 0.0
  %213 = vmatprep.subr.mxu0 0.0
  %214 = vmatpush1.msra.mxu0 0.0
  %215 = vmatprep.subr.mxu0 0.0
  %216 = vmatpush1.msra.mxu0 0.0
  %217 = vmatprep.subr.mxu0 0.0
  %218 = vmatpush1.msra.mxu0 0.0
  %219 = vmatprep.subr.mxu0 0.0
  %220 = vmatpush1.msra.mxu0 0.0
  %221 = vmatprep.subr.mxu0 0.0
  %222 = vmatpush1.msra.mxu0 0.0
  %223 = vmatprep.subr.mxu0 0.0
  %224 = vmatpush1.msra.mxu0 0.0
  %225 = vmatprep.subr.mxu0 0.0
  %226 = vmatpush1.msra.mxu0 0.0
  %227 = vmatprep.subr.mxu0 0.0
  %228 = vmatpush1.msra.mxu0 0.0
  %229 = vmatprep.subr.mxu0 0.0
  %230 = vmatpush1.msra.mxu0 0.0
  %231 = vmatprep.subr.mxu0 0.0
  %232 = vmatpush1.msra.mxu0 0.0
  %233 = vmatprep.subr.mxu0 0.0
  %234 = vmatpush1.msra.mxu0 0.0
  %235 = vmatprep.subr.mxu0 0.0
  %236 = vmatpush1.msra.mxu0 0.0
  %237 = vmatprep.subr.mxu0 0.0
  %238 = vmatpush1.msra.mxu0 0.0
  %239 = vmatprep.subr.mxu0 0.0
  %240 = vmatpush1.msra.mxu0 0.0
  %241 = vmatprep.subr.mxu0 0.0
  %242 = vmatpush1.msra.mxu0 0.0
  %243 = vmatprep.subr.mxu0 0.0
  %244 = vmatpush1.msra.mxu0 0.0
  %245 = vmatprep.subr.mxu0 0.0
  %246 = vmatpush1.msra.mxu0 0.0
  %247 = vmatprep.subr.mxu0 0.0
  %248 = vmatpush1.msra.mxu0 0.0
  %249 = vmatprep.subr.mxu0 0.0
  %250 = vmatpush1.msra.mxu0 0.0
  %251 = vmatprep.subr.mxu0 0.0
  %252 = vmatpush1.msra.mxu0 0.0
  %253 = vmatprep.subr.mxu0 0.0
  %254 = vmatpush1.msra.mxu0 0.0
  %255 = vmatprep.subr.mxu0 0.0
  %256 = vmatpush1.msra.mxu0 0.0
  %257 = vmatprep.subr.mxu0 0.0
  %258 = vmatpush1.msra.mxu0 0.0
  %259 = vmatprep.subr.mxu0 0.0
  %260 = vmatpush1.msra.mxu0 0.0
  %261 = vmatprep.subr.mxu0 0.0
  %262 = vmatpush1.msra.mxu0 0.0
  %263 = vmatprep.subr.mxu0 0.0
  %264 = vmatpush1.msra.mxu0 0.0
  %265 = vmatprep.subr.mxu0 0.0
  %266 = vmatpush1.msra.mxu0 0.0
  %267 = vmatprep.mubr.f32.mxu0 0.0
  %268 = vmatmul.mubr.f32.gmra.mrb[0].mxu0 %v201
  %v269 = vpop.f32.mrb[0].mxu0
  %v270 = vadd.f32 0.0, %v269
  %v271 = vpop.f32.mrb[0].mxu0
  %272 = vdwg.mxu0
  %v273 = vadd.f32 %v195, %v270
  %v274 = vxor.u32 %v273, 2147483648
  %v275 = vmul.f32 %v274, 1.442695
  %v276 = vpow.pop %v275
  %v277 = vadd.f32 %v276, 1.0
  %v278 = vrcp.pop %v277
  %v279 = vmul.f32 1.0, %v278
  %281 = vrot.lane.b32.xlu0 %v270, 96
  %v282 = vpop.permute.xlu0 %281
  %v284 = vadd.f32 %v197, %v282
  %v285 = vxor.u32 %v284, 2147483648
  %v286 = vmul.f32 %v285, 1.442695
  %v287 = vpow.pop %v286
  %v288 = vadd.f32 %v287, 1.0
  %v289 = vrcp.pop %v288
  %v290 = vmul.f32 1.0, %v289
  %v292 = vlaneseq
  %v293 = vshrl.u32 %v292, 7
  %v294 = vsub.s32 0, %v293
  %v295 = vrot.slane %v56, %v294
  %296 = vrot.lane.b32.xlu0 %v295, 64
  %v297 = vpop.permute.xlu0 %296
  %v299 = vadd.f32 %v270, %v297
  %301 = vrot.lane.b32.xlu0 %v299, 64
  %v302 = vpop.permute.xlu0 %301
  %v304 = vmul.f32 %v279, %v302
  %v305 = vadd.f32 %v199, %v304
  %v306 = vtanh.pop %v305
  %v307 = vsub.f32 1.0, %v290
  %v308 = vmul.f32 %v307, %v306
  %v309 = vmul.f32 %v290, %v58
  %v310 = vadd.f32 %v308, %v309
  %312 = vset.pattern.permute.xlu0 0
  %313 = vperm.xlu0 %312, %v64
  %v314 = vpop.permute.xlu0 %313
  %v316 = vmul.f32 %v314, %v310
  %v317 = vsub.f32 1.0, %v64
  %319 = vset.pattern.permute.xlu0 0
  %320 = vperm.xlu0 %319, %v317
  %v321 = vpop.permute.xlu0 %320
  %v323 = vmul.f32 %v321, %v58
  %v324 = vadd.f32 %v316, %v323
  %v325 = vmul.f32 %v183, %v193
  %vm326 = vcmask 256000
  %327 = vst.msk [vmem:[%s13] sm:$0x7] %vm326, %v325
  %v328 = vmul.f32 %v314, %v324
  %330 = vrot.lane.b32.xlu0 %v328, 32
  %v331 = vpop.permute.xlu0 %330
  %s333 = scalar_lea.vmem %s13, 28
  %vm334 = vcmask 518400
  %335 = vst.msk [vmem:[%s333] sm:$0x7] %vm334, %v331
  %vm336 = vcmp.gt.s32.totalorder %v46, 1
  %v337 = vsel %vm336, 1, 0
  %v338 = vcvt.s32.f32 %v337
  %vm339 = vcmp.gt.s32.totalorder %v46, 6
  %v340 = vsel %vm339, 1, 0
  %v341 = vcvt.s32.f32 %v340
  %s342 = scalar_lea.vmem %s1, 4
  %v343 = vld [vmem:[%s342] sm:$0x7]
  %s344 = scalar_lea.vmem %s2, 4
  %v345 = vld [vmem:[%s344] sm:$0x7]
  %s346 = scalar_lea.vmem %s3, 4
  %v347 = vld [vmem:[%s346] sm:$0x7]
  %v349 = vsel %vm68, %v193, 0
  %351 = vmatprep.subr.mxu0 0.0
  %352 = vmatpush1.msra.mxu0 %v47
  %353 = vmatprep.subr.mxu0 0.0
  %354 = vmatpush1.msra.mxu0 %v48
  %355 = vmatprep.subr.mxu0 0.0
  %356 = vmatpush1.msra.mxu0 %v49
  %357 = vmatprep.subr.mxu0 0.0
  %358 = vmatpush1.msra.mxu0 %v50
  %359 = vmatprep.subr.mxu0 0.0
  %360 = vmatpush1.msra.mxu0 0.0
  %361 = vmatprep.subr.mxu0 0.0
  %362 = vmatpush1.msra.mxu0 0.0
  %363 = vmatprep.subr.mxu0 0.0
  %364 = vmatpush1.msra.mxu0 0.0
  %365 = vmatprep.subr.mxu0 0.0
  %366 = vmatpush1.msra.mxu0 0.0
  %367 = vmatprep.subr.mxu0 0.0
  %368 = vmatpush1.msra.mxu0 0.0
  %369 = vmatprep.subr.mxu0 0.0
  %370 = vmatpush1.msra.mxu0 0.0
  %371 = vmatprep.subr.mxu0 0.0
  %372 = vmatpush1.msra.mxu0 0.0
  %373 = vmatprep.subr.mxu0 0.0
  %374 = vmatpush1.msra.mxu0 0.0
  %375 = vmatprep.subr.mxu0 0.0
  %376 = vmatpush1.msra.mxu0 0.0
  %377 = vmatprep.subr.mxu0 0.0
  %378 = vmatpush1.msra.mxu0 0.0
  %379 = vmatprep.subr.mxu0 0.0
  %380 = vmatpush1.msra.mxu0 0.0
  %381 = vmatprep.subr.mxu0 0.0
  %382 = vmatpush1.msra.mxu0 0.0
  %383 = vmatprep.subr.mxu0 0.0
  %384 = vmatpush1.msra.mxu0 0.0
  %385 = vmatprep.subr.mxu0 0.0
  %386 = vmatpush1.msra.mxu0 0.0
  %387 = vmatprep.subr.mxu0 0.0
  %388 = vmatpush1.msra.mxu0 0.0
  %389 = vmatprep.subr.mxu0 0.0
  %390 = vmatpush1.msra.mxu0 0.0
  %391 = vmatprep.subr.mxu0 0.0
  %392 = vmatpush1.msra.mxu0 0.0
  %393 = vmatprep.subr.mxu0 0.0
  %394 = vmatpush1.msra.mxu0 0.0
  %395 = vmatprep.subr.mxu0 0.0
  %396 = vmatpush1.msra.mxu0 0.0
  %397 = vmatprep.subr.mxu0 0.0
  %398 = vmatpush1.msra.mxu0 0.0
  %399 = vmatprep.subr.mxu0 0.0
  %400 = vmatpush1.msra.mxu0 0.0
  %401 = vmatprep.subr.mxu0 0.0
  %402 = vmatpush1.msra.mxu0 0.0
  %403 = vmatprep.subr.mxu0 0.0
  %404 = vmatpush1.msra.mxu0 0.0
  %405 = vmatprep.subr.mxu0 0.0
  %406 = vmatpush1.msra.mxu0 0.0
  %407 = vmatprep.subr.mxu0 0.0
  %408 = vmatpush1.msra.mxu0 0.0
  %409 = vmatprep.subr.mxu0 0.0
  %410 = vmatpush1.msra.mxu0 0.0
  %411 = vmatprep.subr.mxu0 0.0
  %412 = vmatpush1.msra.mxu0 0.0
  %413 = vmatprep.subr.mxu0 0.0
  %414 = vmatpush1.msra.mxu0 0.0
  %415 = vmatprep.mubr.f32.mxu0 0.0
  %416 = vmatmul.mubr.f32.gmra.mrb[0].mxu0 %v349
  %v417 = vpop.f32.mrb[0].mxu0
  %v418 = vadd.f32 0.0, %v417
  %v419 = vpop.f32.mrb[0].mxu0
  %420 = vdwg.mxu0
  %v421 = vadd.f32 %v343, %v418
  %v422 = vxor.u32 %v421, 2147483648
  %v423 = vmul.f32 %v422, 1.442695
  %v424 = vpow.pop %v423
  %v425 = vadd.f32 %v424, 1.0
  %v426 = vrcp.pop %v425
  %v427 = vmul.f32 1.0, %v426
  %429 = vrot.lane.b32.xlu0 %v418, 96
  %v430 = vpop.permute.xlu0 %429
  %v432 = vadd.f32 %v345, %v430
  %v433 = vxor.u32 %v432, 2147483648
  %v434 = vmul.f32 %v433, 1.442695
  %v435 = vpow.pop %v434
  %v436 = vadd.f32 %v435, 1.0
  %v437 = vrcp.pop %v436
  %v438 = vmul.f32 1.0, %v437
  %v439 = vadd.f32 %v418, %v166
  %441 = vrot.lane.b32.xlu0 %v439, 64
  %v442 = vpop.permute.xlu0 %441
  %v444 = vmul.f32 %v427, %v442
  %v445 = vadd.f32 %v347, %v444
  %v446 = vtanh.pop %v445
  %v447 = vsub.f32 1.0, %v438
  %v448 = vmul.f32 %v447, %v446
  %v449 = vmul.f32 %v438, %v193
  %v450 = vadd.f32 %v448, %v449
  %452 = vset.pattern.permute.xlu0 0
  %453 = vperm.xlu0 %452, %v338
  %v454 = vpop.permute.xlu0 %453
  %v456 = vmul.f32 %v454, %v450
  %v457 = vsub.f32 1.0, %v338
  %459 = vset.pattern.permute.xlu0 0
  %460 = vperm.xlu0 %459, %v457
  %v461 = vpop.permute.xlu0 %460
  %v463 = vmul.f32 %v461, %v193
  %v464 = vadd.f32 %v456, %v463
  %s465 = scalar_lea.vmem %s4, 24
  %v466 = vld [vmem:[%s465] sm:$0x7]
  %s467 = scalar_lea.vmem %s5, 24
  %v468 = vld [vmem:[%s467] sm:$0x7]
  %s469 = scalar_lea.vmem %s6, 24
  %v470 = vld [vmem:[%s469] sm:$0x7]
  %v472 = vsel %vm68, %v324, 0
  %474 = vmatprep.subr.mxu0 0.0
  %475 = vmatpush1.msra.mxu0 %v51
  %476 = vmatprep.subr.mxu0 0.0
  %477 = vmatpush1.msra.mxu0 %v52
  %478 = vmatprep.subr.mxu0 0.0
  %479 = vmatpush1.msra.mxu0 %v53
  %480 = vmatprep.subr.mxu0 0.0
  %481 = vmatpush1.msra.mxu0 %v54
  %482 = vmatprep.subr.mxu0 0.0
  %483 = vmatpush1.msra.mxu0 0.0
  %484 = vmatprep.subr.mxu0 0.0
  %485 = vmatpush1.msra.mxu0 0.0
  %486 = vmatprep.subr.mxu0 0.0
  %487 = vmatpush1.msra.mxu0 0.0
  %488 = vmatprep.subr.mxu0 0.0
  %489 = vmatpush1.msra.mxu0 0.0
  %490 = vmatprep.subr.mxu0 0.0
  %491 = vmatpush1.msra.mxu0 0.0
  %492 = vmatprep.subr.mxu0 0.0
  %493 = vmatpush1.msra.mxu0 0.0
  %494 = vmatprep.subr.mxu0 0.0
  %495 = vmatpush1.msra.mxu0 0.0
  %496 = vmatprep.subr.mxu0 0.0
  %497 = vmatpush1.msra.mxu0 0.0
  %498 = vmatprep.subr.mxu0 0.0
  %499 = vmatpush1.msra.mxu0 0.0
  %500 = vmatprep.subr.mxu0 0.0
  %501 = vmatpush1.msra.mxu0 0.0
  %502 = vmatprep.subr.mxu0 0.0
  %503 = vmatpush1.msra.mxu0 0.0
  %504 = vmatprep.subr.mxu0 0.0
  %505 = vmatpush1.msra.mxu0 0.0
  %506 = vmatprep.subr.mxu0 0.0
  %507 = vmatpush1.msra.mxu0 0.0
  %508 = vmatprep.subr.mxu0 0.0
  %509 = vmatpush1.msra.mxu0 0.0
  %510 = vmatprep.subr.mxu0 0.0
  %511 = vmatpush1.msra.mxu0 0.0
  %512 = vmatprep.subr.mxu0 0.0
  %513 = vmatpush1.msra.mxu0 0.0
  %514 = vmatprep.subr.mxu0 0.0
  %515 = vmatpush1.msra.mxu0 0.0
  %516 = vmatprep.subr.mxu0 0.0
  %517 = vmatpush1.msra.mxu0 0.0
  %518 = vmatprep.subr.mxu0 0.0
  %519 = vmatpush1.msra.mxu0 0.0
  %520 = vmatprep.subr.mxu0 0.0
  %521 = vmatpush1.msra.mxu0 0.0
  %522 = vmatprep.subr.mxu0 0.0
  %523 = vmatpush1.msra.mxu0 0.0
  %524 = vmatprep.subr.mxu0 0.0
  %525 = vmatpush1.msra.mxu0 0.0
  %526 = vmatprep.subr.mxu0 0.0
  %527 = vmatpush1.msra.mxu0 0.0
  %528 = vmatprep.subr.mxu0 0.0
  %529 = vmatpush1.msra.mxu0 0.0
  %530 = vmatprep.subr.mxu0 0.0
  %531 = vmatpush1.msra.mxu0 0.0
  %532 = vmatprep.subr.mxu0 0.0
  %533 = vmatpush1.msra.mxu0 0.0
  %534 = vmatprep.subr.mxu0 0.0
  %535 = vmatpush1.msra.mxu0 0.0
  %536 = vmatprep.subr.mxu0 0.0
  %537 = vmatpush1.msra.mxu0 0.0
  %538 = vmatprep.mubr.f32.mxu0 0.0
  %539 = vmatmul.mubr.f32.gmra.mrb[0].mxu0 %v472
  %v540 = vpop.f32.mrb[0].mxu0
  %v541 = vadd.f32 0.0, %v540
  %v542 = vpop.f32.mrb[0].mxu0
  %543 = vdwg.mxu0
  %v544 = vadd.f32 %v466, %v541
  %v545 = vxor.u32 %v544, 2147483648
  %v546 = vmul.f32 %v545, 1.442695
  %v547 = vpow.pop %v546
  %v548 = vadd.f32 %v547, 1.0
  %v549 = vrcp.pop %v548
  %v550 = vmul.f32 1.0, %v549
  %552 = vrot.lane.b32.xlu0 %v541, 96
  %v553 = vpop.permute.xlu0 %552
  %v555 = vadd.f32 %v468, %v553
  %v556 = vxor.u32 %v555, 2147483648
  %v557 = vmul.f32 %v556, 1.442695
  %v558 = vpow.pop %v557
  %v559 = vadd.f32 %v558, 1.0
  %v560 = vrcp.pop %v559
  %v561 = vmul.f32 1.0, %v560
  %v562 = vadd.f32 %v541, %v297
  %564 = vrot.lane.b32.xlu0 %v562, 64
  %v565 = vpop.permute.xlu0 %564
  %v567 = vmul.f32 %v550, %v565
  %v568 = vadd.f32 %v470, %v567
  %v569 = vtanh.pop %v568
  %v570 = vsub.f32 1.0, %v561
  %v571 = vmul.f32 %v570, %v569
  %v572 = vmul.f32 %v561, %v324
  %v573 = vadd.f32 %v571, %v572
  %575 = vset.pattern.permute.xlu0 0
  %576 = vperm.xlu0 %575, %v341
  %v577 = vpop.permute.xlu0 %576
  %v579 = vmul.f32 %v577, %v573
  %v580 = vsub.f32 1.0, %v341
  %582 = vset.pattern.permute.xlu0 0
  %583 = vperm.xlu0 %582, %v580
  %v584 = vpop.permute.xlu0 %583
  %v586 = vmul.f32 %v584, %v324
  %v587 = vadd.f32 %v579, %v586
  %v588 = vmul.f32 %v454, %v464
  %s589 = scalar_lea.vmem %s13, 4
  %590 = vst.msk [vmem:[%s589] sm:$0x7] %vm326, %v588
  %v591 = vmul.f32 %v577, %v587
  %593 = vrot.lane.b32.xlu0 %v591, 32
  %v594 = vpop.permute.xlu0 %593
  %s596 = scalar_lea.vmem %s13, 24
  %597 = vst.msk [vmem:[%s596] sm:$0x7] %vm334, %v594
  %vm598 = vcmp.gt.s32.totalorder %v46, 2
  %v599 = vsel %vm598, 1, 0
  %v600 = vcvt.s32.f32 %v599
  %vm601 = vcmp.gt.s32.totalorder %v46, 5
  %v602 = vsel %vm601, 1, 0
  %v603 = vcvt.s32.f32 %v602
  %s604 = scalar_lea.vmem %s1, 8
  %v605 = vld [vmem:[%s604] sm:$0x7]
  %s606 = scalar_lea.vmem %s2, 8
  %v607 = vld [vmem:[%s606] sm:$0x7]
  %s608 = scalar_lea.vmem %s3, 8
  %v609 = vld [vmem:[%s608] sm:$0x7]
  %v611 = vsel %vm68, %v464, 0
  %613 = vmatprep.subr.mxu0 0.0
  %614 = vmatpush1.msra.mxu0 %v47
  %615 = vmatprep.subr.mxu0 0.0
  %616 = vmatpush1.msra.mxu0 %v48
  %617 = vmatprep.subr.mxu0 0.0
  %618 = vmatpush1.msra.mxu0 %v49
  %619 = vmatprep.subr.mxu0 0.0
  %620 = vmatpush1.msra.mxu0 %v50
  %621 = vmatprep.subr.mxu0 0.0
  %622 = vmatpush1.msra.mxu0 0.0
  %623 = vmatprep.subr.mxu0 0.0
  %624 = vmatpush1.msra.mxu0 0.0
  %625 = vmatprep.subr.mxu0 0.0
  %626 = vmatpush1.msra.mxu0 0.0
  %627 = vmatprep.subr.mxu0 0.0
  %628 = vmatpush1.msra.mxu0 0.0
  %629 = vmatprep.subr.mxu0 0.0
  %630 = vmatpush1.msra.mxu0 0.0
  %631 = vmatprep.subr.mxu0 0.0
  %632 = vmatpush1.msra.mxu0 0.0
  %633 = vmatprep.subr.mxu0 0.0
  %634 = vmatpush1.msra.mxu0 0.0
  %635 = vmatprep.subr.mxu0 0.0
  %636 = vmatpush1.msra.mxu0 0.0
  %637 = vmatprep.subr.mxu0 0.0
  %638 = vmatpush1.msra.mxu0 0.0
  %639 = vmatprep.subr.mxu0 0.0
  %640 = vmatpush1.msra.mxu0 0.0
  %641 = vmatprep.subr.mxu0 0.0
  %642 = vmatpush1.msra.mxu0 0.0
  %643 = vmatprep.subr.mxu0 0.0
  %644 = vmatpush1.msra.mxu0 0.0
  %645 = vmatprep.subr.mxu0 0.0
  %646 = vmatpush1.msra.mxu0 0.0
  %647 = vmatprep.subr.mxu0 0.0
  %648 = vmatpush1.msra.mxu0 0.0
  %649 = vmatprep.subr.mxu0 0.0
  %650 = vmatpush1.msra.mxu0 0.0
  %651 = vmatprep.subr.mxu0 0.0
  %652 = vmatpush1.msra.mxu0 0.0
  %653 = vmatprep.subr.mxu0 0.0
  %654 = vmatpush1.msra.mxu0 0.0
  %655 = vmatprep.subr.mxu0 0.0
  %656 = vmatpush1.msra.mxu0 0.0
  %657 = vmatprep.subr.mxu0 0.0
  %658 = vmatpush1.msra.mxu0 0.0
  %659 = vmatprep.subr.mxu0 0.0
  %660 = vmatpush1.msra.mxu0 0.0
  %661 = vmatprep.subr.mxu0 0.0
  %662 = vmatpush1.msra.mxu0 0.0
  %663 = vmatprep.subr.mxu0 0.0
  %664 = vmatpush1.msra.mxu0 0.0
  %665 = vmatprep.subr.mxu0 0.0
  %666 = vmatpush1.msra.mxu0 0.0
  %667 = vmatprep.subr.mxu0 0.0
  %668 = vmatpush1.msra.mxu0 0.0
  %669 = vmatprep.subr.mxu0 0.0
  %670 = vmatpush1.msra.mxu0 0.0
  %671 = vmatprep.subr.mxu0 0.0
  %672 = vmatpush1.msra.mxu0 0.0
  %673 = vmatprep.subr.mxu0 0.0
  %674 = vmatpush1.msra.mxu0 0.0
  %675 = vmatprep.subr.mxu0 0.0
  %676 = vmatpush1.msra.mxu0 0.0
  %677 = vmatprep.mubr.f32.mxu0 0.0
  %678 = vmatmul.mubr.f32.gmra.mrb[0].mxu0 %v611
  %v679 = vpop.f32.mrb[0].mxu0
  %v680 = vadd.f32 0.0, %v679
  %v681 = vpop.f32.mrb[0].mxu0
  %682 = vdwg.mxu0
  %v683 = vadd.f32 %v605, %v680
  %v684 = vxor.u32 %v683, 2147483648
  %v685 = vmul.f32 %v684, 1.442695
  %v686 = vpow.pop %v685
  %v687 = vadd.f32 %v686, 1.0
  %v688 = vrcp.pop %v687
  %v689 = vmul.f32 1.0, %v688
  %691 = vrot.lane.b32.xlu0 %v680, 96
  %v692 = vpop.permute.xlu0 %691
  %v694 = vadd.f32 %v607, %v692
  %v695 = vxor.u32 %v694, 2147483648
  %v696 = vmul.f32 %v695, 1.442695
  %v697 = vpow.pop %v696
  %v698 = vadd.f32 %v697, 1.0
  %v699 = vrcp.pop %v698
  %v700 = vmul.f32 1.0, %v699
  %v701 = vadd.f32 %v680, %v166
  %703 = vrot.lane.b32.xlu0 %v701, 64
  %v704 = vpop.permute.xlu0 %703
  %v706 = vmul.f32 %v689, %v704
  %v707 = vadd.f32 %v609, %v706
  %v708 = vtanh.pop %v707
  %v709 = vsub.f32 1.0, %v700
  %v710 = vmul.f32 %v709, %v708
  %v711 = vmul.f32 %v700, %v464
  %v712 = vadd.f32 %v710, %v711
  %714 = vset.pattern.permute.xlu0 0
  %715 = vperm.xlu0 %714, %v600
  %v716 = vpop.permute.xlu0 %715
  %v718 = vmul.f32 %v716, %v712
  %v719 = vsub.f32 1.0, %v600
  %721 = vset.pattern.permute.xlu0 0
  %722 = vperm.xlu0 %721, %v719
  %v723 = vpop.permute.xlu0 %722
  %v725 = vmul.f32 %v723, %v464
  %v726 = vadd.f32 %v718, %v725
  %s727 = scalar_lea.vmem %s4, 20
  %v728 = vld [vmem:[%s727] sm:$0x7]
  %s729 = scalar_lea.vmem %s5, 20
  %v730 = vld [vmem:[%s729] sm:$0x7]
  %s731 = scalar_lea.vmem %s6, 20
  %v732 = vld [vmem:[%s731] sm:$0x7]
  %v734 = vsel %vm68, %v587, 0
  %736 = vmatprep.subr.mxu0 0.0
  %737 = vmatpush1.msra.mxu0 %v51
  %738 = vmatprep.subr.mxu0 0.0
  %739 = vmatpush1.msra.mxu0 %v52
  %740 = vmatprep.subr.mxu0 0.0
  %741 = vmatpush1.msra.mxu0 %v53
  %742 = vmatprep.subr.mxu0 0.0
  %743 = vmatpush1.msra.mxu0 %v54
  %744 = vmatprep.subr.mxu0 0.0
  %745 = vmatpush1.msra.mxu0 0.0
  %746 = vmatprep.subr.mxu0 0.0
  %747 = vmatpush1.msra.mxu0 0.0
  %748 = vmatprep.subr.mxu0 0.0
  %749 = vmatpush1.msra.mxu0 0.0
  %750 = vmatprep.subr.mxu0 0.0
  %751 = vmatpush1.msra.mxu0 0.0
  %752 = vmatprep.subr.mxu0 0.0
  %753 = vmatpush1.msra.mxu0 0.0
  %754 = vmatprep.subr.mxu0 0.0
  %755 = vmatpush1.msra.mxu0 0.0
  %756 = vmatprep.subr.mxu0 0.0
  %757 = vmatpush1.msra.mxu0 0.0
  %758 = vmatprep.subr.mxu0 0.0
  %759 = vmatpush1.msra.mxu0 0.0
  %760 = vmatprep.subr.mxu0 0.0
  %761 = vmatpush1.msra.mxu0 0.0
  %762 = vmatprep.subr.mxu0 0.0
  %763 = vmatpush1.msra.mxu0 0.0
  %764 = vmatprep.subr.mxu0 0.0
  %765 = vmatpush1.msra.mxu0 0.0
  %766 = vmatprep.subr.mxu0 0.0
  %767 = vmatpush1.msra.mxu0 0.0
  %768 = vmatprep.subr.mxu0 0.0
  %769 = vmatpush1.msra.mxu0 0.0
  %770 = vmatprep.subr.mxu0 0.0
  %771 = vmatpush1.msra.mxu0 0.0
  %772 = vmatprep.subr.mxu0 0.0
  %773 = vmatpush1.msra.mxu0 0.0
  %774 = vmatprep.subr.mxu0 0.0
  %775 = vmatpush1.msra.mxu0 0.0
  %776 = vmatprep.subr.mxu0 0.0
  %777 = vmatpush1.msra.mxu0 0.0
  %778 = vmatprep.subr.mxu0 0.0
  %779 = vmatpush1.msra.mxu0 0.0
  %780 = vmatprep.subr.mxu0 0.0
  %781 = vmatpush1.msra.mxu0 0.0
  %782 = vmatprep.subr.mxu0 0.0
  %783 = vmatpush1.msra.mxu0 0.0
  %784 = vmatprep.subr.mxu0 0.0
  %785 = vmatpush1.msra.mxu0 0.0
  %786 = vmatprep.subr.mxu0 0.0
  %787 = vmatpush1.msra.mxu0 0.0
  %788 = vmatprep.subr.mxu0 0.0
  %789 = vmatpush1.msra.mxu0 0.0
  %790 = vmatprep.subr.mxu0 0.0
  %791 = vmatpush1.msra.mxu0 0.0
  %792 = vmatprep.subr.mxu0 0.0
  %793 = vmatpush1.msra.mxu0 0.0
  %794 = vmatprep.subr.mxu0 0.0
  %795 = vmatpush1.msra.mxu0 0.0
  %796 = vmatprep.subr.mxu0 0.0
  %797 = vmatpush1.msra.mxu0 0.0
  %798 = vmatprep.subr.mxu0 0.0
  %799 = vmatpush1.msra.mxu0 0.0
  %800 = vmatprep.mubr.f32.mxu0 0.0
  %801 = vmatmul.mubr.f32.gmra.mrb[0].mxu0 %v734
  %v802 = vpop.f32.mrb[0].mxu0
  %v803 = vadd.f32 0.0, %v802
  %v804 = vpop.f32.mrb[0].mxu0
  %805 = vdwg.mxu0
  %v806 = vadd.f32 %v728, %v803
  %v807 = vxor.u32 %v806, 2147483648
  %v808 = vmul.f32 %v807, 1.442695
  %v809 = vpow.pop %v808
  %v810 = vadd.f32 %v809, 1.0
  %v811 = vrcp.pop %v810
  %v812 = vmul.f32 1.0, %v811
  %814 = vrot.lane.b32.xlu0 %v803, 96
  %v815 = vpop.permute.xlu0 %814
  %v817 = vadd.f32 %v730, %v815
  %v818 = vxor.u32 %v817, 2147483648
  %v819 = vmul.f32 %v818, 1.442695
  %v820 = vpow.pop %v819
  %v821 = vadd.f32 %v820, 1.0
  %v822 = vrcp.pop %v821
  %v823 = vmul.f32 1.0, %v822
  %v824 = vadd.f32 %v803, %v297
  %826 = vrot.lane.b32.xlu0 %v824, 64
  %v827 = vpop.permute.xlu0 %826
  %v829 = vmul.f32 %v812, %v827
  %v830 = vadd.f32 %v732, %v829
  %v831 = vtanh.pop %v830
  %v832 = vsub.f32 1.0, %v823
  %v833 = vmul.f32 %v832, %v831
  %v834 = vmul.f32 %v823, %v587
  %v835 = vadd.f32 %v833, %v834
  %837 = vset.pattern.permute.xlu0 0
  %838 = vperm.xlu0 %837, %v603
  %v839 = vpop.permute.xlu0 %838
  %v841 = vmul.f32 %v839, %v835
  %v842 = vsub.f32 1.0, %v603
  %844 = vset.pattern.permute.xlu0 0
  %845 = vperm.xlu0 %844, %v842
  %v846 = vpop.permute.xlu0 %845
  %v848 = vmul.f32 %v846, %v587
  %v849 = vadd.f32 %v841, %v848
  %v850 = vmul.f32 %v716, %v726
  %s851 = scalar_lea.vmem %s13, 8
  %852 = vst.msk [vmem:[%s851] sm:$0x7] %vm326, %v850
  %v853 = vmul.f32 %v839, %v849
  %855 = vrot.lane.b32.xlu0 %v853, 32
  %v856 = vpop.permute.xlu0 %855
  %s858 = scalar_lea.vmem %s13, 20
  %859 = vst.msk [vmem:[%s858] sm:$0x7] %vm334, %v856
  %vm860 = vcmp.gt.s32.totalorder %v46, 3
  %v861 = vsel %vm860, 1, 0
  %v862 = vcvt.s32.f32 %v861
  %vm863 = vcmp.gt.s32.totalorder %v46, 4
  %v864 = vsel %vm863, 1, 0
  %v865 = vcvt.s32.f32 %v864
  %s866 = scalar_lea.vmem %s1, 12
  %v867 = vld [vmem:[%s866] sm:$0x7]
  %s868 = scalar_lea.vmem %s2, 12
  %v869 = vld [vmem:[%s868] sm:$0x7]
  %s870 = scalar_lea.vmem %s3, 12
  %v871 = vld [vmem:[%s870] sm:$0x7]
  %v873 = vsel %vm68, %v726, 0
  %875 = vmatprep.subr.mxu0 0.0
  %876 = vmatpush1.msra.mxu0 %v47
  %877 = vmatprep.subr.mxu0 0.0
  %878 = vmatpush1.msra.mxu0 %v48
  %879 = vmatprep.subr.mxu0 0.0
  %880 = vmatpush1.msra.mxu0 %v49
  %881 = vmatprep.subr.mxu0 0.0
  %882 = vmatpush1.msra.mxu0 %v50
  %883 = vmatprep.subr.mxu0 0.0
  %884 = vmatpush1.msra.mxu0 0.0
  %885 = vmatprep.subr.mxu0 0.0
  %886 = vmatpush1.msra.mxu0 0.0
  %887 = vmatprep.subr.mxu0 0.0
  %888 = vmatpush1.msra.mxu0 0.0
  %889 = vmatprep.subr.mxu0 0.0
  %890 = vmatpush1.msra.mxu0 0.0
  %891 = vmatprep.subr.mxu0 0.0
  %892 = vmatpush1.msra.mxu0 0.0
  %893 = vmatprep.subr.mxu0 0.0
  %894 = vmatpush1.msra.mxu0 0.0
  %895 = vmatprep.subr.mxu0 0.0
  %896 = vmatpush1.msra.mxu0 0.0
  %897 = vmatprep.subr.mxu0 0.0
  %898 = vmatpush1.msra.mxu0 0.0
  %899 = vmatprep.subr.mxu0 0.0
  %900 = vmatpush1.msra.mxu0 0.0
  %901 = vmatprep.subr.mxu0 0.0
  %902 = vmatpush1.msra.mxu0 0.0
  %903 = vmatprep.subr.mxu0 0.0
  %904 = vmatpush1.msra.mxu0 0.0
  %905 = vmatprep.subr.mxu0 0.0
  %906 = vmatpush1.msra.mxu0 0.0
  %907 = vmatprep.subr.mxu0 0.0
  %908 = vmatpush1.msra.mxu0 0.0
  %909 = vmatprep.subr.mxu0 0.0
  %910 = vmatpush1.msra.mxu0 0.0
  %911 = vmatprep.subr.mxu0 0.0
  %912 = vmatpush1.msra.mxu0 0.0
  %913 = vmatprep.subr.mxu0 0.0
  %914 = vmatpush1.msra.mxu0 0.0
  %915 = vmatprep.subr.mxu0 0.0
  %916 = vmatpush1.msra.mxu0 0.0
  %917 = vmatprep.subr.mxu0 0.0
  %918 = vmatpush1.msra.mxu0 0.0
  %919 = vmatprep.subr.mxu0 0.0
  %920 = vmatpush1.msra.mxu0 0.0
  %921 = vmatprep.subr.mxu0 0.0
  %922 = vmatpush1.msra.mxu0 0.0
  %923 = vmatprep.subr.mxu0 0.0
  %924 = vmatpush1.msra.mxu0 0.0
  %925 = vmatprep.subr.mxu0 0.0
  %926 = vmatpush1.msra.mxu0 0.0
  %927 = vmatprep.subr.mxu0 0.0
  %928 = vmatpush1.msra.mxu0 0.0
  %929 = vmatprep.subr.mxu0 0.0
  %930 = vmatpush1.msra.mxu0 0.0
  %931 = vmatprep.subr.mxu0 0.0
  %932 = vmatpush1.msra.mxu0 0.0
  %933 = vmatprep.subr.mxu0 0.0
  %934 = vmatpush1.msra.mxu0 0.0
  %935 = vmatprep.subr.mxu0 0.0
  %936 = vmatpush1.msra.mxu0 0.0
  %937 = vmatprep.subr.mxu0 0.0
  %938 = vmatpush1.msra.mxu0 0.0
  %939 = vmatprep.mubr.f32.mxu0 0.0
  %940 = vmatmul.mubr.f32.gmra.mrb[0].mxu0 %v873
  %v941 = vpop.f32.mrb[0].mxu0
  %v942 = vadd.f32 0.0, %v941
  %v943 = vpop.f32.mrb[0].mxu0
  %944 = vdwg.mxu0
  %v945 = vadd.f32 %v867, %v942
  %v946 = vxor.u32 %v945, 2147483648
  %v947 = vmul.f32 %v946, 1.442695
  %v948 = vpow.pop %v947
  %v949 = vadd.f32 %v948, 1.0
  %v950 = vrcp.pop %v949
  %v951 = vmul.f32 1.0, %v950
  %953 = vrot.lane.b32.xlu0 %v942, 96
  %v954 = vpop.permute.xlu0 %953
  %v956 = vadd.f32 %v869, %v954
  %v957 = vxor.u32 %v956, 2147483648
  %v958 = vmul.f32 %v957, 1.442695
  %v959 = vpow.pop %v958
  %v960 = vadd.f32 %v959, 1.0
  %v961 = vrcp.pop %v960
  %v962 = vmul.f32 1.0, %v961
  %v963 = vadd.f32 %v942, %v166
  %965 = vrot.lane.b32.xlu0 %v963, 64
  %v966 = vpop.permute.xlu0 %965
  %v968 = vmul.f32 %v951, %v966
  %v969 = vadd.f32 %v871, %v968
  %v970 = vtanh.pop %v969
  %v971 = vsub.f32 1.0, %v962
  %v972 = vmul.f32 %v971, %v970
  %v973 = vmul.f32 %v962, %v726
  %v974 = vadd.f32 %v972, %v973
  %976 = vset.pattern.permute.xlu0 0
  %977 = vperm.xlu0 %976, %v862
  %v978 = vpop.permute.xlu0 %977
  %v980 = vmul.f32 %v978, %v974
  %v981 = vsub.f32 1.0, %v862
  %983 = vset.pattern.permute.xlu0 0
  %984 = vperm.xlu0 %983, %v981
  %v985 = vpop.permute.xlu0 %984
  %v987 = vmul.f32 %v985, %v726
  %v988 = vadd.f32 %v980, %v987
  %s989 = scalar_lea.vmem %s4, 16
  %v990 = vld [vmem:[%s989] sm:$0x7]
  %s991 = scalar_lea.vmem %s5, 16
  %v992 = vld [vmem:[%s991] sm:$0x7]
  %s993 = scalar_lea.vmem %s6, 16
  %v994 = vld [vmem:[%s993] sm:$0x7]
  %v996 = vsel %vm68, %v849, 0
  %998 = vmatprep.subr.mxu0 0.0
  %999 = vmatpush1.msra.mxu0 %v51
  %1000 = vmatprep.subr.mxu0 0.0
  %1001 = vmatpush1.msra.mxu0 %v52
  %1002 = vmatprep.subr.mxu0 0.0
  %1003 = vmatpush1.msra.mxu0 %v53
  %1004 = vmatprep.subr.mxu0 0.0
  %1005 = vmatpush1.msra.mxu0 %v54
  %1006 = vmatprep.subr.mxu0 0.0
  %1007 = vmatpush1.msra.mxu0 0.0
  %1008 = vmatprep.subr.mxu0 0.0
  %1009 = vmatpush1.msra.mxu0 0.0
  %1010 = vmatprep.subr.mxu0 0.0
  %1011 = vmatpush1.msra.mxu0 0.0
  %1012 = vmatprep.subr.mxu0 0.0
  %1013 = vmatpush1.msra.mxu0 0.0
  %1014 = vmatprep.subr.mxu0 0.0
  %1015 = vmatpush1.msra.mxu0 0.0
  %1016 = vmatprep.subr.mxu0 0.0
  %1017 = vmatpush1.msra.mxu0 0.0
  %1018 = vmatprep.subr.mxu0 0.0
  %1019 = vmatpush1.msra.mxu0 0.0
  %1020 = vmatprep.subr.mxu0 0.0
  %1021 = vmatpush1.msra.mxu0 0.0
  %1022 = vmatprep.subr.mxu0 0.0
  %1023 = vmatpush1.msra.mxu0 0.0
  %1024 = vmatprep.subr.mxu0 0.0
  %1025 = vmatpush1.msra.mxu0 0.0
  %1026 = vmatprep.subr.mxu0 0.0
  %1027 = vmatpush1.msra.mxu0 0.0
  %1028 = vmatprep.subr.mxu0 0.0
  %1029 = vmatpush1.msra.mxu0 0.0
  %1030 = vmatprep.subr.mxu0 0.0
  %1031 = vmatpush1.msra.mxu0 0.0
  %1032 = vmatprep.subr.mxu0 0.0
  %1033 = vmatpush1.msra.mxu0 0.0
  %1034 = vmatprep.subr.mxu0 0.0
  %1035 = vmatpush1.msra.mxu0 0.0
  %1036 = vmatprep.subr.mxu0 0.0
  %1037 = vmatpush1.msra.mxu0 0.0
  %1038 = vmatprep.subr.mxu0 0.0
  %1039 = vmatpush1.msra.mxu0 0.0
  %1040 = vmatprep.subr.mxu0 0.0
  %1041 = vmatpush1.msra.mxu0 0.0
  %1042 = vmatprep.subr.mxu0 0.0
  %1043 = vmatpush1.msra.mxu0 0.0
  %1044 = vmatprep.subr.mxu0 0.0
  %1045 = vmatpush1.msra.mxu0 0.0
  %1046 = vmatprep.subr.mxu0 0.0
  %1047 = vmatpush1.msra.mxu0 0.0
  %1048 = vmatprep.subr.mxu0 0.0
  %1049 = vmatpush1.msra.mxu0 0.0
  %1050 = vmatprep.subr.mxu0 0.0
  %1051 = vmatpush1.msra.mxu0 0.0
  %1052 = vmatprep.subr.mxu0 0.0
  %1053 = vmatpush1.msra.mxu0 0.0
  %1054 = vmatprep.subr.mxu0 0.0
  %1055 = vmatpush1.msra.mxu0 0.0
  %1056 = vmatprep.subr.mxu0 0.0
  %1057 = vmatpush1.msra.mxu0 0.0
  %1058 = vmatprep.subr.mxu0 0.0
  %1059 = vmatpush1.msra.mxu0 0.0
  %1060 = vmatprep.subr.mxu0 0.0
  %1061 = vmatpush1.msra.mxu0 0.0
  %1062 = vmatprep.mubr.f32.mxu0 0.0
  %1063 = vmatmul.mubr.f32.gmra.mrb[0].mxu0 %v996
  %v1064 = vpop.f32.mrb[0].mxu0
  %v1065 = vadd.f32 0.0, %v1064
  %v1066 = vpop.f32.mrb[0].mxu0
  %1067 = vdwg.mxu0
  %v1068 = vadd.f32 %v990, %v1065
  %v1069 = vxor.u32 %v1068, 2147483648
  %v1070 = vmul.f32 %v1069, 1.442695
  %v1071 = vpow.pop %v1070
  %v1072 = vadd.f32 %v1071, 1.0
  %v1073 = vrcp.pop %v1072
  %v1074 = vmul.f32 1.0, %v1073
  %1076 = vrot.lane.b32.xlu0 %v1065, 96
  %v1077 = vpop.permute.xlu0 %1076
  %v1079 = vadd.f32 %v992, %v1077
  %v1080 = vxor.u32 %v1079, 2147483648
  %v1081 = vmul.f32 %v1080, 1.442695
  %v1082 = vpow.pop %v1081
  %v1083 = vadd.f32 %v1082, 1.0
  %v1084 = vrcp.pop %v1083
  %v1085 = vmul.f32 1.0, %v1084
  %v1086 = vadd.f32 %v1065, %v297
  %1088 = vrot.lane.b32.xlu0 %v1086, 64
  %v1089 = vpop.permute.xlu0 %1088
  %v1091 = vmul.f32 %v1074, %v1089
  %v1092 = vadd.f32 %v994, %v1091
  %v1093 = vtanh.pop %v1092
  %v1094 = vsub.f32 1.0, %v1085
  %v1095 = vmul.f32 %v1094, %v1093
  %v1096 = vmul.f32 %v1085, %v849
  %v1097 = vadd.f32 %v1095, %v1096
  %1099 = vset.pattern.permute.xlu0 0
  %1100 = vperm.xlu0 %1099, %v865
  %v1101 = vpop.permute.xlu0 %1100
  %v1103 = vmul.f32 %v1101, %v1097
  %v1104 = vsub.f32 1.0, %v865
  %1106 = vset.pattern.permute.xlu0 0
  %1107 = vperm.xlu0 %1106, %v1104
  %v1108 = vpop.permute.xlu0 %1107
  %v1110 = vmul.f32 %v1108, %v849
  %v1111 = vadd.f32 %v1103, %v1110
  %v1112 = vmul.f32 %v978, %v988
  %s1113 = scalar_lea.vmem %s13, 12
  %1114 = vst.msk [vmem:[%s1113] sm:$0x7] %vm326, %v1112
  %v1115 = vmul.f32 %v1101, %v1111
  %1117 = vrot.lane.b32.xlu0 %v1115, 32
  %v1118 = vpop.permute.xlu0 %1117
  %s1120 = scalar_lea.vmem %s13, 16
  %1121 = vst.msk [vmem:[%s1120] sm:$0x7] %vm334, %v1118
  %s1122 = scalar_lea.vmem %s1, 16
  %v1123 = vld [vmem:[%s1122] sm:$0x7]
  %s1124 = scalar_lea.vmem %s2, 16
  %v1125 = vld [vmem:[%s1124] sm:$0x7]
  %s1126 = scalar_lea.vmem %s3, 16
  %v1127 = vld [vmem:[%s1126] sm:$0x7]
  %v1129 = vsel %vm68, %v988, 0
  %1131 = vmatprep.subr.mxu0 0.0
  %1132 = vmatpush1.msra.mxu0 %v47
  %1133 = vmatprep.subr.mxu0 0.0
  %1134 = vmatpush1.msra.mxu0 %v48
  %1135 = vmatprep.subr.mxu0 0.0
  %1136 = vmatpush1.msra.mxu0 %v49
  %1137 = vmatprep.subr.mxu0 0.0
  %1138 = vmatpush1.msra.mxu0 %v50
  %1139 = vmatprep.subr.mxu0 0.0
  %1140 = vmatpush1.msra.mxu0 0.0
  %1141 = vmatprep.subr.mxu0 0.0
  %1142 = vmatpush1.msra.mxu0 0.0
  %1143 = vmatprep.subr.mxu0 0.0
  %1144 = vmatpush1.msra.mxu0 0.0
  %1145 = vmatprep.subr.mxu0 0.0
  %1146 = vmatpush1.msra.mxu0 0.0
  %1147 = vmatprep.subr.mxu0 0.0
  %1148 = vmatpush1.msra.mxu0 0.0
  %1149 = vmatprep.subr.mxu0 0.0
  %1150 = vmatpush1.msra.mxu0 0.0
  %1151 = vmatprep.subr.mxu0 0.0
  %1152 = vmatpush1.msra.mxu0 0.0
  %1153 = vmatprep.subr.mxu0 0.0
  %1154 = vmatpush1.msra.mxu0 0.0
  %1155 = vmatprep.subr.mxu0 0.0
  %1156 = vmatpush1.msra.mxu0 0.0
  %1157 = vmatprep.subr.mxu0 0.0
  %1158 = vmatpush1.msra.mxu0 0.0
  %1159 = vmatprep.subr.mxu0 0.0
  %1160 = vmatpush1.msra.mxu0 0.0
  %1161 = vmatprep.subr.mxu0 0.0
  %1162 = vmatpush1.msra.mxu0 0.0
  %1163 = vmatprep.subr.mxu0 0.0
  %1164 = vmatpush1.msra.mxu0 0.0
  %1165 = vmatprep.subr.mxu0 0.0
  %1166 = vmatpush1.msra.mxu0 0.0
  %1167 = vmatprep.subr.mxu0 0.0
  %1168 = vmatpush1.msra.mxu0 0.0
  %1169 = vmatprep.subr.mxu0 0.0
  %1170 = vmatpush1.msra.mxu0 0.0
  %1171 = vmatprep.subr.mxu0 0.0
  %1172 = vmatpush1.msra.mxu0 0.0
  %1173 = vmatprep.subr.mxu0 0.0
  %1174 = vmatpush1.msra.mxu0 0.0
  %1175 = vmatprep.subr.mxu0 0.0
  %1176 = vmatpush1.msra.mxu0 0.0
  %1177 = vmatprep.subr.mxu0 0.0
  %1178 = vmatpush1.msra.mxu0 0.0
  %1179 = vmatprep.subr.mxu0 0.0
  %1180 = vmatpush1.msra.mxu0 0.0
  %1181 = vmatprep.subr.mxu0 0.0
  %1182 = vmatpush1.msra.mxu0 0.0
  %1183 = vmatprep.subr.mxu0 0.0
  %1184 = vmatpush1.msra.mxu0 0.0
  %1185 = vmatprep.subr.mxu0 0.0
  %1186 = vmatpush1.msra.mxu0 0.0
  %1187 = vmatprep.subr.mxu0 0.0
  %1188 = vmatpush1.msra.mxu0 0.0
  %1189 = vmatprep.subr.mxu0 0.0
  %1190 = vmatpush1.msra.mxu0 0.0
  %1191 = vmatprep.subr.mxu0 0.0
  %1192 = vmatpush1.msra.mxu0 0.0
  %1193 = vmatprep.subr.mxu0 0.0
  %1194 = vmatpush1.msra.mxu0 0.0
  %1195 = vmatprep.mubr.f32.mxu0 0.0
  %1196 = vmatmul.mubr.f32.gmra.mrb[0].mxu0 %v1129
  %v1197 = vpop.f32.mrb[0].mxu0
  %v1198 = vadd.f32 0.0, %v1197
  %v1199 = vpop.f32.mrb[0].mxu0
  %1200 = vdwg.mxu0
  %v1201 = vadd.f32 %v1123, %v1198
  %v1202 = vxor.u32 %v1201, 2147483648
  %v1203 = vmul.f32 %v1202, 1.442695
  %v1204 = vpow.pop %v1203
  %v1205 = vadd.f32 %v1204, 1.0
  %v1206 = vrcp.pop %v1205
  %v1207 = vmul.f32 1.0, %v1206
  %1209 = vrot.lane.b32.xlu0 %v1198, 96
  %v1210 = vpop.permute.xlu0 %1209
  %v1212 = vadd.f32 %v1125, %v1210
  %v1213 = vxor.u32 %v1212, 2147483648
  %v1214 = vmul.f32 %v1213, 1.442695
  %v1215 = vpow.pop %v1214
  %v1216 = vadd.f32 %v1215, 1.0
  %v1217 = vrcp.pop %v1216
  %v1218 = vmul.f32 1.0, %v1217
  %v1219 = vadd.f32 %v1198, %v166
  %1221 = vrot.lane.b32.xlu0 %v1219, 64
  %v1222 = vpop.permute.xlu0 %1221
  %v1224 = vmul.f32 %v1207, %v1222
  %v1225 = vadd.f32 %v1127, %v1224
  %v1226 = vtanh.pop %v1225
  %v1227 = vsub.f32 1.0, %v1218
  %v1228 = vmul.f32 %v1227, %v1226
  %v1229 = vmul.f32 %v1218, %v988
  %v1230 = vadd.f32 %v1228, %v1229
  %v1231 = vmul.f32 %v1101, %v1230
  %v1232 = vmul.f32 %v1108, %v988
  %v1233 = vadd.f32 %v1231, %v1232
  %s1234 = scalar_lea.vmem %s4, 12
  %v1235 = vld [vmem:[%s1234] sm:$0x7]
  %s1236 = scalar_lea.vmem %s5, 12
  %v1237 = vld [vmem:[%s1236] sm:$0x7]
  %s1238 = scalar_lea.vmem %s6, 12
  %v1239 = vld [vmem:[%s1238] sm:$0x7]
  %v1241 = vsel %vm68, %v1111, 0
  %1243 = vmatprep.subr.mxu0 0.0
  %1244 = vmatpush1.msra.mxu0 %v51
  %1245 = vmatprep.subr.mxu0 0.0
  %1246 = vmatpush1.msra.mxu0 %v52
  %1247 = vmatprep.subr.mxu0 0.0
  %1248 = vmatpush1.msra.mxu0 %v53
  %1249 = vmatprep.subr.mxu0 0.0
  %1250 = vmatpush1.msra.mxu0 %v54
  %1251 = vmatprep.subr.mxu0 0.0
  %1252 = vmatpush1.msra.mxu0 0.0
  %1253 = vmatprep.subr.mxu0 0.0
  %1254 = vmatpush1.msra.mxu0 0.0
  %1255 = vmatprep.subr.mxu0 0.0
  %1256 = vmatpush1.msra.mxu0 0.0
  %1257 = vmatprep.subr.mxu0 0.0
  %1258 = vmatpush1.msra.mxu0 0.0
  %1259 = vmatprep.subr.mxu0 0.0
  %1260 = vmatpush1.msra.mxu0 0.0
  %1261 = vmatprep.subr.mxu0 0.0
  %1262 = vmatpush1.msra.mxu0 0.0
  %1263 = vmatprep.subr.mxu0 0.0
  %1264 = vmatpush1.msra.mxu0 0.0
  %1265 = vmatprep.subr.mxu0 0.0
  %1266 = vmatpush1.msra.mxu0 0.0
  %1267 = vmatprep.subr.mxu0 0.0
  %1268 = vmatpush1.msra.mxu0 0.0
  %1269 = vmatprep.subr.mxu0 0.0
  %1270 = vmatpush1.msra.mxu0 0.0
  %1271 = vmatprep.subr.mxu0 0.0
  %1272 = vmatpush1.msra.mxu0 0.0
  %1273 = vmatprep.subr.mxu0 0.0
  %1274 = vmatpush1.msra.mxu0 0.0
  %1275 = vmatprep.subr.mxu0 0.0
  %1276 = vmatpush1.msra.mxu0 0.0
  %1277 = vmatprep.subr.mxu0 0.0
  %1278 = vmatpush1.msra.mxu0 0.0
  %1279 = vmatprep.subr.mxu0 0.0
  %1280 = vmatpush1.msra.mxu0 0.0
  %1281 = vmatprep.subr.mxu0 0.0
  %1282 = vmatpush1.msra.mxu0 0.0
  %1283 = vmatprep.subr.mxu0 0.0
  %1284 = vmatpush1.msra.mxu0 0.0
  %1285 = vmatprep.subr.mxu0 0.0
  %1286 = vmatpush1.msra.mxu0 0.0
  %1287 = vmatprep.subr.mxu0 0.0
  %1288 = vmatpush1.msra.mxu0 0.0
  %1289 = vmatprep.subr.mxu0 0.0
  %1290 = vmatpush1.msra.mxu0 0.0
  %1291 = vmatprep.subr.mxu0 0.0
  %1292 = vmatpush1.msra.mxu0 0.0
  %1293 = vmatprep.subr.mxu0 0.0
  %1294 = vmatpush1.msra.mxu0 0.0
  %1295 = vmatprep.subr.mxu0 0.0
  %1296 = vmatpush1.msra.mxu0 0.0
  %1297 = vmatprep.subr.mxu0 0.0
  %1298 = vmatpush1.msra.mxu0 0.0
  %1299 = vmatprep.subr.mxu0 0.0
  %1300 = vmatpush1.msra.mxu0 0.0
  %1301 = vmatprep.subr.mxu0 0.0
  %1302 = vmatpush1.msra.mxu0 0.0
  %1303 = vmatprep.subr.mxu0 0.0
  %1304 = vmatpush1.msra.mxu0 0.0
  %1305 = vmatprep.subr.mxu0 0.0
  %1306 = vmatpush1.msra.mxu0 0.0
  %1307 = vmatprep.mubr.f32.mxu0 0.0
  %1308 = vmatmul.mubr.f32.gmra.mrb[0].mxu0 %v1241
  %v1309 = vpop.f32.mrb[0].mxu0
  %v1310 = vadd.f32 0.0, %v1309
  %v1311 = vpop.f32.mrb[0].mxu0
  %1312 = vdwg.mxu0
  %v1313 = vadd.f32 %v1235, %v1310
  %v1314 = vxor.u32 %v1313, 2147483648
  %v1315 = vmul.f32 %v1314, 1.442695
  %v1316 = vpow.pop %v1315
  %v1317 = vadd.f32 %v1316, 1.0
  %v1318 = vrcp.pop %v1317
  %v1319 = vmul.f32 1.0, %v1318
  %1321 = vrot.lane.b32.xlu0 %v1310, 96
  %v1322 = vpop.permute.xlu0 %1321
  %v1324 = vadd.f32 %v1237, %v1322
  %v1325 = vxor.u32 %v1324, 2147483648
  %v1326 = vmul.f32 %v1325, 1.442695
  %v1327 = vpow.pop %v1326
  %v1328 = vadd.f32 %v1327, 1.0
  %v1329 = vrcp.pop %v1328
  %v1330 = vmul.f32 1.0, %v1329
  %v1331 = vadd.f32 %v1310, %v297
  %1333 = vrot.lane.b32.xlu0 %v1331, 64
  %v1334 = vpop.permute.xlu0 %1333
  %v1336 = vmul.f32 %v1319, %v1334
  %v1337 = vadd.f32 %v1239, %v1336
  %v1338 = vtanh.pop %v1337
  %v1339 = vsub.f32 1.0, %v1330
  %v1340 = vmul.f32 %v1339, %v1338
  %v1341 = vmul.f32 %v1330, %v1111
  %v1342 = vadd.f32 %v1340, %v1341
  %v1343 = vmul.f32 %v978, %v1342
  %v1344 = vmul.f32 %v985, %v1111
  %v1345 = vadd.f32 %v1343, %v1344
  %v1346 = vmul.f32 %v1101, %v1233
  %1347 = vst.msk [vmem:[%s1120] sm:$0x7] %vm326, %v1346
  %v1348 = vmul.f32 %v978, %v1345
  %1350 = vrot.lane.b32.xlu0 %v1348, 32
  %v1351 = vpop.permute.xlu0 %1350
  %1353 = vst.msk [vmem:[%s1113] sm:$0x7] %vm334, %v1351
  %s1354 = scalar_lea.vmem %s1, 20
  %v1355 = vld [vmem:[%s1354] sm:$0x7]
  %s1356 = scalar_lea.vmem %s2, 20
  %v1357 = vld [vmem:[%s1356] sm:$0x7]
  %s1358 = scalar_lea.vmem %s3, 20
  %v1359 = vld [vmem:[%s1358] sm:$0x7]
  %v1361 = vsel %vm68, %v1233, 0
  %1363 = vmatprep.subr.mxu0 0.0
  %1364 = vmatpush1.msra.mxu0 %v47
  %1365 = vmatprep.subr.mxu0 0.0
  %1366 = vmatpush1.msra.mxu0 %v48
  %1367 = vmatprep.subr.mxu0 0.0
  %1368 = vmatpush1.msra.mxu0 %v49
  %1369 = vmatprep.subr.mxu0 0.0
  %1370 = vmatpush1.msra.mxu0 %v50
  %1371 = vmatprep.subr.mxu0 0.0
  %1372 = vmatpush1.msra.mxu0 0.0
  %1373 = vmatprep.subr.mxu0 0.0
  %1374 = vmatpush1.msra.mxu0 0.0
  %1375 = vmatprep.subr.mxu0 0.0
  %1376 = vmatpush1.msra.mxu0 0.0
  %1377 = vmatprep.subr.mxu0 0.0
  %1378 = vmatpush1.msra.mxu0 0.0
  %1379 = vmatprep.subr.mxu0 0.0
  %1380 = vmatpush1.msra.mxu0 0.0
  %1381 = vmatprep.subr.mxu0 0.0
  %1382 = vmatpush1.msra.mxu0 0.0
  %1383 = vmatprep.subr.mxu0 0.0
  %1384 = vmatpush1.msra.mxu0 0.0
  %1385 = vmatprep.subr.mxu0 0.0
  %1386 = vmatpush1.msra.mxu0 0.0
  %1387 = vmatprep.subr.mxu0 0.0
  %1388 = vmatpush1.msra.mxu0 0.0
  %1389 = vmatprep.subr.mxu0 0.0
  %1390 = vmatpush1.msra.mxu0 0.0
  %1391 = vmatprep.subr.mxu0 0.0
  %1392 = vmatpush1.msra.mxu0 0.0
  %1393 = vmatprep.subr.mxu0 0.0
  %1394 = vmatpush1.msra.mxu0 0.0
  %1395 = vmatprep.subr.mxu0 0.0
  %1396 = vmatpush1.msra.mxu0 0.0
  %1397 = vmatprep.subr.mxu0 0.0
  %1398 = vmatpush1.msra.mxu0 0.0
  %1399 = vmatprep.subr.mxu0 0.0
  %1400 = vmatpush1.msra.mxu0 0.0
  %1401 = vmatprep.subr.mxu0 0.0
  %1402 = vmatpush1.msra.mxu0 0.0
  %1403 = vmatprep.subr.mxu0 0.0
  %1404 = vmatpush1.msra.mxu0 0.0
  %1405 = vmatprep.subr.mxu0 0.0
  %1406 = vmatpush1.msra.mxu0 0.0
  %1407 = vmatprep.subr.mxu0 0.0
  %1408 = vmatpush1.msra.mxu0 0.0
  %1409 = vmatprep.subr.mxu0 0.0
  %1410 = vmatpush1.msra.mxu0 0.0
  %1411 = vmatprep.subr.mxu0 0.0
  %1412 = vmatpush1.msra.mxu0 0.0
  %1413 = vmatprep.subr.mxu0 0.0
  %1414 = vmatpush1.msra.mxu0 0.0
  %1415 = vmatprep.subr.mxu0 0.0
  %1416 = vmatpush1.msra.mxu0 0.0
  %1417 = vmatprep.subr.mxu0 0.0
  %1418 = vmatpush1.msra.mxu0 0.0
  %1419 = vmatprep.subr.mxu0 0.0
  %1420 = vmatpush1.msra.mxu0 0.0
  %1421 = vmatprep.subr.mxu0 0.0
  %1422 = vmatpush1.msra.mxu0 0.0
  %1423 = vmatprep.subr.mxu0 0.0
  %1424 = vmatpush1.msra.mxu0 0.0
  %1425 = vmatprep.subr.mxu0 0.0
  %1426 = vmatpush1.msra.mxu0 0.0
  %1427 = vmatprep.mubr.f32.mxu0 0.0
  %1428 = vmatmul.mubr.f32.gmra.mrb[0].mxu0 %v1361
  %v1429 = vpop.f32.mrb[0].mxu0
  %v1430 = vadd.f32 0.0, %v1429
  %v1431 = vpop.f32.mrb[0].mxu0
  %1432 = vdwg.mxu0
  %v1433 = vadd.f32 %v1355, %v1430
  %v1434 = vxor.u32 %v1433, 2147483648
  %v1435 = vmul.f32 %v1434, 1.442695
  %v1436 = vpow.pop %v1435
  %v1437 = vadd.f32 %v1436, 1.0
  %v1438 = vrcp.pop %v1437
  %v1439 = vmul.f32 1.0, %v1438
  %1441 = vrot.lane.b32.xlu0 %v1430, 96
  %v1442 = vpop.permute.xlu0 %1441
  %v1444 = vadd.f32 %v1357, %v1442
  %v1445 = vxor.u32 %v1444, 2147483648
  %v1446 = vmul.f32 %v1445, 1.442695
  %v1447 = vpow.pop %v1446
  %v1448 = vadd.f32 %v1447, 1.0
  %v1449 = vrcp.pop %v1448
  %v1450 = vmul.f32 1.0, %v1449
  %v1451 = vadd.f32 %v1430, %v166
  %1453 = vrot.lane.b32.xlu0 %v1451, 64
  %v1454 = vpop.permute.xlu0 %1453
  %v1456 = vmul.f32 %v1439, %v1454
  %v1457 = vadd.f32 %v1359, %v1456
  %v1458 = vtanh.pop %v1457
  %v1459 = vsub.f32 1.0, %v1450
  %v1460 = vmul.f32 %v1459, %v1458
  %v1461 = vmul.f32 %v1450, %v1233
  %v1462 = vadd.f32 %v1460, %v1461
  %v1463 = vmul.f32 %v839, %v1462
  %v1464 = vmul.f32 %v846, %v1233
  %v1465 = vadd.f32 %v1463, %v1464
  %s1466 = scalar_lea.vmem %s4, 8
  %v1467 = vld [vmem:[%s1466] sm:$0x7]
  %s1468 = scalar_lea.vmem %s5, 8
  %v1469 = vld [vmem:[%s1468] sm:$0x7]
  %s1470 = scalar_lea.vmem %s6, 8
  %v1471 = vld [vmem:[%s1470] sm:$0x7]
  %v1473 = vsel %vm68, %v1345, 0
  %1475 = vmatprep.subr.mxu0 0.0
  %1476 = vmatpush1.msra.mxu0 %v51
  %1477 = vmatprep.subr.mxu0 0.0
  %1478 = vmatpush1.msra.mxu0 %v52
  %1479 = vmatprep.subr.mxu0 0.0
  %1480 = vmatpush1.msra.mxu0 %v53
  %1481 = vmatprep.subr.mxu0 0.0
  %1482 = vmatpush1.msra.mxu0 %v54
  %1483 = vmatprep.subr.mxu0 0.0
  %1484 = vmatpush1.msra.mxu0 0.0
  %1485 = vmatprep.subr.mxu0 0.0
  %1486 = vmatpush1.msra.mxu0 0.0
  %1487 = vmatprep.subr.mxu0 0.0
  %1488 = vmatpush1.msra.mxu0 0.0
  %1489 = vmatprep.subr.mxu0 0.0
  %1490 = vmatpush1.msra.mxu0 0.0
  %1491 = vmatprep.subr.mxu0 0.0
  %1492 = vmatpush1.msra.mxu0 0.0
  %1493 = vmatprep.subr.mxu0 0.0
  %1494 = vmatpush1.msra.mxu0 0.0
  %1495 = vmatprep.subr.mxu0 0.0
  %1496 = vmatpush1.msra.mxu0 0.0
  %1497 = vmatprep.subr.mxu0 0.0
  %1498 = vmatpush1.msra.mxu0 0.0
  %1499 = vmatprep.subr.mxu0 0.0
  %1500 = vmatpush1.msra.mxu0 0.0
  %1501 = vmatprep.subr.mxu0 0.0
  %1502 = vmatpush1.msra.mxu0 0.0
  %1503 = vmatprep.subr.mxu0 0.0
  %1504 = vmatpush1.msra.mxu0 0.0
  %1505 = vmatprep.subr.mxu0 0.0
  %1506 = vmatpush1.msra.mxu0 0.0
  %1507 = vmatprep.subr.mxu0 0.0
  %1508 = vmatpush1.msra.mxu0 0.0
  %1509 = vmatprep.subr.mxu0 0.0
  %1510 = vmatpush1.msra.mxu0 0.0
  %1511 = vmatprep.subr.mxu0 0.0
  %1512 = vmatpush1.msra.mxu0 0.0
  %1513 = vmatprep.subr.mxu0 0.0
  %1514 = vmatpush1.msra.mxu0 0.0
  %1515 = vmatprep.subr.mxu0 0.0
  %1516 = vmatpush1.msra.mxu0 0.0
  %1517 = vmatprep.subr.mxu0 0.0
  %1518 = vmatpush1.msra.mxu0 0.0
  %1519 = vmatprep.subr.mxu0 0.0
  %1520 = vmatpush1.msra.mxu0 0.0
  %1521 = vmatprep.subr.mxu0 0.0
  %1522 = vmatpush1.msra.mxu0 0.0
  %1523 = vmatprep.subr.mxu0 0.0
  %1524 = vmatpush1.msra.mxu0 0.0
  %1525 = vmatprep.subr.mxu0 0.0
  %1526 = vmatpush1.msra.mxu0 0.0
  %1527 = vmatprep.subr.mxu0 0.0
  %1528 = vmatpush1.msra.mxu0 0.0
  %1529 = vmatprep.subr.mxu0 0.0
  %1530 = vmatpush1.msra.mxu0 0.0
  %1531 = vmatprep.subr.mxu0 0.0
  %1532 = vmatpush1.msra.mxu0 0.0
  %1533 = vmatprep.subr.mxu0 0.0
  %1534 = vmatpush1.msra.mxu0 0.0
  %1535 = vmatprep.subr.mxu0 0.0
  %1536 = vmatpush1.msra.mxu0 0.0
  %1537 = vmatprep.subr.mxu0 0.0
  %1538 = vmatpush1.msra.mxu0 0.0
  %1539 = vmatprep.mubr.f32.mxu0 0.0
  %1540 = vmatmul.mubr.f32.gmra.mrb[0].mxu0 %v1473
  %v1541 = vpop.f32.mrb[0].mxu0
  %v1542 = vadd.f32 0.0, %v1541
  %v1543 = vpop.f32.mrb[0].mxu0
  %1544 = vdwg.mxu0
  %v1545 = vadd.f32 %v1467, %v1542
  %v1546 = vxor.u32 %v1545, 2147483648
  %v1547 = vmul.f32 %v1546, 1.442695
  %v1548 = vpow.pop %v1547
  %v1549 = vadd.f32 %v1548, 1.0
  %v1550 = vrcp.pop %v1549
  %v1551 = vmul.f32 1.0, %v1550
  %1553 = vrot.lane.b32.xlu0 %v1542, 96
  %v1554 = vpop.permute.xlu0 %1553
  %v1556 = vadd.f32 %v1469, %v1554
  %v1557 = vxor.u32 %v1556, 2147483648
  %v1558 = vmul.f32 %v1557, 1.442695
  %v1559 = vpow.pop %v1558
  %v1560 = vadd.f32 %v1559, 1.0
  %v1561 = vrcp.pop %v1560
  %v1562 = vmul.f32 1.0, %v1561
  %v1563 = vadd.f32 %v1542, %v297
  %1565 = vrot.lane.b32.xlu0 %v1563, 64
  %v1566 = vpop.permute.xlu0 %1565
  %v1568 = vmul.f32 %v1551, %v1566
  %v1569 = vadd.f32 %v1471, %v1568
  %v1570 = vtanh.pop %v1569
  %v1571 = vsub.f32 1.0, %v1562
  %v1572 = vmul.f32 %v1571, %v1570
  %v1573 = vmul.f32 %v1562, %v1345
  %v1574 = vadd.f32 %v1572, %v1573
  %v1575 = vmul.f32 %v716, %v1574
  %v1576 = vmul.f32 %v723, %v1345
  %v1577 = vadd.f32 %v1575, %v1576
  %v1578 = vmul.f32 %v839, %v1465
  %1579 = vst.msk [vmem:[%s858] sm:$0x7] %vm326, %v1578
  %v1580 = vmul.f32 %v716, %v1577
  %1582 = vrot.lane.b32.xlu0 %v1580, 32
  %v1583 = vpop.permute.xlu0 %1582
  %1585 = vst.msk [vmem:[%s851] sm:$0x7] %vm334, %v1583
  %s1586 = scalar_lea.vmem %s1, 24
  %v1587 = vld [vmem:[%s1586] sm:$0x7]
  %s1588 = scalar_lea.vmem %s2, 24
  %v1589 = vld [vmem:[%s1588] sm:$0x7]
  %s1590 = scalar_lea.vmem %s3, 24
  %v1591 = vld [vmem:[%s1590] sm:$0x7]
  %v1593 = vsel %vm68, %v1465, 0
  %1595 = vmatprep.subr.mxu0 0.0
  %1596 = vmatpush1.msra.mxu0 %v47
  %1597 = vmatprep.subr.mxu0 0.0
  %1598 = vmatpush1.msra.mxu0 %v48
  %1599 = vmatprep.subr.mxu0 0.0
  %1600 = vmatpush1.msra.mxu0 %v49
  %1601 = vmatprep.subr.mxu0 0.0
  %1602 = vmatpush1.msra.mxu0 %v50
  %1603 = vmatprep.subr.mxu0 0.0
  %1604 = vmatpush1.msra.mxu0 0.0
  %1605 = vmatprep.subr.mxu0 0.0
  %1606 = vmatpush1.msra.mxu0 0.0
  %1607 = vmatprep.subr.mxu0 0.0
  %1608 = vmatpush1.msra.mxu0 0.0
  %1609 = vmatprep.subr.mxu0 0.0
  %1610 = vmatpush1.msra.mxu0 0.0
  %1611 = vmatprep.subr.mxu0 0.0
  %1612 = vmatpush1.msra.mxu0 0.0
  %1613 = vmatprep.subr.mxu0 0.0
  %1614 = vmatpush1.msra.mxu0 0.0
  %1615 = vmatprep.subr.mxu0 0.0
  %1616 = vmatpush1.msra.mxu0 0.0
  %1617 = vmatprep.subr.mxu0 0.0
  %1618 = vmatpush1.msra.mxu0 0.0
  %1619 = vmatprep.subr.mxu0 0.0
  %1620 = vmatpush1.msra.mxu0 0.0
  %1621 = vmatprep.subr.mxu0 0.0
  %1622 = vmatpush1.msra.mxu0 0.0
  %1623 = vmatprep.subr.mxu0 0.0
  %1624 = vmatpush1.msra.mxu0 0.0
  %1625 = vmatprep.subr.mxu0 0.0
  %1626 = vmatpush1.msra.mxu0 0.0
  %1627 = vmatprep.subr.mxu0 0.0
  %1628 = vmatpush1.msra.mxu0 0.0
  %1629 = vmatprep.subr.mxu0 0.0
  %1630 = vmatpush1.msra.mxu0 0.0
  %1631 = vmatprep.subr.mxu0 0.0
  %1632 = vmatpush1.msra.mxu0 0.0
  %1633 = vmatprep.subr.mxu0 0.0
  %1634 = vmatpush1.msra.mxu0 0.0
  %1635 = vmatprep.subr.mxu0 0.0
  %1636 = vmatpush1.msra.mxu0 0.0
  %1637 = vmatprep.subr.mxu0 0.0
  %1638 = vmatpush1.msra.mxu0 0.0
  %1639 = vmatprep.subr.mxu0 0.0
  %1640 = vmatpush1.msra.mxu0 0.0
  %1641 = vmatprep.subr.mxu0 0.0
  %1642 = vmatpush1.msra.mxu0 0.0
  %1643 = vmatprep.subr.mxu0 0.0
  %1644 = vmatpush1.msra.mxu0 0.0
  %1645 = vmatprep.subr.mxu0 0.0
  %1646 = vmatpush1.msra.mxu0 0.0
  %1647 = vmatprep.subr.mxu0 0.0
  %1648 = vmatpush1.msra.mxu0 0.0
  %1649 = vmatprep.subr.mxu0 0.0
  %1650 = vmatpush1.msra.mxu0 0.0
  %1651 = vmatprep.subr.mxu0 0.0
  %1652 = vmatpush1.msra.mxu0 0.0
  %1653 = vmatprep.subr.mxu0 0.0
  %1654 = vmatpush1.msra.mxu0 0.0
  %1655 = vmatprep.subr.mxu0 0.0
  %1656 = vmatpush1.msra.mxu0 0.0
  %1657 = vmatprep.subr.mxu0 0.0
  %1658 = vmatpush1.msra.mxu0 0.0
  %1659 = vmatprep.mubr.f32.mxu0 0.0
  %1660 = vmatmul.mubr.f32.gmra.mrb[0].mxu0 %v1593
  %v1661 = vpop.f32.mrb[0].mxu0
  %v1662 = vadd.f32 0.0, %v1661
  %v1663 = vpop.f32.mrb[0].mxu0
  %1664 = vdwg.mxu0
  %v1665 = vadd.f32 %v1587, %v1662
  %v1666 = vxor.u32 %v1665, 2147483648
  %v1667 = vmul.f32 %v1666, 1.442695
  %v1668 = vpow.pop %v1667
  %v1669 = vadd.f32 %v1668, 1.0
  %v1670 = vrcp.pop %v1669
  %v1671 = vmul.f32 1.0, %v1670
  %1673 = vrot.lane.b32.xlu0 %v1662, 96
  %v1674 = vpop.permute.xlu0 %1673
  %v1676 = vadd.f32 %v1589, %v1674
  %v1677 = vxor.u32 %v1676, 2147483648
  %v1678 = vmul.f32 %v1677, 1.442695
  %v1679 = vpow.pop %v1678
  %v1680 = vadd.f32 %v1679, 1.0
  %v1681 = vrcp.pop %v1680
  %v1682 = vmul.f32 1.0, %v1681
  %v1683 = vadd.f32 %v1662, %v166
  %1685 = vrot.lane.b32.xlu0 %v1683, 64
  %v1686 = vpop.permute.xlu0 %1685
  %v1688 = vmul.f32 %v1671, %v1686
  %v1689 = vadd.f32 %v1591, %v1688
  %v1690 = vtanh.pop %v1689
  %v1691 = vsub.f32 1.0, %v1682
  %v1692 = vmul.f32 %v1691, %v1690
  %v1693 = vmul.f32 %v1682, %v1465
  %v1694 = vadd.f32 %v1692, %v1693
  %v1695 = vmul.f32 %v577, %v1694
  %v1696 = vmul.f32 %v584, %v1465
  %v1697 = vadd.f32 %v1695, %v1696
  %s1698 = scalar_lea.vmem %s4, 4
  %v1699 = vld [vmem:[%s1698] sm:$0x7]
  %s1700 = scalar_lea.vmem %s5, 4
  %v1701 = vld [vmem:[%s1700] sm:$0x7]
  %s1702 = scalar_lea.vmem %s6, 4
  %v1703 = vld [vmem:[%s1702] sm:$0x7]
  %v1705 = vsel %vm68, %v1577, 0
  %1707 = vmatprep.subr.mxu0 0.0
  %1708 = vmatpush1.msra.mxu0 %v51
  %1709 = vmatprep.subr.mxu0 0.0
  %1710 = vmatpush1.msra.mxu0 %v52
  %1711 = vmatprep.subr.mxu0 0.0
  %1712 = vmatpush1.msra.mxu0 %v53
  %1713 = vmatprep.subr.mxu0 0.0
  %1714 = vmatpush1.msra.mxu0 %v54
  %1715 = vmatprep.subr.mxu0 0.0
  %1716 = vmatpush1.msra.mxu0 0.0
  %1717 = vmatprep.subr.mxu0 0.0
  %1718 = vmatpush1.msra.mxu0 0.0
  %1719 = vmatprep.subr.mxu0 0.0
  %1720 = vmatpush1.msra.mxu0 0.0
  %1721 = vmatprep.subr.mxu0 0.0
  %1722 = vmatpush1.msra.mxu0 0.0
  %1723 = vmatprep.subr.mxu0 0.0
  %1724 = vmatpush1.msra.mxu0 0.0
  %1725 = vmatprep.subr.mxu0 0.0
  %1726 = vmatpush1.msra.mxu0 0.0
  %1727 = vmatprep.subr.mxu0 0.0
  %1728 = vmatpush1.msra.mxu0 0.0
  %1729 = vmatprep.subr.mxu0 0.0
  %1730 = vmatpush1.msra.mxu0 0.0
  %1731 = vmatprep.subr.mxu0 0.0
  %1732 = vmatpush1.msra.mxu0 0.0
  %1733 = vmatprep.subr.mxu0 0.0
  %1734 = vmatpush1.msra.mxu0 0.0
  %1735 = vmatprep.subr.mxu0 0.0
  %1736 = vmatpush1.msra.mxu0 0.0
  %1737 = vmatprep.subr.mxu0 0.0
  %1738 = vmatpush1.msra.mxu0 0.0
  %1739 = vmatprep.subr.mxu0 0.0
  %1740 = vmatpush1.msra.mxu0 0.0
  %1741 = vmatprep.subr.mxu0 0.0
  %1742 = vmatpush1.msra.mxu0 0.0
  %1743 = vmatprep.subr.mxu0 0.0
  %1744 = vmatpush1.msra.mxu0 0.0
  %1745 = vmatprep.subr.mxu0 0.0
  %1746 = vmatpush1.msra.mxu0 0.0
  %1747 = vmatprep.subr.mxu0 0.0
  %1748 = vmatpush1.msra.mxu0 0.0
  %1749 = vmatprep.subr.mxu0 0.0
  %1750 = vmatpush1.msra.mxu0 0.0
  %1751 = vmatprep.subr.mxu0 0.0
  %1752 = vmatpush1.msra.mxu0 0.0
  %1753 = vmatprep.subr.mxu0 0.0
  %1754 = vmatpush1.msra.mxu0 0.0
  %1755 = vmatprep.subr.mxu0 0.0
  %1756 = vmatpush1.msra.mxu0 0.0
  %1757 = vmatprep.subr.mxu0 0.0
  %1758 = vmatpush1.msra.mxu0 0.0
  %1759 = vmatprep.subr.mxu0 0.0
  %1760 = vmatpush1.msra.mxu0 0.0
  %1761 = vmatprep.subr.mxu0 0.0
  %1762 = vmatpush1.msra.mxu0 0.0
  %1763 = vmatprep.subr.mxu0 0.0
  %1764 = vmatpush1.msra.mxu0 0.0
  %1765 = vmatprep.subr.mxu0 0.0
  %1766 = vmatpush1.msra.mxu0 0.0
  %1767 = vmatprep.subr.mxu0 0.0
  %1768 = vmatpush1.msra.mxu0 0.0
  %1769 = vmatprep.subr.mxu0 0.0
  %1770 = vmatpush1.msra.mxu0 0.0
  %1771 = vmatprep.mubr.f32.mxu0 0.0
  %1772 = vmatmul.mubr.f32.gmra.mrb[0].mxu0 %v1705
  %v1773 = vpop.f32.mrb[0].mxu0
  %v1774 = vadd.f32 0.0, %v1773
  %v1775 = vpop.f32.mrb[0].mxu0
  %1776 = vdwg.mxu0
  %v1777 = vadd.f32 %v1699, %v1774
  %v1778 = vxor.u32 %v1777, 2147483648
  %v1779 = vmul.f32 %v1778, 1.442695
  %v1780 = vpow.pop %v1779
  %v1781 = vadd.f32 %v1780, 1.0
  %v1782 = vrcp.pop %v1781
  %v1783 = vmul.f32 1.0, %v1782
  %1785 = vrot.lane.b32.xlu0 %v1774, 96
  %v1786 = vpop.permute.xlu0 %1785
  %v1788 = vadd.f32 %v1701, %v1786
  %v1789 = vxor.u32 %v1788, 2147483648
  %v1790 = vmul.f32 %v1789, 1.442695
  %v1791 = vpow.pop %v1790
  %v1792 = vadd.f32 %v1791, 1.0
  %v1793 = vrcp.pop %v1792
  %v1794 = vmul.f32 1.0, %v1793
  %v1795 = vadd.f32 %v1774, %v297
  %1797 = vrot.lane.b32.xlu0 %v1795, 64
  %v1798 = vpop.permute.xlu0 %1797
  %v1800 = vmul.f32 %v1783, %v1798
  %v1801 = vadd.f32 %v1703, %v1800
  %v1802 = vtanh.pop %v1801
  %v1803 = vsub.f32 1.0, %v1794
  %v1804 = vmul.f32 %v1803, %v1802
  %v1805 = vmul.f32 %v1794, %v1577
  %v1806 = vadd.f32 %v1804, %v1805
  %v1807 = vmul.f32 %v454, %v1806
  %v1808 = vmul.f32 %v461, %v1577
  %v1809 = vadd.f32 %v1807, %v1808
  %v1810 = vmul.f32 %v577, %v1697
  %1811 = vst.msk [vmem:[%s596] sm:$0x7] %vm326, %v1810
  %v1812 = vmul.f32 %v454, %v1809
  %1814 = vrot.lane.b32.xlu0 %v1812, 32
  %v1815 = vpop.permute.xlu0 %1814
  %1817 = vst.msk [vmem:[%s589] sm:$0x7] %vm334, %v1815
  %s1818 = scalar_lea.vmem %s1, 28
  %v1819 = vld [vmem:[%s1818] sm:$0x7]
  %s1820 = scalar_lea.vmem %s2, 28
  %v1821 = vld [vmem:[%s1820] sm:$0x7]
  %s1822 = scalar_lea.vmem %s3, 28
  %v1823 = vld [vmem:[%s1822] sm:$0x7]
  %v1825 = vsel %vm68, %v1697, 0
  %1827 = vmatprep.subr.mxu0 0.0
  %1828 = vmatpush1.msra.mxu0 %v47
  %1829 = vmatprep.subr.mxu0 0.0
  %1830 = vmatpush1.msra.mxu0 %v48
  %1831 = vmatprep.subr.mxu0 0.0
  %1832 = vmatpush1.msra.mxu0 %v49
  %1833 = vmatprep.subr.mxu0 0.0
  %1834 = vmatpush1.msra.mxu0 %v50
  %1835 = vmatprep.subr.mxu0 0.0
  %1836 = vmatpush1.msra.mxu0 0.0
  %1837 = vmatprep.subr.mxu0 0.0
  %1838 = vmatpush1.msra.mxu0 0.0
  %1839 = vmatprep.subr.mxu0 0.0
  %1840 = vmatpush1.msra.mxu0 0.0
  %1841 = vmatprep.subr.mxu0 0.0
  %1842 = vmatpush1.msra.mxu0 0.0
  %1843 = vmatprep.subr.mxu0 0.0
  %1844 = vmatpush1.msra.mxu0 0.0
  %1845 = vmatprep.subr.mxu0 0.0
  %1846 = vmatpush1.msra.mxu0 0.0
  %1847 = vmatprep.subr.mxu0 0.0
  %1848 = vmatpush1.msra.mxu0 0.0
  %1849 = vmatprep.subr.mxu0 0.0
  %1850 = vmatpush1.msra.mxu0 0.0
  %1851 = vmatprep.subr.mxu0 0.0
  %1852 = vmatpush1.msra.mxu0 0.0
  %1853 = vmatprep.subr.mxu0 0.0
  %1854 = vmatpush1.msra.mxu0 0.0
  %1855 = vmatprep.subr.mxu0 0.0
  %1856 = vmatpush1.msra.mxu0 0.0
  %1857 = vmatprep.subr.mxu0 0.0
  %1858 = vmatpush1.msra.mxu0 0.0
  %1859 = vmatprep.subr.mxu0 0.0
  %1860 = vmatpush1.msra.mxu0 0.0
  %1861 = vmatprep.subr.mxu0 0.0
  %1862 = vmatpush1.msra.mxu0 0.0
  %1863 = vmatprep.subr.mxu0 0.0
  %1864 = vmatpush1.msra.mxu0 0.0
  %1865 = vmatprep.subr.mxu0 0.0
  %1866 = vmatpush1.msra.mxu0 0.0
  %1867 = vmatprep.subr.mxu0 0.0
  %1868 = vmatpush1.msra.mxu0 0.0
  %1869 = vmatprep.subr.mxu0 0.0
  %1870 = vmatpush1.msra.mxu0 0.0
  %1871 = vmatprep.subr.mxu0 0.0
  %1872 = vmatpush1.msra.mxu0 0.0
  %1873 = vmatprep.subr.mxu0 0.0
  %1874 = vmatpush1.msra.mxu0 0.0
  %1875 = vmatprep.subr.mxu0 0.0
  %1876 = vmatpush1.msra.mxu0 0.0
  %1877 = vmatprep.subr.mxu0 0.0
  %1878 = vmatpush1.msra.mxu0 0.0
  %1879 = vmatprep.subr.mxu0 0.0
  %1880 = vmatpush1.msra.mxu0 0.0
  %1881 = vmatprep.subr.mxu0 0.0
  %1882 = vmatpush1.msra.mxu0 0.0
  %1883 = vmatprep.subr.mxu0 0.0
  %1884 = vmatpush1.msra.mxu0 0.0
  %1885 = vmatprep.subr.mxu0 0.0
  %1886 = vmatpush1.msra.mxu0 0.0
  %1887 = vmatprep.subr.mxu0 0.0
  %1888 = vmatpush1.msra.mxu0 0.0
  %1889 = vmatprep.subr.mxu0 0.0
  %1890 = vmatpush1.msra.mxu0 0.0
  %1891 = vmatprep.mubr.f32.mxu0 0.0
  %1892 = vmatmul.mubr.f32.gmra.mrb[0].mxu0 %v1825
  %v1893 = vpop.f32.mrb[0].mxu0
  %v1894 = vadd.f32 0.0, %v1893
  %v1895 = vpop.f32.mrb[0].mxu0
  %1896 = vdwg.mxu0
  %v1897 = vadd.f32 %v1819, %v1894
  %v1898 = vxor.u32 %v1897, 2147483648
  %v1899 = vmul.f32 %v1898, 1.442695
  %v1900 = vpow.pop %v1899
  %v1901 = vadd.f32 %v1900, 1.0
  %v1902 = vrcp.pop %v1901
  %v1903 = vmul.f32 1.0, %v1902
  %1905 = vrot.lane.b32.xlu0 %v1894, 96
  %v1906 = vpop.permute.xlu0 %1905
  %v1908 = vadd.f32 %v1821, %v1906
  %v1909 = vxor.u32 %v1908, 2147483648
  %v1910 = vmul.f32 %v1909, 1.442695
  %v1911 = vpow.pop %v1910
  %v1912 = vadd.f32 %v1911, 1.0
  %v1913 = vrcp.pop %v1912
  %v1914 = vmul.f32 1.0, %v1913
  %v1915 = vadd.f32 %v1894, %v166
  %1917 = vrot.lane.b32.xlu0 %v1915, 64
  %v1918 = vpop.permute.xlu0 %1917
  %v1920 = vmul.f32 %v1903, %v1918
  %v1921 = vadd.f32 %v1823, %v1920
  %v1922 = vtanh.pop %v1921
  %v1923 = vsub.f32 1.0, %v1914
  %v1924 = vmul.f32 %v1923, %v1922
  %v1925 = vmul.f32 %v1914, %v1697
  %v1926 = vadd.f32 %v1924, %v1925
  %v1927 = vmul.f32 %v314, %v1926
  %v1928 = vmul.f32 %v321, %v1697
  %v1929 = vadd.f32 %v1927, %v1928
  %v1930 = vld [vmem:[%s4] sm:$0x7]
  %v1931 = vld [vmem:[%s5] sm:$0x7]
  %v1932 = vld [vmem:[%s6] sm:$0x7]
  %v1934 = vsel %vm68, %v1809, 0
  %1936 = vmatprep.subr.mxu0 0.0
  %1937 = vmatpush1.msra.mxu0 %v51
  %1938 = vmatprep.subr.mxu0 0.0
  %1939 = vmatpush1.msra.mxu0 %v52
  %1940 = vmatprep.subr.mxu0 0.0
  %1941 = vmatpush1.msra.mxu0 %v53
  %1942 = vmatprep.subr.mxu0 0.0
  %1943 = vmatpush1.msra.mxu0 %v54
  %1944 = vmatprep.subr.mxu0 0.0
  %1945 = vmatpush1.msra.mxu0 0.0
  %1946 = vmatprep.subr.mxu0 0.0
  %1947 = vmatpush1.msra.mxu0 0.0
  %1948 = vmatprep.subr.mxu0 0.0
  %1949 = vmatpush1.msra.mxu0 0.0
  %1950 = vmatprep.subr.mxu0 0.0
  %1951 = vmatpush1.msra.mxu0 0.0
  %1952 = vmatprep.subr.mxu0 0.0
  %1953 = vmatpush1.msra.mxu0 0.0
  %1954 = vmatprep.subr.mxu0 0.0
  %1955 = vmatpush1.msra.mxu0 0.0
  %1956 = vmatprep.subr.mxu0 0.0
  %1957 = vmatpush1.msra.mxu0 0.0
  %1958 = vmatprep.subr.mxu0 0.0
  %1959 = vmatpush1.msra.mxu0 0.0
  %1960 = vmatprep.subr.mxu0 0.0
  %1961 = vmatpush1.msra.mxu0 0.0
  %1962 = vmatprep.subr.mxu0 0.0
  %1963 = vmatpush1.msra.mxu0 0.0
  %1964 = vmatprep.subr.mxu0 0.0
  %1965 = vmatpush1.msra.mxu0 0.0
  %1966 = vmatprep.subr.mxu0 0.0
  %1967 = vmatpush1.msra.mxu0 0.0
  %1968 = vmatprep.subr.mxu0 0.0
  %1969 = vmatpush1.msra.mxu0 0.0
  %1970 = vmatprep.subr.mxu0 0.0
  %1971 = vmatpush1.msra.mxu0 0.0
  %1972 = vmatprep.subr.mxu0 0.0
  %1973 = vmatpush1.msra.mxu0 0.0
  %1974 = vmatprep.subr.mxu0 0.0
  %1975 = vmatpush1.msra.mxu0 0.0
  %1976 = vmatprep.subr.mxu0 0.0
  %1977 = vmatpush1.msra.mxu0 0.0
  %1978 = vmatprep.subr.mxu0 0.0
  %1979 = vmatpush1.msra.mxu0 0.0
  %1980 = vmatprep.subr.mxu0 0.0
  %1981 = vmatpush1.msra.mxu0 0.0
  %1982 = vmatprep.subr.mxu0 0.0
  %1983 = vmatpush1.msra.mxu0 0.0
  %1984 = vmatprep.subr.mxu0 0.0
  %1985 = vmatpush1.msra.mxu0 0.0
  %1986 = vmatprep.subr.mxu0 0.0
  %1987 = vmatpush1.msra.mxu0 0.0
  %1988 = vmatprep.subr.mxu0 0.0
  %1989 = vmatpush1.msra.mxu0 0.0
  %1990 = vmatprep.subr.mxu0 0.0
  %1991 = vmatpush1.msra.mxu0 0.0
  %1992 = vmatprep.subr.mxu0 0.0
  %1993 = vmatpush1.msra.mxu0 0.0
  %1994 = vmatprep.subr.mxu0 0.0
  %1995 = vmatpush1.msra.mxu0 0.0
  %1996 = vmatprep.subr.mxu0 0.0
  %1997 = vmatpush1.msra.mxu0 0.0
  %1998 = vmatprep.subr.mxu0 0.0
  %1999 = vmatpush1.msra.mxu0 0.0
  %2000 = vmatprep.mubr.f32.mxu0 0.0
  %2001 = vmatmul.mubr.f32.gmra.mrb[0].mxu0 %v1934
  %v2002 = vpop.f32.mrb[0].mxu0
  %v2003 = vadd.f32 0.0, %v2002
  %v2004 = vpop.f32.mrb[0].mxu0
  %2005 = vdwg.mxu0
  %v2006 = vadd.f32 %v1930, %v2003
  %v2007 = vxor.u32 %v2006, 2147483648
  %v2008 = vmul.f32 %v2007, 1.442695
  %v2009 = vpow.pop %v2008
  %v2010 = vadd.f32 %v2009, 1.0
  %v2011 = vrcp.pop %v2010
  %v2012 = vmul.f32 1.0, %v2011
  %2014 = vrot.lane.b32.xlu0 %v2003, 96
  %v2015 = vpop.permute.xlu0 %2014
  %v2017 = vadd.f32 %v1931, %v2015
  %v2018 = vxor.u32 %v2017, 2147483648
  %v2019 = vmul.f32 %v2018, 1.442695
  %v2020 = vpow.pop %v2019
  %v2021 = vadd.f32 %v2020, 1.0
  %v2022 = vrcp.pop %v2021
  %v2023 = vmul.f32 1.0, %v2022
  %v2024 = vadd.f32 %v2003, %v297
  %2026 = vrot.lane.b32.xlu0 %v2024, 64
  %v2027 = vpop.permute.xlu0 %2026
  %v2029 = vmul.f32 %v2012, %v2027
  %v2030 = vadd.f32 %v1932, %v2029
  %v2031 = vtanh.pop %v2030
  %v2032 = vsub.f32 1.0, %v2023
  %v2033 = vmul.f32 %v2032, %v2031
  %v2034 = vmul.f32 %v2023, %v1809
  %v2035 = vadd.f32 %v2033, %v2034
  %v2036 = vmul.f32 %v183, %v2035
  %v2037 = vmul.f32 %v190, %v1809
  %v2038 = vadd.f32 %v2036, %v2037
  %v2039 = vmul.f32 %v314, %v1929
  %2040 = vst.msk [vmem:[%s333] sm:$0x7] %vm326, %v2039
  %v2041 = vmul.f32 %v183, %v2038
  %2043 = vrot.lane.b32.xlu0 %v2041, 32
  %v2044 = vpop.permute.xlu0 %2043
  %2046 = vst.msk [vmem:[%s13] sm:$0x7] %vm334, %v2044
  %2047 = vst.msk [vmem:[%s14] sm:$0x7] %vm326, %v1929
  %s2048 = scalar_lea.vmem %s14, 4
  %2049 = vst.msk [vmem:[%s2048] sm:$0x7] %vm326, %v2038
  // Predicated region
  $region54: #{encoder_forward.2} parent=0 // pred_check
    _
  $region55: #{encoder_forward.2} parent=0 // pred_check_branch
    %2051 = sbr.rel (0) target = $region57
  $region56: #{encoder_forward.2} parent=0 // pred_region
    _
  $region57: #{encoder_forward.2} parent=0 // pred_fallthru
    _
  // Predicated region
  $region58: #{encoder_forward.2} parent=0 // pred_check
    _
  $region59: #{encoder_forward.2} parent=0 // pred_check_branch
    %2053 = sbr.rel (0) target = $region61
  $region60: #{encoder_forward.2} parent=0 // pred_region
    _
  $region61: #{encoder_forward.2} parent=0 // pred_fallthru
    _
  // Predicated region
  $region62: #{encoder_forward.2} parent=0 // pred_check
    _
  $region63: #{encoder_forward.2} parent=0 // pred_check_branch
    %2055 = sbr.rel (0) target = $region65
  $region64: #{encoder_forward.2} parent=0 // pred_region
    _
  $region65: #{encoder_forward.2} parent=0 // pred_fallthru
    _
  // Predicated region
  $region66: #{encoder_forward.2} parent=0 // pred_check
    _
  $region67: #{encoder_forward.2} parent=0 // pred_check_branch
    %2057 = sbr.rel (0) target = $region69
  $region68: #{encoder_forward.2} parent=0 // pred_region
    _
  $region69: #{encoder_forward.2} parent=0 // pred_fallthru
    _

</llo_original>
